<compile_context>
chip_gen: v5e
topology: v5e:2x2
jax: 0.10.0
libtpu: 0.0.40
codegen_flags: <defaults>
</compile_context>

<pallas_src>
import functools

import jax
import jax.numpy as jnp
from jax.experimental import pallas as pl
from jax.experimental.pallas import tpu as pltpu

# MXU operand dtype.  bf16 operands + f32 accumulation cut MXU cycles ~2-3x on
# v5e/v6e/v7x.  Flip to jnp.float32 if tighter agreement with an fp32 torch
# reference is required (DFT-as-matmul in bf16 carries ~1e-3..1e-2 rel. error).
MXU_DTYPE = jnp.bfloat16


# ----------------------------------------------------------------------------
# Host-side (jit-traced) constant builders
# ----------------------------------------------------------------------------
def dft_mats(n, inverse):
    """Dense DFT matrices (real, imag); 'backward' norm folded into the inverse."""
    idx = jnp.arange(n, dtype=jnp.float32)
    ang = 2.0 * jnp.pi * jnp.outer(idx, idx) / n
    if inverse:
        return jnp.cos(ang) / n, jnp.sin(ang) / n      # exp(+i ang) / n
    return jnp.cos(ang), -jnp.sin(ang)                  # exp(-i ang)


def complex_right_mat(er, ei):
    """[Xr|Xi] @ [[Er,Ei],[-Ei,Er]] == lane-stacked complex right-multiply."""
    top = jnp.concatenate([er, ei], axis=1)
    bot = jnp.concatenate([-ei, er], axis=1)
    return jnp.concatenate([top, bot], axis=0)


def toeplitz_conv_mats(w, W):
    """[Cout, Cin, 3, 3] conv weights -> [3, Cin*W, Cout*W] banded matrices
    (one per vertical tap) encoding the horizontal taps + 'same' W padding."""
    cout, cin, KH, KW = w.shape
    wo = jnp.arange(W)
    dx = jnp.arange(KW)
    wi = wo[None, :] + dx[:, None] - 1                       # (KW, W) input col
    valid = (wi >= 0) & (wi < W)
    onehot = jax.nn.one_hot(jnp.where(valid, wi, 0), W, dtype=jnp.float32)
    onehot = onehot * valid[..., None].astype(jnp.float32)   # (KW, Wo, Wi)
    # M[dy, c*W + wi, o*W + wo] = w[o, c, dy, wi - wo + 1]
    m = jnp.einsum("ocyx,xwi->yciow", w.astype(jnp.float32), onehot)
    return m.reshape(KH, cin * W, cout * W)


def batch_pack_toeplitz(m, cin, cout, w_dim, g):
    """Block-diagonal replication over the packed batch dim: contraction /
    output layouts become (channel, batch, W)."""
    kh = m.shape[0]
    m = m.reshape(kh, cin, w_dim, cout, w_dim)
    eye_g = jnp.eye(g, dtype=m.dtype)
    mp = jnp.einsum("yiaob,gh->yigaohb", m, eye_g)
    return mp.reshape(kh, cin * g * w_dim, cout * g * w_dim)


# ----------------------------------------------------------------------------
# Fused KIKI kernel: one grid step = G batch elements, everything in VMEM.
# Data layout: lane-stacked complex, coil slabs (H, 2*Lc) with
# lanes = [real: (g,c,w) | imag: (g,c,w)], image slab (H, 4*G*W) with
# lanes = [img_r(g,w) | img_i | bwd_r | bwd_i].
# ----------------------------------------------------------------------------
def _kiki_kernel(kx_ref, sa_ref, sb_ref, mp_ref, dhf_ref, dhi_ref,
                 ewf_ref, ewi_ref, crep_ref, csi_ref, csb_ref, *rest,
                 H, Lc, domain_sequence):
    conv_refs = rest[:-1]          # 4 refs (M1, b1, M2, b2) per "I" block
    out_ref = rest[-1]

    def dot(a, b):
        return jnp.dot(a.astype(MXU_DTYPE), b.astype(MXU_DTYPE),
                       preferred_element_type=jnp.float32)

    kx = kx_ref[0]                 # (H, 2Lc) masked k-space, [re | im] lanes
    sa = sa_ref[0]                 # (H, 2Lc)  [Sr | Sr]
    sb = sb_ref[0]                 # (H, 2Lc)  [Si | -Si]
    mp = mp_ref[...]               # (H, 2Lc)  binary mask tiled over coils/halves
    dhf = dhf_ref[...]             # (2H, H)   [FHr ; FHi]   forward DFT along H
    dhi = dhi_ref[...]             # (2H, H)   [IHr ; IHi]   inverse DFT along H
    ewf = ewf_ref[...]             # (2Lc, 2Lc) forward DFT along W (blockdiag)
    ewi = ewi_ref[...]             # (2Lc, 2Lc) inverse DFT along W (blockdiag)
    crep = crep_ref[...]           # (4GW, 2Lc) replicate image over coils
    csi = csi_ref[...]             # (2Lc, 4GW) coil sum -> img lanes [0:2GW]
    csb = csb_ref[...]             # (2Lc, 4GW) coil sum -> bwd lanes [2GW:4GW]

    # hoisted constants (reused across all backward/forward/conv calls)
    lane = jax.lax.broadcasted_iota(jnp.int32, (1, 2 * Lc), 1)
    sgn = jnp.where(lane < Lc, -1.0, 1.0).astype(jnp.float32)
    row = jax.lax.broadcasted_iota(jnp.int32, (H, 1), 0)
    top_ok = (row > 0).astype(jnp.float32)        # zero-pad row 0 for dy=0 tap
    bot_ok = (row < H - 1).astype(jnp.float32)    # zero-pad row H-1 for dy=2 tap

    def swap_halves(x):                           # [xr | xi] -> [xi | xr]
        return pltpu.roll(x, Lc, axis=1)

    def dft_h(dpack, x):
        # complex left-multiply: ONE matmul + lane-half roll + sign FMA.
        t = dot(dpack, x)                         # (2H, 2Lc) = [Dr@X ; Di@X]
        b = swap_halves(t[H:2 * H, :])            # [Di Xi | Di Xr]
        return t[0:H, :] + sgn * b                # [DrXr-DiXi | DrXi+DiXr]

    def dft_w(epack, x):
        # complex right-multiply (block-diag over coils*batch): ONE matmul.
        return dot(x, epack)

    def backward_op(k):
        # mask * k -> ifft2 -> * conj(S); caller applies the coil-sum selector.
        y = dft_h(dhi, dft_w(ewi, mp * k))
        return y * sa + swap_halves(y) * sb       # complex_mul(y, conj(S))

    def forward_op(img4):
        # replicate over coils -> * S -> fft2 -> mask
        x = dot(img4, crep)                       # (H, 2Lc)
        z = x * sa - swap_halves(x) * sb          # complex_mul(x, S)
        return mp * dft_w(ewf, dft_h(dhf, z))

    def conv_layer(z, m_ref, b_ref):
        m = m_ref[...]                            # (3, K, N) Toeplitz taps
        z_dn = pltpu.roll(z, 1, axis=0) * top_ok      # input row h-1
        z_up = pltpu.roll(z, H - 1, axis=0) * bot_ok  # input row h+1
        return dot(z_dn, m[0]) + dot(z, m[1]) + dot(z_up, m[2]) + b_ref[...]

    def conv_block(idx, x):
        h1 = jnp.maximum(
            conv_layer(x, conv_refs[4 * idx], conv_refs[4 * idx + 1]), 0.0)
        return conv_layer(h1, conv_refs[4 * idx + 2], conv_refs[4 * idx + 3])

    # ----- domain sequence (statically unrolled) -----
    img4 = dot(backward_op(kx), csi)              # image buffer (bwd lanes = 0)
    kb = kx                                       # k-space buffer
    iblk = 0
    for dom in domain_sequence:
        if dom == "K":
            # kspace_model_list is None -> correction: kb - A(img)
            # (the concatenated masked_kspace of the reference is sliced away).
            kb = kb - forward_op(img4)
        else:
            # conv input = [img_r|img_i|bwd_r|bwd_i]: one VPU add, no concats.
            img4 = conv_block(iblk, img4 + dot(backward_op(kb), csb))
            iblk += 1

    out_ref[0] = img4                             # lane-dense (H, 4GW) store


# ----------------------------------------------------------------------------
# Wrapper (jit this): packs layouts, builds constants, single pallas_call.
# ----------------------------------------------------------------------------
def cross_domain_forward(masked_kspace, sensitivity_maps, sampling_mask,
                         image_params, domain_sequence="KIKI",
                         image_buffer_size=1, kspace_buffer_size=1,
                         batch_pack=None):
    # masked_kspace / sensitivity_maps: [B, C, H, W, 2]; sampling_mask: [1,1,H,W,1]
    if image_buffer_size != 1 or kspace_buffer_size != 1:
        # TODO(synk): fused path implements buffer sizes of 1 (module defaults).
        raise NotImplementedError("only buffer_size=1 is implemented")
    # TODO(synk): fft_centered=True (fftshift) variant not implemented; default False used.
    seq = domain_sequence.strip()
    if not set(seq).issubset({"K", "I"}):
        raise ValueError(f"Invalid domain sequence {seq!r}")

    B, C, H, W, _ = masked_kspace.shape
    f32 = jnp.float32
    mxu = MXU_DTYPE

    # --- batch packing into lanes (fills the 128-lane vreg on 1-TC chips) ---
    if batch_pack is None:
        cap = max(1, 128 // (C * W))
        G = 1
        for g in range(min(B, cap), 0, -1):
            if B % g == 0:
                G = g
                break
    else:
        G = int(batch_pack)
        assert B % G == 0, "batch_pack must divide the batch size"
    # NOTE(v7x): if B is large, prefer G such that B//G >= 2 so both
    # TensorCores get grid steps (grid axis is marked "parallel").
    NG = B // G
    Lc = G * C * W
    GW = G * W

    def pack_lane(x):
        # [B, C, H, W, 2] -> [NG, H, 2*Lc], lanes = [re:(g,c,w) | im:(g,c,w)]
        x = jnp.transpose(x.astype(f32), (0, 2, 4, 1, 3))        # [B,H,2,C,W]
        x = x.reshape(NG, G, H, 2, C, W)
        x = jnp.transpose(x, (0, 2, 3, 1, 4, 5))                 # [NG,H,2,G,C,W]
        return x.reshape(NG, H, 2 * Lc)

    kp = pack_lane(masked_kspace)
    sp = pack_lane(sensitivity_maps)
    s_r, s_i = sp[..., :Lc], sp[..., Lc:]
    sa = jnp.concatenate([s_r, s_r], axis=-1)                    # [Sr | Sr]
    sb = jnp.concatenate([s_i, -s_i], axis=-1)                   # [Si | -Si]

    mask2d = sampling_mask.reshape(H, W).astype(f32)
    mp = jnp.tile(mask2d, (1, 2 * G * C))                        # (H, 2Lc)

    # --- DFT constants (pre-cast to MXU dtype host-side) ---
    fhr, fhi = dft_mats(H, inverse=False)
    ihr, ihi = dft_mats(H, inverse=True)
    fwr, fwi = dft_mats(W, inverse=False)
    iwr, iwi = dft_mats(W, inverse=True)
    dhf = jnp.concatenate([fhr, fhi], axis=0).astype(mxu)        # (2H, H)
    dhi = jnp.concatenate([ihr, ihi], axis=0).astype(mxu)
    eye_gc = jnp.eye(G * C, dtype=f32)
    ewf = complex_right_mat(jnp.kron(eye_gc, fwr),
                            jnp.kron(eye_gc, fwi)).astype(mxu)   # (2Lc, 2Lc)
    ewi = complex_right_mat(jnp.kron(eye_gc, iwr),
                            jnp.kron(eye_gc, iwi)).astype(mxu)

    # --- coil-combine / replicate selectors, fused with channel placement ---
    csum_core = jnp.kron(
        jnp.eye(2, dtype=f32),
        jnp.kron(jnp.eye(G, dtype=f32),
                 jnp.kron(jnp.ones((C, 1), f32), jnp.eye(W, dtype=f32))))
    z_img = jnp.zeros((2 * Lc, 2 * GW), f32)
    csi = jnp.concatenate([csum_core, z_img], axis=1).astype(mxu)   # -> img lanes
    csb = jnp.concatenate([z_img, csum_core], axis=1).astype(mxu)   # -> bwd lanes
    crep = jnp.concatenate([csum_core.T, jnp.zeros((2 * GW, 2 * Lc), f32)],
                           axis=0).astype(mxu)                      # (4GW, 2Lc)

    # --- conv Toeplitz constants (batch-block-diagonal, pre-cast) ---
    n_i = seq.count("I")
    assert len(image_params) == n_i
    conv_arrays = []
    conv_specs = []
    for (w1, b1, w2, b2) in image_params:
        hidden, cin = int(w1.shape[0]), int(w1.shape[1])
        assert cin == 4, "in_channels must be 2*image_buffer_size + 2 = 4"
        m1 = batch_pack_toeplitz(toeplitz_conv_mats(w1, W), cin, hidden, W, G)
        m2 = batch_pack_toeplitz(toeplitz_conv_mats(w2, W), hidden, 2, W, G)
        # layer-2 output columns [2GW:4GW] are zero -> bwd lanes of img4 stay 0.
        m2 = jnp.concatenate(
            [m2, jnp.zeros((m2.shape[0], m2.shape[1], 2 * GW), f32)], axis=2)
        b1p = jnp.repeat(b1.astype(f32), GW)[None, :]            # (1, hid*G*W)
        b2p = jnp.concatenate([jnp.repeat(b2.astype(f32), GW),
                               jnp.zeros((2 * GW,), f32)])[None, :]  # (1, 4GW)
        m1 = m1.astype(mxu)
        m2 = m2.astype(mxu)
        conv_arrays += [m1, b1p, m2, b2p]
        conv_specs += [
            pl.BlockSpec(m1.shape, lambda g: (0, 0, 0)),
            pl.BlockSpec(b1p.shape, lambda g: (0, 0)),
            pl.BlockSpec(m2.shape, lambda g: (0, 0, 0)),
            pl.BlockSpec(b2p.shape, lambda g: (0, 0)),
        ]

    kernel = functools.partial(_kiki_kernel, H=H, Lc=Lc, domain_sequence=seq)

    out = pl.pallas_call(
        kernel,
        out_shape=jax.ShapeDtypeStruct((NG, H, 4 * GW), f32),
        grid_spec=pltpu.PrefetchScalarGridSpec(
            num_scalar_prefetch=0,
            grid=(NG,),
            in_specs=[
                pl.BlockSpec((1, H, 2 * Lc), lambda g: (g, 0, 0)),   # kspace
                pl.BlockSpec((1, H, 2 * Lc), lambda g: (g, 0, 0)),   # S_a
                pl.BlockSpec((1, H, 2 * Lc), lambda g: (g, 0, 0)),   # S_b
                pl.BlockSpec((H, 2 * Lc), lambda g: (0, 0)),         # mask
                pl.BlockSpec((2 * H, H), lambda g: (0, 0)),          # fwd DFT H
                pl.BlockSpec((2 * H, H), lambda g: (0, 0)),          # inv DFT H
                pl.BlockSpec((2 * Lc, 2 * Lc), lambda g: (0, 0)),    # fwd DFT W
                pl.BlockSpec((2 * Lc, 2 * Lc), lambda g: (0, 0)),    # inv DFT W
                pl.BlockSpec((4 * GW, 2 * Lc), lambda g: (0, 0)),    # coil repl.
                pl.BlockSpec((2 * Lc, 4 * GW), lambda g: (0, 0)),    # coil sum->img
                pl.BlockSpec((2 * Lc, 4 * GW), lambda g: (0, 0)),    # coil sum->bwd
            ] + conv_specs,
            out_specs=pl.BlockSpec((1, H, 4 * GW), lambda g: (g, 0, 0)),
        ),
        compiler_params=pltpu.CompilerParams(
            dimension_semantics=("parallel",)),
    )(kp, sa, sb, mp, dhf, dhi, ewf, ewi, crep, csi, csb, *conv_arrays)

    # unpack lane-dense slab: lanes [0:2GW] = (half, g, w)
    img = out[:, :, : 2 * GW].reshape(NG, H, 2, G, W)
    img = jnp.transpose(img, (0, 3, 1, 4, 2)).reshape(B, H, W, 2)
    return img


if __name__ == "__main__":
    B, C, H, W = 2, 4, 16, 16
    hidden = 8
    key = jax.random.PRNGKey(0)
    k1, k2, k3, kp_ = jax.random.split(key, 4)

    sampling_mask = (jax.random.uniform(k3, (1, 1, H, W, 1)) > 0.5).astype(
        jnp.float32)
    masked_kspace = jax.random.normal(k1, (B, C, H, W, 2),
                                      jnp.float32) * sampling_mask
    sensitivity_maps = jax.random.normal(k2, (B, C, H, W, 2), jnp.float32)

    # image_model_list: one 2-layer 3x3 CNN per "I" block in "KIKI" (2 blocks)
    # in_channels = 2*image_buffer_size + 2 (backward of corrected k-space buf)
    cin = 4
    image_params = []
    for _ in range(2):
        kp_, ka, kb, kc, kd = jax.random.split(kp_, 5)
        w1 = 0.1 * jax.random.normal(ka, (hidden, cin, 3, 3), jnp.float32)
        b1 = 0.1 * jax.random.normal(kb, (hidden,), jnp.float32)
        w2 = 0.1 * jax.random.normal(kc, (2, hidden, 3, 3), jnp.float32)
        b2 = 0.1 * jax.random.normal(kd, (2,), jnp.float32)
        image_params.append((w1, b1, w2, b2))

    fwd = jax.jit(cross_domain_forward,
                  static_argnames=("domain_sequence", "image_buffer_size",
                                   "kspace_buffer_size", "batch_pack"))
    out = fwd(masked_kspace, sensitivity_maps, sampling_mask, image_params)
    out = jax.block_until_ready(out)
    assert out.shape == (B, H, W, 2), out.shape
    assert out.dtype == jnp.float32
    print("KERNEL_OK")
</pallas_src>

<mosaic_0001>
module attributes {stable_mosaic.version = 11 : i64} {
  func.func @_kiki_kernel(%arg0: i32, %arg1: memref<1x16x256xf32, #tpu.memory_space<vmem>>, %arg2: memref<1x16x256xf32, #tpu.memory_space<vmem>>, %arg3: memref<1x16x256xf32, #tpu.memory_space<vmem>>, %arg4: memref<16x256xf32, #tpu.memory_space<vmem>>, %arg5: memref<32x16xbf16, #tpu.memory_space<vmem>>, %arg6: memref<32x16xbf16, #tpu.memory_space<vmem>>, %arg7: memref<256x256xbf16, #tpu.memory_space<vmem>>, %arg8: memref<256x256xbf16, #tpu.memory_space<vmem>>, %arg9: memref<128x256xbf16, #tpu.memory_space<vmem>>, %arg10: memref<256x128xbf16, #tpu.memory_space<vmem>>, %arg11: memref<256x128xbf16, #tpu.memory_space<vmem>>, %arg12: memref<3x128x256xbf16, #tpu.memory_space<vmem>>, %arg13: memref<1x256xf32, #tpu.memory_space<vmem>>, %arg14: memref<3x256x128xbf16, #tpu.memory_space<vmem>>, %arg15: memref<1x128xf32, #tpu.memory_space<vmem>>, %arg16: memref<3x128x256xbf16, #tpu.memory_space<vmem>>, %arg17: memref<1x256xf32, #tpu.memory_space<vmem>>, %arg18: memref<3x256x128xbf16, #tpu.memory_space<vmem>>, %arg19: memref<1x128xf32, #tpu.memory_space<vmem>>, %arg20: memref<1x16x128xf32, #tpu.memory_space<vmem>>) attributes {dimension_semantics = [#tpu.dimension_semantics<parallel>], iteration_bounds = array<i64: 1>, scalar_prefetch = 0 : i64, scratch_operands = 0 : i64, tpu.core_type = #tpu.core_type<tc>, window_params = [{transform_indices = @transform_0, window_bounds = array<i64: 1, 16, 256>}, {transform_indices = @transform_1, window_bounds = array<i64: 1, 16, 256>}, {transform_indices = @transform_2, window_bounds = array<i64: 1, 16, 256>}, {pipeline_mode = #tpu.pipeline_mode<synchronous>, transform_indices = @transform_3, window_bounds = array<i64: 16, 256>}, {pipeline_mode = #tpu.pipeline_mode<synchronous>, transform_indices = @transform_4, window_bounds = array<i64: 32, 16>}, {pipeline_mode = #tpu.pipeline_mode<synchronous>, transform_indices = @transform_5, window_bounds = array<i64: 32, 16>}, {pipeline_mode = #tpu.pipeline_mode<synchronous>, transform_indices = @transform_6, window_bounds = array<i64: 256, 256>}, {pipeline_mode = #tpu.pipeline_mode<synchronous>, transform_indices = @transform_7, window_bounds = array<i64: 256, 256>}, {pipeline_mode = #tpu.pipeline_mode<synchronous>, transform_indices = @transform_8, window_bounds = array<i64: 128, 256>}, {pipeline_mode = #tpu.pipeline_mode<synchronous>, transform_indices = @transform_9, window_bounds = array<i64: 256, 128>}, {pipeline_mode = #tpu.pipeline_mode<synchronous>, transform_indices = @transform_10, window_bounds = array<i64: 256, 128>}, {pipeline_mode = #tpu.pipeline_mode<synchronous>, transform_indices = @transform_11, window_bounds = array<i64: 3, 128, 256>}, {pipeline_mode = #tpu.pipeline_mode<synchronous>, transform_indices = @transform_12, window_bounds = array<i64: 1, 256>}, {pipeline_mode = #tpu.pipeline_mode<synchronous>, transform_indices = @transform_13, window_bounds = array<i64: 3, 256, 128>}, {pipeline_mode = #tpu.pipeline_mode<synchronous>, transform_indices = @transform_14, window_bounds = array<i64: 1, 128>}, {pipeline_mode = #tpu.pipeline_mode<synchronous>, transform_indices = @transform_15, window_bounds = array<i64: 3, 128, 256>}, {pipeline_mode = #tpu.pipeline_mode<synchronous>, transform_indices = @transform_16, window_bounds = array<i64: 1, 256>}, {pipeline_mode = #tpu.pipeline_mode<synchronous>, transform_indices = @transform_17, window_bounds = array<i64: 3, 256, 128>}, {pipeline_mode = #tpu.pipeline_mode<synchronous>, transform_indices = @transform_18, window_bounds = array<i64: 1, 128>}, {transform_indices = @transform_19, window_bounds = array<i64: 1, 16, 128>}]} {
    %c0 = arith.constant 0 : index
    %c0_0 = arith.constant 0 : index
    %c0_1 = arith.constant 0 : index
    %0 = vector.load %arg1[%c0, %c0_0, %c0_1] : memref<1x16x256xf32, #tpu.memory_space<vmem>>, vector<1x16x256xf32>
    %1 = vector.shape_cast %0 : vector<1x16x256xf32> to vector<16x256xf32>
    %c0_2 = arith.constant 0 : index
    %c0_3 = arith.constant 0 : index
    %c0_4 = arith.constant 0 : index
    %2 = vector.load %arg2[%c0_2, %c0_3, %c0_4] : memref<1x16x256xf32, #tpu.memory_space<vmem>>, vector<1x16x256xf32>
    %3 = vector.shape_cast %2 : vector<1x16x256xf32> to vector<16x256xf32>
    %c0_5 = arith.constant 0 : index
    %c0_6 = arith.constant 0 : index
    %c0_7 = arith.constant 0 : index
    %4 = vector.load %arg3[%c0_5, %c0_6, %c0_7] : memref<1x16x256xf32, #tpu.memory_space<vmem>>, vector<1x16x256xf32>
    %5 = vector.shape_cast %4 : vector<1x16x256xf32> to vector<16x256xf32>
    %c0_8 = arith.constant 0 : index
    %c0_9 = arith.constant 0 : index
    %6 = vector.load %arg4[%c0_8, %c0_9] : memref<16x256xf32, #tpu.memory_space<vmem>>, vector<16x256xf32>
    %c0_10 = arith.constant 0 : index
    %c0_11 = arith.constant 0 : index
    %7 = vector.load %arg5[%c0_10, %c0_11] : memref<32x16xbf16, #tpu.memory_space<vmem>>, vector<32x16xbf16>
    %c0_12 = arith.constant 0 : index
    %c0_13 = arith.constant 0 : index
    %8 = vector.load %arg6[%c0_12, %c0_13] : memref<32x16xbf16, #tpu.memory_space<vmem>>, vector<32x16xbf16>
    %c0_14 = arith.constant 0 : index
    %c0_15 = arith.constant 0 : index
    %9 = vector.load %arg7[%c0_14, %c0_15] : memref<256x256xbf16, #tpu.memory_space<vmem>>, vector<256x256xbf16>
    %c0_16 = arith.constant 0 : index
    %c0_17 = arith.constant 0 : index
    %10 = vector.load %arg8[%c0_16, %c0_17] : memref<256x256xbf16, #tpu.memory_space<vmem>>, vector<256x256xbf16>
    %c0_18 = arith.constant 0 : index
    %c0_19 = arith.constant 0 : index
    %11 = vector.load %arg9[%c0_18, %c0_19] : memref<128x256xbf16, #tpu.memory_space<vmem>>, vector<128x256xbf16>
    %c0_20 = arith.constant 0 : index
    %c0_21 = arith.constant 0 : index
    %12 = vector.load %arg10[%c0_20, %c0_21] : memref<256x128xbf16, #tpu.memory_space<vmem>>, vector<256x128xbf16>
    %c0_22 = arith.constant 0 : index
    %c0_23 = arith.constant 0 : index
    %13 = vector.load %arg11[%c0_22, %c0_23] : memref<256x128xbf16, #tpu.memory_space<vmem>>, vector<256x128xbf16>
    %14 = tpu.iota {dimensions = array<i32: 1>} : vector<1x256xi32>
    %c128_i32 = arith.constant 128 : i32
    %15 = vector.broadcast %c128_i32 : i32 to vector<1x256xi32>
    %16 = arith.cmpi slt, %14, %15 : vector<1x256xi32>
    %cst = arith.constant -1.000000e+00 : f32
    %cst_24 = arith.constant 1.000000e+00 : f32
    %17 = vector.broadcast %cst : f32 to vector<1x256xf32>
    %18 = vector.broadcast %cst_24 : f32 to vector<1x256xf32>
    %19 = arith.select %16, %17, %18 : vector<1x256xi1>, vector<1x256xf32>
    %20 = tpu.iota {dimensions = array<i32: 0>} : vector<16x1xi32>
    %c0_i32 = arith.constant 0 : i32
    %21 = vector.broadcast %c0_i32 : i32 to vector<16x1xi32>
    %22 = arith.cmpi sgt, %20, %21 : vector<16x1xi32>
    %23 = arith.extui %22 : vector<16x1xi1> to vector<16x1xi32>
    %24 = arith.sitofp %23 : vector<16x1xi32> to vector<16x1xf32>
    %c15_i32 = arith.constant 15 : i32
    %25 = vector.broadcast %c15_i32 : i32 to vector<16x1xi32>
    %26 = arith.cmpi slt, %20, %25 : vector<16x1xi32>
    %27 = arith.extui %26 : vector<16x1xi1> to vector<16x1xi32>
    %28 = arith.sitofp %27 : vector<16x1xi32> to vector<16x1xf32>
    %29 = arith.mulf %6, %1 : vector<16x256xf32>
    %30 = arith.truncf %29 : vector<16x256xf32> to vector<16x256xbf16>
    %cst_25 = arith.constant dense<0.000000e+00> : vector<16x256xf32>
    %31 = tpu.matmul %30, %10, %cst_25 {dimension_numbers = #tpu.dot_dimension_numbers<[1], [0], [0], [1], [0, 0, 1, 1], [], []>} : vector<16x256xbf16>, vector<256x256xbf16>, vector<16x256xf32> -> vector<16x256xf32>
    %32 = arith.truncf %31 : vector<16x256xf32> to vector<16x256xbf16>
    %cst_26 = arith.constant dense<0.000000e+00> : vector<32x256xf32>
    %33 = tpu.matmul %8, %32, %cst_26 {dimension_numbers = #tpu.dot_dimension_numbers<[1], [0], [0], [1], [0, 0, 1, 1], [], []>} : vector<32x16xbf16>, vector<16x256xbf16>, vector<32x256xf32> -> vector<32x256xf32>
    %34 = vector.extract_strided_slice %33 {offsets = [16, 0], sizes = [16, 256], strides = [1, 1]} : vector<32x256xf32> to vector<16x256xf32>
    %c128_i32_27 = arith.constant 128 : i32
    %35 = tpu.dynamic_rotate %34 by %c128_i32_27 dim 1 : vector<16x256xf32>, i32 -> vector<16x256xf32>
    %36 = vector.extract_strided_slice %33 {offsets = [0, 0], sizes = [16, 256], strides = [1, 1]} : vector<32x256xf32> to vector<16x256xf32>
    %37 = vector.broadcast %19 : vector<1x256xf32> to vector<16x256xf32>
    %38 = arith.mulf %37, %35 : vector<16x256xf32>
    %39 = arith.addf %36, %38 : vector<16x256xf32>
    %40 = arith.mulf %39, %3 : vector<16x256xf32>
    %c128_i32_28 = arith.constant 128 : i32
    %41 = tpu.dynamic_rotate %39 by %c128_i32_28 dim 1 : vector<16x256xf32>, i32 -> vector<16x256xf32>
    %42 = arith.mulf %41, %5 : vector<16x256xf32>
    %43 = arith.addf %40, %42 : vector<16x256xf32>
    %44 = arith.truncf %43 : vector<16x256xf32> to vector<16x256xbf16>
    %cst_29 = arith.constant dense<0.000000e+00> : vector<16x128xf32>
    %45 = tpu.matmul %44, %12, %cst_29 {dimension_numbers = #tpu.dot_dimension_numbers<[1], [0], [0], [1], [0, 0, 1, 1], [], []>} : vector<16x256xbf16>, vector<256x128xbf16>, vector<16x128xf32> -> vector<16x128xf32>
    %46 = arith.truncf %45 : vector<16x128xf32> to vector<16x128xbf16>
    %cst_30 = arith.constant dense<0.000000e+00> : vector<16x256xf32>
    %47 = tpu.matmul %46, %11, %cst_30 {dimension_numbers = #tpu.dot_dimension_numbers<[1], [0], [0], [1], [0, 0, 1, 1], [], []>} : vector<16x128xbf16>, vector<128x256xbf16>, vector<16x256xf32> -> vector<16x256xf32>
    %48 = arith.mulf %47, %3 : vector<16x256xf32>
    %c128_i32_31 = arith.constant 128 : i32
    %49 = tpu.dynamic_rotate %47 by %c128_i32_31 dim 1 : vector<16x256xf32>, i32 -> vector<16x256xf32>
    %50 = arith.mulf %49, %5 : vector<16x256xf32>
    %51 = arith.subf %48, %50 : vector<16x256xf32>
    %52 = arith.truncf %51 : vector<16x256xf32> to vector<16x256xbf16>
    %cst_32 = arith.constant dense<0.000000e+00> : vector<32x256xf32>
    %53 = tpu.matmul %7, %52, %cst_32 {dimension_numbers = #tpu.dot_dimension_numbers<[1], [0], [0], [1], [0, 0, 1, 1], [], []>} : vector<32x16xbf16>, vector<16x256xbf16>, vector<32x256xf32> -> vector<32x256xf32>
    %54 = vector.extract_strided_slice %53 {offsets = [16, 0], sizes = [16, 256], strides = [1, 1]} : vector<32x256xf32> to vector<16x256xf32>
    %c128_i32_33 = arith.constant 128 : i32
    %55 = tpu.dynamic_rotate %54 by %c128_i32_33 dim 1 : vector<16x256xf32>, i32 -> vector<16x256xf32>
    %56 = vector.extract_strided_slice %53 {offsets = [0, 0], sizes = [16, 256], strides = [1, 1]} : vector<32x256xf32> to vector<16x256xf32>
    %57 = vector.broadcast %19 : vector<1x256xf32> to vector<16x256xf32>
    %58 = arith.mulf %57, %55 : vector<16x256xf32>
    %59 = arith.addf %56, %58 : vector<16x256xf32>
    %60 = arith.truncf %59 : vector<16x256xf32> to vector<16x256xbf16>
    %cst_34 = arith.constant dense<0.000000e+00> : vector<16x256xf32>
    %61 = tpu.matmul %60, %9, %cst_34 {dimension_numbers = #tpu.dot_dimension_numbers<[1], [0], [0], [1], [0, 0, 1, 1], [], []>} : vector<16x256xbf16>, vector<256x256xbf16>, vector<16x256xf32> -> vector<16x256xf32>
    %62 = arith.mulf %6, %61 : vector<16x256xf32>
    %63 = arith.subf %1, %62 : vector<16x256xf32>
    %64 = arith.mulf %6, %63 : vector<16x256xf32>
    %65 = arith.truncf %64 : vector<16x256xf32> to vector<16x256xbf16>
    %cst_35 = arith.constant dense<0.000000e+00> : vector<16x256xf32>
    %66 = tpu.matmul %65, %10, %cst_35 {dimension_numbers = #tpu.dot_dimension_numbers<[1], [0], [0], [1], [0, 0, 1, 1], [], []>} : vector<16x256xbf16>, vector<256x256xbf16>, vector<16x256xf32> -> vector<16x256xf32>
    %67 = arith.truncf %66 : vector<16x256xf32> to vector<16x256xbf16>
    %cst_36 = arith.constant dense<0.000000e+00> : vector<32x256xf32>
    %68 = tpu.matmul %8, %67, %cst_36 {dimension_numbers = #tpu.dot_dimension_numbers<[1], [0], [0], [1], [0, 0, 1, 1], [], []>} : vector<32x16xbf16>, vector<16x256xbf16>, vector<32x256xf32> -> vector<32x256xf32>
    %69 = vector.extract_strided_slice %68 {offsets = [16, 0], sizes = [16, 256], strides = [1, 1]} : vector<32x256xf32> to vector<16x256xf32>
    %c128_i32_37 = arith.constant 128 : i32
    %70 = tpu.dynamic_rotate %69 by %c128_i32_37 dim 1 : vector<16x256xf32>, i32 -> vector<16x256xf32>
    %71 = vector.extract_strided_slice %68 {offsets = [0, 0], sizes = [16, 256], strides = [1, 1]} : vector<32x256xf32> to vector<16x256xf32>
    %72 = vector.broadcast %19 : vector<1x256xf32> to vector<16x256xf32>
    %73 = arith.mulf %72, %70 : vector<16x256xf32>
    %74 = arith.addf %71, %73 : vector<16x256xf32>
    %75 = arith.mulf %74, %3 : vector<16x256xf32>
    %c128_i32_38 = arith.constant 128 : i32
    %76 = tpu.dynamic_rotate %74 by %c128_i32_38 dim 1 : vector<16x256xf32>, i32 -> vector<16x256xf32>
    %77 = arith.mulf %76, %5 : vector<16x256xf32>
    %78 = arith.addf %75, %77 : vector<16x256xf32>
    %79 = arith.truncf %78 : vector<16x256xf32> to vector<16x256xbf16>
    %cst_39 = arith.constant dense<0.000000e+00> : vector<16x128xf32>
    %80 = tpu.matmul %79, %13, %cst_39 {dimension_numbers = #tpu.dot_dimension_numbers<[1], [0], [0], [1], [0, 0, 1, 1], [], []>} : vector<16x256xbf16>, vector<256x128xbf16>, vector<16x128xf32> -> vector<16x128xf32>
    %81 = arith.addf %45, %80 : vector<16x128xf32>
    %c0_40 = arith.constant 0 : index
    %c0_41 = arith.constant 0 : index
    %c0_42 = arith.constant 0 : index
    %82 = vector.load %arg12[%c0_40, %c0_41, %c0_42] : memref<3x128x256xbf16, #tpu.memory_space<vmem>>, vector<3x128x256xbf16>
    %c1_i32 = arith.constant 1 : i32
    %83 = tpu.dynamic_rotate %81 by %c1_i32 dim 0 : vector<16x128xf32>, i32 -> vector<16x128xf32>
    %84 = vector.broadcast %24 : vector<16x1xf32> to vector<16x128xf32>
    %85 = arith.mulf %83, %84 : vector<16x128xf32>
    %c15_i32_43 = arith.constant 15 : i32
    %86 = tpu.dynamic_rotate %81 by %c15_i32_43 dim 0 : vector<16x128xf32>, i32 -> vector<16x128xf32>
    %87 = vector.broadcast %28 : vector<16x1xf32> to vector<16x128xf32>
    %88 = arith.mulf %86, %87 : vector<16x128xf32>
    %89 = vector.extract_strided_slice %82 {offsets = [0, 0, 0], sizes = [1, 128, 256], strides = [1, 1, 1]} : vector<3x128x256xbf16> to vector<1x128x256xbf16>
    %90 = vector.shape_cast %89 : vector<1x128x256xbf16> to vector<128x256xbf16>
    %91 = arith.truncf %85 : vector<16x128xf32> to vector<16x128xbf16>
    %cst_44 = arith.constant dense<0.000000e+00> : vector<16x256xf32>
    %92 = tpu.matmul %91, %90, %cst_44 {dimension_numbers = #tpu.dot_dimension_numbers<[1], [0], [0], [1], [0, 0, 1, 1], [], []>} : vector<16x128xbf16>, vector<128x256xbf16>, vector<16x256xf32> -> vector<16x256xf32>
    %93 = vector.extract_strided_slice %82 {offsets = [1, 0, 0], sizes = [1, 128, 256], strides = [1, 1, 1]} : vector<3x128x256xbf16> to vector<1x128x256xbf16>
    %94 = vector.shape_cast %93 : vector<1x128x256xbf16> to vector<128x256xbf16>
    %95 = arith.truncf %81 : vector<16x128xf32> to vector<16x128xbf16>
    %cst_45 = arith.constant dense<0.000000e+00> : vector<16x256xf32>
    %96 = tpu.matmul %95, %94, %cst_45 {dimension_numbers = #tpu.dot_dimension_numbers<[1], [0], [0], [1], [0, 0, 1, 1], [], []>} : vector<16x128xbf16>, vector<128x256xbf16>, vector<16x256xf32> -> vector<16x256xf32>
    %97 = arith.addf %92, %96 : vector<16x256xf32>
    %98 = vector.extract_strided_slice %82 {offsets = [2, 0, 0], sizes = [1, 128, 256], strides = [1, 1, 1]} : vector<3x128x256xbf16> to vector<1x128x256xbf16>
    %99 = vector.shape_cast %98 : vector<1x128x256xbf16> to vector<128x256xbf16>
    %100 = arith.truncf %88 : vector<16x128xf32> to vector<16x128xbf16>
    %cst_46 = arith.constant dense<0.000000e+00> : vector<16x256xf32>
    %101 = tpu.matmul %100, %99, %cst_46 {dimension_numbers = #tpu.dot_dimension_numbers<[1], [0], [0], [1], [0, 0, 1, 1], [], []>} : vector<16x128xbf16>, vector<128x256xbf16>, vector<16x256xf32> -> vector<16x256xf32>
    %102 = arith.addf %97, %101 : vector<16x256xf32>
    %c0_47 = arith.constant 0 : index
    %c0_48 = arith.constant 0 : index
    %103 = vector.load %arg13[%c0_47, %c0_48] : memref<1x256xf32, #tpu.memory_space<vmem>>, vector<1x256xf32>
    %104 = vector.broadcast %103 : vector<1x256xf32> to vector<16x256xf32>
    %105 = arith.addf %102, %104 : vector<16x256xf32>
    %cst_49 = arith.constant 0.000000e+00 : f32
    %106 = vector.broadcast %cst_49 : f32 to vector<16x256xf32>
    %107 = arith.maximumf %105, %106 : vector<16x256xf32>
    %c0_50 = arith.constant 0 : index
    %c0_51 = arith.constant 0 : index
    %c0_52 = arith.constant 0 : index
    %108 = vector.load %arg14[%c0_50, %c0_51, %c0_52] : memref<3x256x128xbf16, #tpu.memory_space<vmem>>, vector<3x256x128xbf16>
    %c1_i32_53 = arith.constant 1 : i32
    %109 = tpu.dynamic_rotate %107 by %c1_i32_53 dim 0 : vector<16x256xf32>, i32 -> vector<16x256xf32>
    %110 = vector.broadcast %24 : vector<16x1xf32> to vector<16x256xf32>
    %111 = arith.mulf %109, %110 : vector<16x256xf32>
    %c15_i32_54 = arith.constant 15 : i32
    %112 = tpu.dynamic_rotate %107 by %c15_i32_54 dim 0 : vector<16x256xf32>, i32 -> vector<16x256xf32>
    %113 = vector.broadcast %28 : vector<16x1xf32> to vector<16x256xf32>
    %114 = arith.mulf %112, %113 : vector<16x256xf32>
    %115 = vector.extract_strided_slice %108 {offsets = [0, 0, 0], sizes = [1, 256, 128], strides = [1, 1, 1]} : vector<3x256x128xbf16> to vector<1x256x128xbf16>
    %116 = vector.shape_cast %115 : vector<1x256x128xbf16> to vector<256x128xbf16>
    %117 = arith.truncf %111 : vector<16x256xf32> to vector<16x256xbf16>
    %cst_55 = arith.constant dense<0.000000e+00> : vector<16x128xf32>
    %118 = tpu.matmul %117, %116, %cst_55 {dimension_numbers = #tpu.dot_dimension_numbers<[1], [0], [0], [1], [0, 0, 1, 1], [], []>} : vector<16x256xbf16>, vector<256x128xbf16>, vector<16x128xf32> -> vector<16x128xf32>
    %119 = vector.extract_strided_slice %108 {offsets = [1, 0, 0], sizes = [1, 256, 128], strides = [1, 1, 1]} : vector<3x256x128xbf16> to vector<1x256x128xbf16>
    %120 = vector.shape_cast %119 : vector<1x256x128xbf16> to vector<256x128xbf16>
    %121 = arith.truncf %107 : vector<16x256xf32> to vector<16x256xbf16>
    %cst_56 = arith.constant dense<0.000000e+00> : vector<16x128xf32>
    %122 = tpu.matmul %121, %120, %cst_56 {dimension_numbers = #tpu.dot_dimension_numbers<[1], [0], [0], [1], [0, 0, 1, 1], [], []>} : vector<16x256xbf16>, vector<256x128xbf16>, vector<16x128xf32> -> vector<16x128xf32>
    %123 = arith.addf %118, %122 : vector<16x128xf32>
    %124 = vector.extract_strided_slice %108 {offsets = [2, 0, 0], sizes = [1, 256, 128], strides = [1, 1, 1]} : vector<3x256x128xbf16> to vector<1x256x128xbf16>
    %125 = vector.shape_cast %124 : vector<1x256x128xbf16> to vector<256x128xbf16>
    %126 = arith.truncf %114 : vector<16x256xf32> to vector<16x256xbf16>
    %cst_57 = arith.constant dense<0.000000e+00> : vector<16x128xf32>
    %127 = tpu.matmul %126, %125, %cst_57 {dimension_numbers = #tpu.dot_dimension_numbers<[1], [0], [0], [1], [0, 0, 1, 1], [], []>} : vector<16x256xbf16>, vector<256x128xbf16>, vector<16x128xf32> -> vector<16x128xf32>
    %128 = arith.addf %123, %127 : vector<16x128xf32>
    %c0_58 = arith.constant 0 : index
    %c0_59 = arith.constant 0 : index
    %129 = vector.load %arg15[%c0_58, %c0_59] : memref<1x128xf32, #tpu.memory_space<vmem>>, vector<1x128xf32>
    %130 = vector.broadcast %129 : vector<1x128xf32> to vector<16x128xf32>
    %131 = arith.addf %128, %130 : vector<16x128xf32>
    %132 = arith.truncf %131 : vector<16x128xf32> to vector<16x128xbf16>
    %cst_60 = arith.constant dense<0.000000e+00> : vector<16x256xf32>
    %133 = tpu.matmul %132, %11, %cst_60 {dimension_numbers = #tpu.dot_dimension_numbers<[1], [0], [0], [1], [0, 0, 1, 1], [], []>} : vector<16x128xbf16>, vector<128x256xbf16>, vector<16x256xf32> -> vector<16x256xf32>
    %134 = arith.mulf %133, %3 : vector<16x256xf32>
    %c128_i32_61 = arith.constant 128 : i32
    %135 = tpu.dynamic_rotate %133 by %c128_i32_61 dim 1 : vector<16x256xf32>, i32 -> vector<16x256xf32>
    %136 = arith.mulf %135, %5 : vector<16x256xf32>
    %137 = arith.subf %134, %136 : vector<16x256xf32>
    %138 = arith.truncf %137 : vector<16x256xf32> to vector<16x256xbf16>
    %cst_62 = arith.constant dense<0.000000e+00> : vector<32x256xf32>
    %139 = tpu.matmul %7, %138, %cst_62 {dimension_numbers = #tpu.dot_dimension_numbers<[1], [0], [0], [1], [0, 0, 1, 1], [], []>} : vector<32x16xbf16>, vector<16x256xbf16>, vector<32x256xf32> -> vector<32x256xf32>
    %140 = vector.extract_strided_slice %139 {offsets = [16, 0], sizes = [16, 256], strides = [1, 1]} : vector<32x256xf32> to vector<16x256xf32>
    %c128_i32_63 = arith.constant 128 : i32
    %141 = tpu.dynamic_rotate %140 by %c128_i32_63 dim 1 : vector<16x256xf32>, i32 -> vector<16x256xf32>
    %142 = vector.extract_strided_slice %139 {offsets = [0, 0], sizes = [16, 256], strides = [1, 1]} : vector<32x256xf32> to vector<16x256xf32>
    %143 = vector.broadcast %19 : vector<1x256xf32> to vector<16x256xf32>
    %144 = arith.mulf %143, %141 : vector<16x256xf32>
    %145 = arith.addf %142, %144 : vector<16x256xf32>
    %146 = arith.truncf %145 : vector<16x256xf32> to vector<16x256xbf16>
    %cst_64 = arith.constant dense<0.000000e+00> : vector<16x256xf32>
    %147 = tpu.matmul %146, %9, %cst_64 {dimension_numbers = #tpu.dot_dimension_numbers<[1], [0], [0], [1], [0, 0, 1, 1], [], []>} : vector<16x256xbf16>, vector<256x256xbf16>, vector<16x256xf32> -> vector<16x256xf32>
    %148 = arith.mulf %6, %147 : vector<16x256xf32>
    %149 = arith.subf %63, %148 : vector<16x256xf32>
    %150 = arith.mulf %6, %149 : vector<16x256xf32>
    %151 = arith.truncf %150 : vector<16x256xf32> to vector<16x256xbf16>
    %cst_65 = arith.constant dense<0.000000e+00> : vector<16x256xf32>
    %152 = tpu.matmul %151, %10, %cst_65 {dimension_numbers = #tpu.dot_dimension_numbers<[1], [0], [0], [1], [0, 0, 1, 1], [], []>} : vector<16x256xbf16>, vector<256x256xbf16>, vector<16x256xf32> -> vector<16x256xf32>
    %153 = arith.truncf %152 : vector<16x256xf32> to vector<16x256xbf16>
    %cst_66 = arith.constant dense<0.000000e+00> : vector<32x256xf32>
    %154 = tpu.matmul %8, %153, %cst_66 {dimension_numbers = #tpu.dot_dimension_numbers<[1], [0], [0], [1], [0, 0, 1, 1], [], []>} : vector<32x16xbf16>, vector<16x256xbf16>, vector<32x256xf32> -> vector<32x256xf32>
    %155 = vector.extract_strided_slice %154 {offsets = [16, 0], sizes = [16, 256], strides = [1, 1]} : vector<32x256xf32> to vector<16x256xf32>
    %c128_i32_67 = arith.constant 128 : i32
    %156 = tpu.dynamic_rotate %155 by %c128_i32_67 dim 1 : vector<16x256xf32>, i32 -> vector<16x256xf32>
    %157 = vector.extract_strided_slice %154 {offsets = [0, 0], sizes = [16, 256], strides = [1, 1]} : vector<32x256xf32> to vector<16x256xf32>
    %158 = vector.broadcast %19 : vector<1x256xf32> to vector<16x256xf32>
    %159 = arith.mulf %158, %156 : vector<16x256xf32>
    %160 = arith.addf %157, %159 : vector<16x256xf32>
    %161 = arith.mulf %160, %3 : vector<16x256xf32>
    %c128_i32_68 = arith.constant 128 : i32
    %162 = tpu.dynamic_rotate %160 by %c128_i32_68 dim 1 : vector<16x256xf32>, i32 -> vector<16x256xf32>
    %163 = arith.mulf %162, %5 : vector<16x256xf32>
    %164 = arith.addf %161, %163 : vector<16x256xf32>
    %165 = arith.truncf %164 : vector<16x256xf32> to vector<16x256xbf16>
    %cst_69 = arith.constant dense<0.000000e+00> : vector<16x128xf32>
    %166 = tpu.matmul %165, %13, %cst_69 {dimension_numbers = #tpu.dot_dimension_numbers<[1], [0], [0], [1], [0, 0, 1, 1], [], []>} : vector<16x256xbf16>, vector<256x128xbf16>, vector<16x128xf32> -> vector<16x128xf32>
    %167 = arith.addf %131, %166 : vector<16x128xf32>
    %c0_70 = arith.constant 0 : index
    %c0_71 = arith.constant 0 : index
    %c0_72 = arith.constant 0 : index
    %168 = vector.load %arg16[%c0_70, %c0_71, %c0_72] : memref<3x128x256xbf16, #tpu.memory_space<vmem>>, vector<3x128x256xbf16>
    %c1_i32_73 = arith.constant 1 : i32
    %169 = tpu.dynamic_rotate %167 by %c1_i32_73 dim 0 : vector<16x128xf32>, i32 -> vector<16x128xf32>
    %170 = vector.broadcast %24 : vector<16x1xf32> to vector<16x128xf32>
    %171 = arith.mulf %169, %170 : vector<16x128xf32>
    %c15_i32_74 = arith.constant 15 : i32
    %172 = tpu.dynamic_rotate %167 by %c15_i32_74 dim 0 : vector<16x128xf32>, i32 -> vector<16x128xf32>
    %173 = vector.broadcast %28 : vector<16x1xf32> to vector<16x128xf32>
    %174 = arith.mulf %172, %173 : vector<16x128xf32>
    %175 = vector.extract_strided_slice %168 {offsets = [0, 0, 0], sizes = [1, 128, 256], strides = [1, 1, 1]} : vector<3x128x256xbf16> to vector<1x128x256xbf16>
    %176 = vector.shape_cast %175 : vector<1x128x256xbf16> to vector<128x256xbf16>
    %177 = arith.truncf %171 : vector<16x128xf32> to vector<16x128xbf16>
    %cst_75 = arith.constant dense<0.000000e+00> : vector<16x256xf32>
    %178 = tpu.matmul %177, %176, %cst_75 {dimension_numbers = #tpu.dot_dimension_numbers<[1], [0], [0], [1], [0, 0, 1, 1], [], []>} : vector<16x128xbf16>, vector<128x256xbf16>, vector<16x256xf32> -> vector<16x256xf32>
    %179 = vector.extract_strided_slice %168 {offsets = [1, 0, 0], sizes = [1, 128, 256], strides = [1, 1, 1]} : vector<3x128x256xbf16> to vector<1x128x256xbf16>
    %180 = vector.shape_cast %179 : vector<1x128x256xbf16> to vector<128x256xbf16>
    %181 = arith.truncf %167 : vector<16x128xf32> to vector<16x128xbf16>
    %cst_76 = arith.constant dense<0.000000e+00> : vector<16x256xf32>
    %182 = tpu.matmul %181, %180, %cst_76 {dimension_numbers = #tpu.dot_dimension_numbers<[1], [0], [0], [1], [0, 0, 1, 1], [], []>} : vector<16x128xbf16>, vector<128x256xbf16>, vector<16x256xf32> -> vector<16x256xf32>
    %183 = arith.addf %178, %182 : vector<16x256xf32>
    %184 = vector.extract_strided_slice %168 {offsets = [2, 0, 0], sizes = [1, 128, 256], strides = [1, 1, 1]} : vector<3x128x256xbf16> to vector<1x128x256xbf16>
    %185 = vector.shape_cast %184 : vector<1x128x256xbf16> to vector<128x256xbf16>
    %186 = arith.truncf %174 : vector<16x128xf32> to vector<16x128xbf16>
    %cst_77 = arith.constant dense<0.000000e+00> : vector<16x256xf32>
    %187 = tpu.matmul %186, %185, %cst_77 {dimension_numbers = #tpu.dot_dimension_numbers<[1], [0], [0], [1], [0, 0, 1, 1], [], []>} : vector<16x128xbf16>, vector<128x256xbf16>, vector<16x256xf32> -> vector<16x256xf32>
    %188 = arith.addf %183, %187 : vector<16x256xf32>
    %c0_78 = arith.constant 0 : index
    %c0_79 = arith.constant 0 : index
    %189 = vector.load %arg17[%c0_78, %c0_79] : memref<1x256xf32, #tpu.memory_space<vmem>>, vector<1x256xf32>
    %190 = vector.broadcast %189 : vector<1x256xf32> to vector<16x256xf32>
    %191 = arith.addf %188, %190 : vector<16x256xf32>
    %cst_80 = arith.constant 0.000000e+00 : f32
    %192 = vector.broadcast %cst_80 : f32 to vector<16x256xf32>
    %193 = arith.maximumf %191, %192 : vector<16x256xf32>
    %c0_81 = arith.constant 0 : index
    %c0_82 = arith.constant 0 : index
    %c0_83 = arith.constant 0 : index
    %194 = vector.load %arg18[%c0_81, %c0_82, %c0_83] : memref<3x256x128xbf16, #tpu.memory_space<vmem>>, vector<3x256x128xbf16>
    %c1_i32_84 = arith.constant 1 : i32
    %195 = tpu.dynamic_rotate %193 by %c1_i32_84 dim 0 : vector<16x256xf32>, i32 -> vector<16x256xf32>
    %196 = vector.broadcast %24 : vector<16x1xf32> to vector<16x256xf32>
    %197 = arith.mulf %195, %196 : vector<16x256xf32>
    %c15_i32_85 = arith.constant 15 : i32
    %198 = tpu.dynamic_rotate %193 by %c15_i32_85 dim 0 : vector<16x256xf32>, i32 -> vector<16x256xf32>
    %199 = vector.broadcast %28 : vector<16x1xf32> to vector<16x256xf32>
    %200 = arith.mulf %198, %199 : vector<16x256xf32>
    %201 = vector.extract_strided_slice %194 {offsets = [0, 0, 0], sizes = [1, 256, 128], strides = [1, 1, 1]} : vector<3x256x128xbf16> to vector<1x256x128xbf16>
    %202 = vector.shape_cast %201 : vector<1x256x128xbf16> to vector<256x128xbf16>
    %203 = arith.truncf %197 : vector<16x256xf32> to vector<16x256xbf16>
    %cst_86 = arith.constant dense<0.000000e+00> : vector<16x128xf32>
    %204 = tpu.matmul %203, %202, %cst_86 {dimension_numbers = #tpu.dot_dimension_numbers<[1], [0], [0], [1], [0, 0, 1, 1], [], []>} : vector<16x256xbf16>, vector<256x128xbf16>, vector<16x128xf32> -> vector<16x128xf32>
    %205 = vector.extract_strided_slice %194 {offsets = [1, 0, 0], sizes = [1, 256, 128], strides = [1, 1, 1]} : vector<3x256x128xbf16> to vector<1x256x128xbf16>
    %206 = vector.shape_cast %205 : vector<1x256x128xbf16> to vector<256x128xbf16>
    %207 = arith.truncf %193 : vector<16x256xf32> to vector<16x256xbf16>
    %cst_87 = arith.constant dense<0.000000e+00> : vector<16x128xf32>
    %208 = tpu.matmul %207, %206, %cst_87 {dimension_numbers = #tpu.dot_dimension_numbers<[1], [0], [0], [1], [0, 0, 1, 1], [], []>} : vector<16x256xbf16>, vector<256x128xbf16>, vector<16x128xf32> -> vector<16x128xf32>
    %209 = arith.addf %204, %208 : vector<16x128xf32>
    %210 = vector.extract_strided_slice %194 {offsets = [2, 0, 0], sizes = [1, 256, 128], strides = [1, 1, 1]} : vector<3x256x128xbf16> to vector<1x256x128xbf16>
    %211 = vector.shape_cast %210 : vector<1x256x128xbf16> to vector<256x128xbf16>
    %212 = arith.truncf %200 : vector<16x256xf32> to vector<16x256xbf16>
    %cst_88 = arith.constant dense<0.000000e+00> : vector<16x128xf32>
    %213 = tpu.matmul %212, %211, %cst_88 {dimension_numbers = #tpu.dot_dimension_numbers<[1], [0], [0], [1], [0, 0, 1, 1], [], []>} : vector<16x256xbf16>, vector<256x128xbf16>, vector<16x128xf32> -> vector<16x128xf32>
    %214 = arith.addf %209, %213 : vector<16x128xf32>
    %c0_89 = arith.constant 0 : index
    %c0_90 = arith.constant 0 : index
    %215 = vector.load %arg19[%c0_89, %c0_90] : memref<1x128xf32, #tpu.memory_space<vmem>>, vector<1x128xf32>
    %216 = vector.broadcast %215 : vector<1x128xf32> to vector<16x128xf32>
    %217 = arith.addf %214, %216 : vector<16x128xf32>
    %c0_91 = arith.constant 0 : index
    %c0_92 = arith.constant 0 : index
    %c0_93 = arith.constant 0 : index
    %218 = vector.load %arg20[%c0_91, %c0_92, %c0_93] : memref<1x16x128xf32, #tpu.memory_space<vmem>>, vector<1x16x128xf32>
    %219 = vector.shape_cast %218 : vector<1x16x128xf32> to vector<16x128xf32>
    %220 = vector.shape_cast %217 : vector<16x128xf32> to vector<1x16x128xf32>
    tpu.vector_store %arg20[%c0_91, %c0_92, %c0_93], %220 {strides = array<i32>} : memref<1x16x128xf32, #tpu.memory_space<vmem>>, vector<1x16x128xf32>,
    return
  }
  func.func @transform_0(%arg0: i32) -> (i32, i32, i32) {
    %c0_i32 = arith.constant 0 : i32
    %c0_i32_0 = arith.constant 0 : i32
    %c0_i32_1 = arith.constant 0 : i32
    return %arg0, %c0_i32, %c0_i32_0 : i32, i32, i32
  }
  func.func @transform_1(%arg0: i32) -> (i32, i32, i32) {
    %c0_i32 = arith.constant 0 : i32
    %c0_i32_0 = arith.constant 0 : i32
    %c0_i32_1 = arith.constant 0 : i32
    return %arg0, %c0_i32, %c0_i32_0 : i32, i32, i32
  }
  func.func @transform_2(%arg0: i32) -> (i32, i32, i32) {
    %c0_i32 = arith.constant 0 : i32
    %c0_i32_0 = arith.constant 0 : i32
    %c0_i32_1 = arith.constant 0 : i32
    return %arg0, %c0_i32, %c0_i32_0 : i32, i32, i32
  }
  func.func @transform_3(%arg0: i32) -> (i32, i32) {
    %c0_i32 = arith.constant 0 : i32
    %c0_i32_0 = arith.constant 0 : i32
    %c0_i32_1 = arith.constant 0 : i32
    return %c0_i32, %c0_i32_0 : i32, i32
  }
  func.func @transform_4(%arg0: i32) -> (i32, i32) {
    %c0_i32 = arith.constant 0 : i32
    %c0_i32_0 = arith.constant 0 : i32
    %c0_i32_1 = arith.constant 0 : i32
    return %c0_i32, %c0_i32_0 : i32, i32
  }
  func.func @transform_5(%arg0: i32) -> (i32, i32) {
    %c0_i32 = arith.constant 0 : i32
    %c0_i32_0 = arith.constant 0 : i32
    %c0_i32_1 = arith.constant 0 : i32
    return %c0_i32, %c0_i32_0 : i32, i32
  }
  func.func @transform_6(%arg0: i32) -> (i32, i32) {
    %c0_i32 = arith.constant 0 : i32
    %c0_i32_0 = arith.constant 0 : i32
    %c0_i32_1 = arith.constant 0 : i32
    return %c0_i32, %c0_i32_0 : i32, i32
  }
  func.func @transform_7(%arg0: i32) -> (i32, i32) {
    %c0_i32 = arith.constant 0 : i32
    %c0_i32_0 = arith.constant 0 : i32
    %c0_i32_1 = arith.constant 0 : i32
    return %c0_i32, %c0_i32_0 : i32, i32
  }
  func.func @transform_8(%arg0: i32) -> (i32, i32) {
    %c0_i32 = arith.constant 0 : i32
    %c0_i32_0 = arith.constant 0 : i32
    %c0_i32_1 = arith.constant 0 : i32
    return %c0_i32, %c0_i32_0 : i32, i32
  }
  func.func @transform_9(%arg0: i32) -> (i32, i32) {
    %c0_i32 = arith.constant 0 : i32
    %c0_i32_0 = arith.constant 0 : i32
    %c0_i32_1 = arith.constant 0 : i32
    return %c0_i32, %c0_i32_0 : i32, i32
  }
  func.func @transform_10(%arg0: i32) -> (i32, i32) {
    %c0_i32 = arith.constant 0 : i32
    %c0_i32_0 = arith.constant 0 : i32
    %c0_i32_1 = arith.constant 0 : i32
    return %c0_i32, %c0_i32_0 : i32, i32
  }
  func.func @transform_11(%arg0: i32) -> (i32, i32, i32) {
    %c0_i32 = arith.constant 0 : i32
    %c0_i32_0 = arith.constant 0 : i32
    %c0_i32_1 = arith.constant 0 : i32
    %c0_i32_2 = arith.constant 0 : i32
    return %c0_i32, %c0_i32_0, %c0_i32_1 : i32, i32, i32
  }
  func.func @transform_12(%arg0: i32) -> (i32, i32) {
    %c0_i32 = arith.constant 0 : i32
    %c0_i32_0 = arith.constant 0 : i32
    %c0_i32_1 = arith.constant 0 : i32
    return %c0_i32, %c0_i32_0 : i32, i32
  }
  func.func @transform_13(%arg0: i32) -> (i32, i32, i32) {
    %c0_i32 = arith.constant 0 : i32
    %c0_i32_0 = arith.constant 0 : i32
    %c0_i32_1 = arith.constant 0 : i32
    %c0_i32_2 = arith.constant 0 : i32
    return %c0_i32, %c0_i32_0, %c0_i32_1 : i32, i32, i32
  }
  func.func @transform_14(%arg0: i32) -> (i32, i32) {
    %c0_i32 = arith.constant 0 : i32
    %c0_i32_0 = arith.constant 0 : i32
    %c0_i32_1 = arith.constant 0 : i32
    return %c0_i32, %c0_i32_0 : i32, i32
  }
  func.func @transform_15(%arg0: i32) -> (i32, i32, i32) {
    %c0_i32 = arith.constant 0 : i32
    %c0_i32_0 = arith.constant 0 : i32
    %c0_i32_1 = arith.constant 0 : i32
    %c0_i32_2 = arith.constant 0 : i32
    return %c0_i32, %c0_i32_0, %c0_i32_1 : i32, i32, i32
  }
  func.func @transform_16(%arg0: i32) -> (i32, i32) {
    %c0_i32 = arith.constant 0 : i32
    %c0_i32_0 = arith.constant 0 : i32
    %c0_i32_1 = arith.constant 0 : i32
    return %c0_i32, %c0_i32_0 : i32, i32
  }
  func.func @transform_17(%arg0: i32) -> (i32, i32, i32) {
    %c0_i32 = arith.constant 0 : i32
    %c0_i32_0 = arith.constant 0 : i32
    %c0_i32_1 = arith.constant 0 : i32
    %c0_i32_2 = arith.constant 0 : i32
    return %c0_i32, %c0_i32_0, %c0_i32_1 : i32, i32, i32
  }
  func.func @transform_18(%arg0: i32) -> (i32, i32) {
    %c0_i32 = arith.constant 0 : i32
    %c0_i32_0 = arith.constant 0 : i32
    %c0_i32_1 = arith.constant 0 : i32
    return %c0_i32, %c0_i32_0 : i32, i32
  }
  func.func @transform_19(%arg0: i32) -> (i32, i32, i32) {
    %c0_i32 = arith.constant 0 : i32
    %c0_i32_0 = arith.constant 0 : i32
    %c0_i32_1 = arith.constant 0 : i32
    return %arg0, %c0_i32, %c0_i32_0 : i32, i32, i32
  }
}

</mosaic_0001>

<llo_original>
// kernel: tile.7
$region0: #{tile.7}
  %s0 = inlined_call_operand.vmem [shape: f32[16,16,16], index: 0, kind: input, shape index: {}]
  %s1 = inlined_call_operand.vmem [shape: f32[16,256], index: 1, kind: output, shape index: {}]
  %v2 = vld [vmem:[%s0] ss:$8 sm:$0xf]
  %v3 = vld [vmem:[%s0] ss:$8 sm:$0xf0]
  %vm4 = vcmask 1047556
  %v5 = vsel %vm4, %v3, %v2
  %vm6 = vcmask 130048
  %7 = vst.msk [vmem:[%s1] ss:$8 sm:$0x3] %vm6, %v5
  %s8 = scalar_lea.vmem %s1, 4294967281
  %9 = vst.msk [vmem:[%s8] ss:$8 sm:$0xc] %vm6, %v5
  %s10 = scalar_lea.vmem %s1, 4294967266
  %11 = vst.msk [vmem:[%s10] ss:$8 sm:$0x30] %vm6, %v5
  %s12 = scalar_lea.vmem %s1, 4294967251
  %13 = vst.msk [vmem:[%s12] ss:$8 sm:$0xc0] %vm6, %v5
  %s14 = scalar_lea.vmem %s0, 64
  %v15 = vld [vmem:[%s14] ss:$8 sm:$0xf]
  %s16 = scalar_lea.vmem %s0, 64
  %v17 = vld [vmem:[%s16] ss:$8 sm:$0xf0]
  %vm18 = vcmask 1047556
  %v19 = vsel %vm18, %v17, %v15
  %vm20 = vcmask 130048
  %s21 = scalar_lea.vmem %s1, 4
  %22 = vst.msk [vmem:[%s21] ss:$8 sm:$0x3] %vm20, %v19
  %s23 = scalar_lea.vmem %s1, 4294967285
  %24 = vst.msk [vmem:[%s23] ss:$8 sm:$0xc] %vm20, %v19
  %s25 = scalar_lea.vmem %s1, 4294967270
  %26 = vst.msk [vmem:[%s25] ss:$8 sm:$0x30] %vm20, %v19
  %s27 = scalar_lea.vmem %s1, 4294967255
  %28 = vst.msk [vmem:[%s27] ss:$8 sm:$0xc0] %vm20, %v19
  %s29 = scalar_lea.vmem %s0, 128
  %v30 = vld [vmem:[%s29] ss:$8 sm:$0xf]
  %s31 = scalar_lea.vmem %s0, 128
  %v32 = vld [vmem:[%s31] ss:$8 sm:$0xf0]
  %vm33 = vcmask 1047556
  %v34 = vsel %vm33, %v32, %v30
  %vm35 = vcmask 130048
  %s36 = scalar_lea.vmem %s1, 16
  %37 = vst.msk [vmem:[%s36] ss:$8 sm:$0x3] %vm35, %v34
  %s38 = scalar_lea.vmem %s1, 1
  %39 = vst.msk [vmem:[%s38] ss:$8 sm:$0xc] %vm35, %v34
  %s40 = scalar_lea.vmem %s1, 4294967282
  %41 = vst.msk [vmem:[%s40] ss:$8 sm:$0x30] %vm35, %v34
  %s42 = scalar_lea.vmem %s1, 4294967267
  %43 = vst.msk [vmem:[%s42] ss:$8 sm:$0xc0] %vm35, %v34
  %s44 = scalar_lea.vmem %s0, 192
  %v45 = vld [vmem:[%s44] ss:$8 sm:$0xf]
  %s46 = scalar_lea.vmem %s0, 192
  %v47 = vld [vmem:[%s46] ss:$8 sm:$0xf0]
  %vm48 = vcmask 1047556
  %v49 = vsel %vm48, %v47, %v45
  %vm50 = vcmask 130048
  %s51 = scalar_lea.vmem %s1, 20
  %52 = vst.msk [vmem:[%s51] ss:$8 sm:$0x3] %vm50, %v49
  %s53 = scalar_lea.vmem %s1, 5
  %54 = vst.msk [vmem:[%s53] ss:$8 sm:$0xc] %vm50, %v49
  %s55 = scalar_lea.vmem %s1, 4294967286
  %56 = vst.msk [vmem:[%s55] ss:$8 sm:$0x30] %vm50, %v49
  %s57 = scalar_lea.vmem %s1, 4294967271
  %58 = vst.msk [vmem:[%s57] ss:$8 sm:$0xc0] %vm50, %v49
  %s59 = scalar_lea.vmem %s0, 7
  %s60 = smov 3
  %v61 = vld [vmem:[%s59] ss:$16 sm:%s60]
  %s62 = scalar_lea.vmem %s0, 7
  %s63 = smov 12
  %v64 = vld [vmem:[%s62] ss:$16 sm:%s63]
  %vm65 = vcmask 1043458
  %v66 = vsel %vm65, %v64, %v61
  %s67 = scalar_lea.vmem %s0, 7
  %s68 = smov 48
  %v69 = vld [vmem:[%s67] ss:$16 sm:%s68]
  %vm70 = vcmask 1045508
  %v71 = vsel %vm70, %v69, %v66
  %s72 = scalar_lea.vmem %s0, 7
  %s73 = smov 192
  %v74 = vld [vmem:[%s72] ss:$16 sm:%s73]
  %vm75 = vcmask 1047558
  %v76 = vsel %vm75, %v74, %v71
  %77 = vrot.lane.b32.xlu0 %v76, 112
  %v78 = vpop.permute.xlu0 %77
  %vm79 = vcmask 1048448
  %80 = vst.msk [vmem:[%s1] sm:$0xff] %vm79, %v78
  %s81 = scalar_lea.vmem %s0, 15
  %s82 = smov 3
  %v83 = vld [vmem:[%s81] ss:$16 sm:%s82]
  %s84 = scalar_lea.vmem %s0, 15
  %s85 = smov 12
  %v86 = vld [vmem:[%s84] ss:$16 sm:%s85]
  %vm87 = vcmask 1043458
  %v88 = vsel %vm87, %v86, %v83
  %s89 = scalar_lea.vmem %s0, 15
  %s90 = smov 48
  %v91 = vld [vmem:[%s89] ss:$16 sm:%s90]
  %vm92 = vcmask 1045508
  %v93 = vsel %vm92, %v91, %v88
  %s94 = scalar_lea.vmem %s0, 15
  %s95 = smov 192
  %v96 = vld [vmem:[%s94] ss:$16 sm:%s95]
  %vm97 = vcmask 1047558
  %v98 = vsel %vm97, %v96, %v93
  %99 = vrot.lane.b32.xlu0 %v98, 112
  %v100 = vpop.permute.xlu0 %99
  %vm101 = vcmask 1048448
  %s102 = scalar_lea.vmem %s1, 8
  %103 = vst.msk [vmem:[%s102] sm:$0xff] %vm101, %v100
  %s104 = scalar_lea.vmem %s0, 135
  %s105 = smov 3
  %v106 = vld [vmem:[%s104] ss:$16 sm:%s105]
  %s107 = scalar_lea.vmem %s0, 135
  %s108 = smov 12
  %v109 = vld [vmem:[%s107] ss:$16 sm:%s108]
  %vm110 = vcmask 1043458
  %v111 = vsel %vm110, %v109, %v106
  %s112 = scalar_lea.vmem %s0, 135
  %s113 = smov 48
  %v114 = vld [vmem:[%s112] ss:$16 sm:%s113]
  %vm115 = vcmask 1045508
  %v116 = vsel %vm115, %v114, %v111
  %s117 = scalar_lea.vmem %s0, 135
  %s118 = smov 192
  %v119 = vld [vmem:[%s117] ss:$16 sm:%s118]
  %vm120 = vcmask 1047558
  %v121 = vsel %vm120, %v119, %v116
  %122 = vrot.lane.b32.xlu0 %v121, 112
  %v123 = vpop.permute.xlu0 %122
  %vm124 = vcmask 1048448
  %s125 = scalar_lea.vmem %s1, 16
  %126 = vst.msk [vmem:[%s125] sm:$0xff] %vm124, %v123
  %s127 = scalar_lea.vmem %s0, 143
  %s128 = smov 3
  %v129 = vld [vmem:[%s127] ss:$16 sm:%s128]
  %s130 = scalar_lea.vmem %s0, 143
  %s131 = smov 12
  %v132 = vld [vmem:[%s130] ss:$16 sm:%s131]
  %vm133 = vcmask 1043458
  %v134 = vsel %vm133, %v132, %v129
  %s135 = scalar_lea.vmem %s0, 143
  %s136 = smov 48
  %v137 = vld [vmem:[%s135] ss:$16 sm:%s136]
  %vm138 = vcmask 1045508
  %v139 = vsel %vm138, %v137, %v134
  %s140 = scalar_lea.vmem %s0, 143
  %s141 = smov 192
  %v142 = vld [vmem:[%s140] ss:$16 sm:%s141]
  %vm143 = vcmask 1047558
  %v144 = vsel %vm143, %v142, %v139
  %145 = vrot.lane.b32.xlu0 %v144, 112
  %v146 = vpop.permute.xlu0 %145
  %vm147 = vcmask 1048448
  %s148 = scalar_lea.vmem %s1, 24
  %149 = vst.msk [vmem:[%s148] sm:$0xff] %vm147, %v146
  %s150 = scalar_lea.vmem %s0, 6
  %s151 = smov 3
  %v152 = vld [vmem:[%s150] ss:$16 sm:%s151]
  %s153 = scalar_lea.vmem %s0, 6
  %s154 = smov 12
  %v155 = vld [vmem:[%s153] ss:$16 sm:%s154]
  %vm156 = vcmask 1043458
  %v157 = vsel %vm156, %v155, %v152
  %s158 = scalar_lea.vmem %s0, 6
  %s159 = smov 48
  %v160 = vld [vmem:[%s158] ss:$16 sm:%s159]
  %vm161 = vcmask 1045508
  %v162 = vsel %vm161, %v160, %v157
  %s163 = scalar_lea.vmem %s0, 6
  %s164 = smov 192
  %v165 = vld [vmem:[%s163] ss:$16 sm:%s164]
  %vm166 = vcmask 1047558
  %v167 = vsel %vm166, %v165, %v162
  %168 = vrot.lane.b32.xlu0 %v167, 96
  %v169 = vpop.permute.xlu0 %168
  %vm170 = vcmask 917248
  %171 = vst.msk [vmem:[%s1] sm:$0xff] %vm170, %v169
  %s172 = scalar_lea.vmem %s0, 14
  %s173 = smov 3
  %v174 = vld [vmem:[%s172] ss:$16 sm:%s173]
  %s175 = scalar_lea.vmem %s0, 14
  %s176 = smov 12
  %v177 = vld [vmem:[%s175] ss:$16 sm:%s176]
  %vm178 = vcmask 1043458
  %v179 = vsel %vm178, %v177, %v174
  %s180 = scalar_lea.vmem %s0, 14
  %s181 = smov 48
  %v182 = vld [vmem:[%s180] ss:$16 sm:%s181]
  %vm183 = vcmask 1045508
  %v184 = vsel %vm183, %v182, %v179
  %s185 = scalar_lea.vmem %s0, 14
  %s186 = smov 192
  %v187 = vld [vmem:[%s185] ss:$16 sm:%s186]
  %vm188 = vcmask 1047558
  %v189 = vsel %vm188, %v187, %v184
  %190 = vrot.lane.b32.xlu0 %v189, 96
  %v191 = vpop.permute.xlu0 %190
  %vm192 = vcmask 917248
  %s193 = scalar_lea.vmem %s1, 8
  %194 = vst.msk [vmem:[%s193] sm:$0xff] %vm192, %v191
  %s195 = scalar_lea.vmem %s0, 134
  %s196 = smov 3
  %v197 = vld [vmem:[%s195] ss:$16 sm:%s196]
  %s198 = scalar_lea.vmem %s0, 134
  %s199 = smov 12
  %v200 = vld [vmem:[%s198] ss:$16 sm:%s199]
  %vm201 = vcmask 1043458
  %v202 = vsel %vm201, %v200, %v197
  %s203 = scalar_lea.vmem %s0, 134
  %s204 = smov 48
  %v205 = vld [vmem:[%s203] ss:$16 sm:%s204]
  %vm206 = vcmask 1045508
  %v207 = vsel %vm206, %v205, %v202
  %s208 = scalar_lea.vmem %s0, 134
  %s209 = smov 192
  %v210 = vld [vmem:[%s208] ss:$16 sm:%s209]
  %vm211 = vcmask 1047558
  %v212 = vsel %vm211, %v210, %v207
  %213 = vrot.lane.b32.xlu0 %v212, 96
  %v214 = vpop.permute.xlu0 %213
  %vm215 = vcmask 917248
  %s216 = scalar_lea.vmem %s1, 16
  %217 = vst.msk [vmem:[%s216] sm:$0xff] %vm215, %v214
  %s218 = scalar_lea.vmem %s0, 142
  %s219 = smov 3
  %v220 = vld [vmem:[%s218] ss:$16 sm:%s219]
  %s221 = scalar_lea.vmem %s0, 142
  %s222 = smov 12
  %v223 = vld [vmem:[%s221] ss:$16 sm:%s222]
  %vm224 = vcmask 1043458
  %v225 = vsel %vm224, %v223, %v220
  %s226 = scalar_lea.vmem %s0, 142
  %s227 = smov 48
  %v228 = vld [vmem:[%s226] ss:$16 sm:%s227]
  %vm229 = vcmask 1045508
  %v230 = vsel %vm229, %v228, %v225
  %s231 = scalar_lea.vmem %s0, 142
  %s232 = smov 192
  %v233 = vld [vmem:[%s231] ss:$16 sm:%s232]
  %vm234 = vcmask 1047558
  %v235 = vsel %vm234, %v233, %v230
  %236 = vrot.lane.b32.xlu0 %v235, 96
  %v237 = vpop.permute.xlu0 %236
  %vm238 = vcmask 917248
  %s239 = scalar_lea.vmem %s1, 24
  %240 = vst.msk [vmem:[%s239] sm:$0xff] %vm238, %v237
  %s241 = scalar_lea.vmem %s0, 5
  %s242 = smov 3
  %v243 = vld [vmem:[%s241] ss:$16 sm:%s242]
  %s244 = scalar_lea.vmem %s0, 5
  %s245 = smov 12
  %v246 = vld [vmem:[%s244] ss:$16 sm:%s245]
  %vm247 = vcmask 1043458
  %v248 = vsel %vm247, %v246, %v243
  %s249 = scalar_lea.vmem %s0, 5
  %s250 = smov 48
  %v251 = vld [vmem:[%s249] ss:$16 sm:%s250]
  %vm252 = vcmask 1045508
  %v253 = vsel %vm252, %v251, %v248
  %s254 = scalar_lea.vmem %s0, 5
  %s255 = smov 192
  %v256 = vld [vmem:[%s254] ss:$16 sm:%s255]
  %vm257 = vcmask 1047558
  %v258 = vsel %vm257, %v256, %v253
  %259 = vrot.lane.b32.xlu0 %v258, 80
  %v260 = vpop.permute.xlu0 %259
  %vm261 = vcmask 786048
  %262 = vst.msk [vmem:[%s1] sm:$0xff] %vm261, %v260
  %s263 = scalar_lea.vmem %s0, 13
  %s264 = smov 3
  %v265 = vld [vmem:[%s263] ss:$16 sm:%s264]
  %s266 = scalar_lea.vmem %s0, 13
  %s267 = smov 12
  %v268 = vld [vmem:[%s266] ss:$16 sm:%s267]
  %vm269 = vcmask 1043458
  %v270 = vsel %vm269, %v268, %v265
  %s271 = scalar_lea.vmem %s0, 13
  %s272 = smov 48
  %v273 = vld [vmem:[%s271] ss:$16 sm:%s272]
  %vm274 = vcmask 1045508
  %v275 = vsel %vm274, %v273, %v270
  %s276 = scalar_lea.vmem %s0, 13
  %s277 = smov 192
  %v278 = vld [vmem:[%s276] ss:$16 sm:%s277]
  %vm279 = vcmask 1047558
  %v280 = vsel %vm279, %v278, %v275
  %281 = vrot.lane.b32.xlu0 %v280, 80
  %v282 = vpop.permute.xlu0 %281
  %vm283 = vcmask 786048
  %s284 = scalar_lea.vmem %s1, 8
  %285 = vst.msk [vmem:[%s284] sm:$0xff] %vm283, %v282
  %s286 = scalar_lea.vmem %s0, 133
  %s287 = smov 3
  %v288 = vld [vmem:[%s286] ss:$16 sm:%s287]
  %s289 = scalar_lea.vmem %s0, 133
  %s290 = smov 12
  %v291 = vld [vmem:[%s289] ss:$16 sm:%s290]
  %vm292 = vcmask 1043458
  %v293 = vsel %vm292, %v291, %v288
  %s294 = scalar_lea.vmem %s0, 133
  %s295 = smov 48
  %v296 = vld [vmem:[%s294] ss:$16 sm:%s295]
  %vm297 = vcmask 1045508
  %v298 = vsel %vm297, %v296, %v293
  %s299 = scalar_lea.vmem %s0, 133
  %s300 = smov 192
  %v301 = vld [vmem:[%s299] ss:$16 sm:%s300]
  %vm302 = vcmask 1047558
  %v303 = vsel %vm302, %v301, %v298
  %304 = vrot.lane.b32.xlu0 %v303, 80
  %v305 = vpop.permute.xlu0 %304
  %vm306 = vcmask 786048
  %s307 = scalar_lea.vmem %s1, 16
  %308 = vst.msk [vmem:[%s307] sm:$0xff] %vm306, %v305
  %s309 = scalar_lea.vmem %s0, 141
  %s310 = smov 3
  %v311 = vld [vmem:[%s309] ss:$16 sm:%s310]
  %s312 = scalar_lea.vmem %s0, 141
  %s313 = smov 12
  %v314 = vld [vmem:[%s312] ss:$16 sm:%s313]
  %vm315 = vcmask 1043458
  %v316 = vsel %vm315, %v314, %v311
  %s317 = scalar_lea.vmem %s0, 141
  %s318 = smov 48
  %v319 = vld [vmem:[%s317] ss:$16 sm:%s318]
  %vm320 = vcmask 1045508
  %v321 = vsel %vm320, %v319, %v316
  %s322 = scalar_lea.vmem %s0, 141
  %s323 = smov 192
  %v324 = vld [vmem:[%s322] ss:$16 sm:%s323]
  %vm325 = vcmask 1047558
  %v326 = vsel %vm325, %v324, %v321
  %327 = vrot.lane.b32.xlu0 %v326, 80
  %v328 = vpop.permute.xlu0 %327
  %vm329 = vcmask 786048
  %s330 = scalar_lea.vmem %s1, 24
  %331 = vst.msk [vmem:[%s330] sm:$0xff] %vm329, %v328
  %s332 = scalar_lea.vmem %s0, 4
  %s333 = smov 3
  %v334 = vld [vmem:[%s332] ss:$16 sm:%s333]
  %s335 = scalar_lea.vmem %s0, 4
  %s336 = smov 12
  %v337 = vld [vmem:[%s335] ss:$16 sm:%s336]
  %vm338 = vcmask 1043458
  %v339 = vsel %vm338, %v337, %v334
  %s340 = scalar_lea.vmem %s0, 4
  %s341 = smov 48
  %v342 = vld [vmem:[%s340] ss:$16 sm:%s341]
  %vm343 = vcmask 1045508
  %v344 = vsel %vm343, %v342, %v339
  %s345 = scalar_lea.vmem %s0, 4
  %s346 = smov 192
  %v347 = vld [vmem:[%s345] ss:$16 sm:%s346]
  %vm348 = vcmask 1047558
  %v349 = vsel %vm348, %v347, %v344
  %350 = vrot.lane.b32.xlu0 %v349, 64
  %v351 = vpop.permute.xlu0 %350
  %vm352 = vcmask 654848
  %353 = vst.msk [vmem:[%s1] sm:$0xff] %vm352, %v351
  %s354 = scalar_lea.vmem %s0, 12
  %s355 = smov 3
  %v356 = vld [vmem:[%s354] ss:$16 sm:%s355]
  %s357 = scalar_lea.vmem %s0, 12
  %s358 = smov 12
  %v359 = vld [vmem:[%s357] ss:$16 sm:%s358]
  %vm360 = vcmask 1043458
  %v361 = vsel %vm360, %v359, %v356
  %s362 = scalar_lea.vmem %s0, 12
  %s363 = smov 48
  %v364 = vld [vmem:[%s362] ss:$16 sm:%s363]
  %vm365 = vcmask 1045508
  %v366 = vsel %vm365, %v364, %v361
  %s367 = scalar_lea.vmem %s0, 12
  %s368 = smov 192
  %v369 = vld [vmem:[%s367] ss:$16 sm:%s368]
  %vm370 = vcmask 1047558
  %v371 = vsel %vm370, %v369, %v366
  %372 = vrot.lane.b32.xlu0 %v371, 64
  %v373 = vpop.permute.xlu0 %372
  %vm374 = vcmask 654848
  %s375 = scalar_lea.vmem %s1, 8
  %376 = vst.msk [vmem:[%s375] sm:$0xff] %vm374, %v373
  %s377 = scalar_lea.vmem %s0, 132
  %s378 = smov 3
  %v379 = vld [vmem:[%s377] ss:$16 sm:%s378]
  %s380 = scalar_lea.vmem %s0, 132
  %s381 = smov 12
  %v382 = vld [vmem:[%s380] ss:$16 sm:%s381]
  %vm383 = vcmask 1043458
  %v384 = vsel %vm383, %v382, %v379
  %s385 = scalar_lea.vmem %s0, 132
  %s386 = smov 48
  %v387 = vld [vmem:[%s385] ss:$16 sm:%s386]
  %vm388 = vcmask 1045508
  %v389 = vsel %vm388, %v387, %v384
  %s390 = scalar_lea.vmem %s0, 132
  %s391 = smov 192
  %v392 = vld [vmem:[%s390] ss:$16 sm:%s391]
  %vm393 = vcmask 1047558
  %v394 = vsel %vm393, %v392, %v389
  %395 = vrot.lane.b32.xlu0 %v394, 64
  %v396 = vpop.permute.xlu0 %395
  %vm397 = vcmask 654848
  %s398 = scalar_lea.vmem %s1, 16
  %399 = vst.msk [vmem:[%s398] sm:$0xff] %vm397, %v396
  %s400 = scalar_lea.vmem %s0, 140
  %s401 = smov 3
  %v402 = vld [vmem:[%s400] ss:$16 sm:%s401]
  %s403 = scalar_lea.vmem %s0, 140
  %s404 = smov 12
  %v405 = vld [vmem:[%s403] ss:$16 sm:%s404]
  %vm406 = vcmask 1043458
  %v407 = vsel %vm406, %v405, %v402
  %s408 = scalar_lea.vmem %s0, 140
  %s409 = smov 48
  %v410 = vld [vmem:[%s408] ss:$16 sm:%s409]
  %vm411 = vcmask 1045508
  %v412 = vsel %vm411, %v410, %v407
  %s413 = scalar_lea.vmem %s0, 140
  %s414 = smov 192
  %v415 = vld [vmem:[%s413] ss:$16 sm:%s414]
  %vm416 = vcmask 1047558
  %v417 = vsel %vm416, %v415, %v412
  %418 = vrot.lane.b32.xlu0 %v417, 64
  %v419 = vpop.permute.xlu0 %418
  %vm420 = vcmask 654848
  %s421 = scalar_lea.vmem %s1, 24
  %422 = vst.msk [vmem:[%s421] sm:$0xff] %vm420, %v419
  %s423 = scalar_lea.vmem %s0, 3
  %s424 = smov 3
  %v425 = vld [vmem:[%s423] ss:$16 sm:%s424]
  %s426 = scalar_lea.vmem %s0, 3
  %s427 = smov 12
  %v428 = vld [vmem:[%s426] ss:$16 sm:%s427]
  %vm429 = vcmask 1043458
  %v430 = vsel %vm429, %v428, %v425
  %s431 = scalar_lea.vmem %s0, 3
  %s432 = smov 48
  %v433 = vld [vmem:[%s431] ss:$16 sm:%s432]
  %vm434 = vcmask 1045508
  %v435 = vsel %vm434, %v433, %v430
  %s436 = scalar_lea.vmem %s0, 3
  %s437 = smov 192
  %v438 = vld [vmem:[%s436] ss:$16 sm:%s437]
  %vm439 = vcmask 1047558
  %v440 = vsel %vm439, %v438, %v435
  %441 = vrot.lane.b32.xlu0 %v440, 48
  %v442 = vpop.permute.xlu0 %441
  %vm443 = vcmask 523648
  %444 = vst.msk [vmem:[%s1] sm:$0xff] %vm443, %v442
  %s445 = scalar_lea.vmem %s0, 11
  %s446 = smov 3
  %v447 = vld [vmem:[%s445] ss:$16 sm:%s446]
  %s448 = scalar_lea.vmem %s0, 11
  %s449 = smov 12
  %v450 = vld [vmem:[%s448] ss:$16 sm:%s449]
  %vm451 = vcmask 1043458
  %v452 = vsel %vm451, %v450, %v447
  %s453 = scalar_lea.vmem %s0, 11
  %s454 = smov 48
  %v455 = vld [vmem:[%s453] ss:$16 sm:%s454]
  %vm456 = vcmask 1045508
  %v457 = vsel %vm456, %v455, %v452
  %s458 = scalar_lea.vmem %s0, 11
  %s459 = smov 192
  %v460 = vld [vmem:[%s458] ss:$16 sm:%s459]
  %vm461 = vcmask 1047558
  %v462 = vsel %vm461, %v460, %v457
  %463 = vrot.lane.b32.xlu0 %v462, 48
  %v464 = vpop.permute.xlu0 %463
  %vm465 = vcmask 523648
  %s466 = scalar_lea.vmem %s1, 8
  %467 = vst.msk [vmem:[%s466] sm:$0xff] %vm465, %v464
  %s468 = scalar_lea.vmem %s0, 131
  %s469 = smov 3
  %v470 = vld [vmem:[%s468] ss:$16 sm:%s469]
  %s471 = scalar_lea.vmem %s0, 131
  %s472 = smov 12
  %v473 = vld [vmem:[%s471] ss:$16 sm:%s472]
  %vm474 = vcmask 1043458
  %v475 = vsel %vm474, %v473, %v470
  %s476 = scalar_lea.vmem %s0, 131
  %s477 = smov 48
  %v478 = vld [vmem:[%s476] ss:$16 sm:%s477]
  %vm479 = vcmask 1045508
  %v480 = vsel %vm479, %v478, %v475
  %s481 = scalar_lea.vmem %s0, 131
  %s482 = smov 192
  %v483 = vld [vmem:[%s481] ss:$16 sm:%s482]
  %vm484 = vcmask 1047558
  %v485 = vsel %vm484, %v483, %v480
  %486 = vrot.lane.b32.xlu0 %v485, 48
  %v487 = vpop.permute.xlu0 %486
  %vm488 = vcmask 523648
  %s489 = scalar_lea.vmem %s1, 16
  %490 = vst.msk [vmem:[%s489] sm:$0xff] %vm488, %v487
  %s491 = scalar_lea.vmem %s0, 139
  %s492 = smov 3
  %v493 = vld [vmem:[%s491] ss:$16 sm:%s492]
  %s494 = scalar_lea.vmem %s0, 139
  %s495 = smov 12
  %v496 = vld [vmem:[%s494] ss:$16 sm:%s495]
  %vm497 = vcmask 1043458
  %v498 = vsel %vm497, %v496, %v493
  %s499 = scalar_lea.vmem %s0, 139
  %s500 = smov 48
  %v501 = vld [vmem:[%s499] ss:$16 sm:%s500]
  %vm502 = vcmask 1045508
  %v503 = vsel %vm502, %v501, %v498
  %s504 = scalar_lea.vmem %s0, 139
  %s505 = smov 192
  %v506 = vld [vmem:[%s504] ss:$16 sm:%s505]
  %vm507 = vcmask 1047558
  %v508 = vsel %vm507, %v506, %v503
  %509 = vrot.lane.b32.xlu0 %v508, 48
  %v510 = vpop.permute.xlu0 %509
  %vm511 = vcmask 523648
  %s512 = scalar_lea.vmem %s1, 24
  %513 = vst.msk [vmem:[%s512] sm:$0xff] %vm511, %v510
  %s514 = scalar_lea.vmem %s0, 2
  %s515 = smov 3
  %v516 = vld [vmem:[%s514] ss:$16 sm:%s515]
  %s517 = scalar_lea.vmem %s0, 2
  %s518 = smov 12
  %v519 = vld [vmem:[%s517] ss:$16 sm:%s518]
  %vm520 = vcmask 1043458
  %v521 = vsel %vm520, %v519, %v516
  %s522 = scalar_lea.vmem %s0, 2
  %s523 = smov 48
  %v524 = vld [vmem:[%s522] ss:$16 sm:%s523]
  %vm525 = vcmask 1045508
  %v526 = vsel %vm525, %v524, %v521
  %s527 = scalar_lea.vmem %s0, 2
  %s528 = smov 192
  %v529 = vld [vmem:[%s527] ss:$16 sm:%s528]
  %vm530 = vcmask 1047558
  %v531 = vsel %vm530, %v529, %v526
  %532 = vrot.lane.b32.xlu0 %v531, 32
  %v533 = vpop.permute.xlu0 %532
  %vm534 = vcmask 392448
  %535 = vst.msk [vmem:[%s1] sm:$0xff] %vm534, %v533
  %s536 = scalar_lea.vmem %s0, 10
  %s537 = smov 3
  %v538 = vld [vmem:[%s536] ss:$16 sm:%s537]
  %s539 = scalar_lea.vmem %s0, 10
  %s540 = smov 12
  %v541 = vld [vmem:[%s539] ss:$16 sm:%s540]
  %vm542 = vcmask 1043458
  %v543 = vsel %vm542, %v541, %v538
  %s544 = scalar_lea.vmem %s0, 10
  %s545 = smov 48
  %v546 = vld [vmem:[%s544] ss:$16 sm:%s545]
  %vm547 = vcmask 1045508
  %v548 = vsel %vm547, %v546, %v543
  %s549 = scalar_lea.vmem %s0, 10
  %s550 = smov 192
  %v551 = vld [vmem:[%s549] ss:$16 sm:%s550]
  %vm552 = vcmask 1047558
  %v553 = vsel %vm552, %v551, %v548
  %554 = vrot.lane.b32.xlu0 %v553, 32
  %v555 = vpop.permute.xlu0 %554
  %vm556 = vcmask 392448
  %s557 = scalar_lea.vmem %s1, 8
  %558 = vst.msk [vmem:[%s557] sm:$0xff] %vm556, %v555
  %s559 = scalar_lea.vmem %s0, 130
  %s560 = smov 3
  %v561 = vld [vmem:[%s559] ss:$16 sm:%s560]
  %s562 = scalar_lea.vmem %s0, 130
  %s563 = smov 12
  %v564 = vld [vmem:[%s562] ss:$16 sm:%s563]
  %vm565 = vcmask 1043458
  %v566 = vsel %vm565, %v564, %v561
  %s567 = scalar_lea.vmem %s0, 130
  %s568 = smov 48
  %v569 = vld [vmem:[%s567] ss:$16 sm:%s568]
  %vm570 = vcmask 1045508
  %v571 = vsel %vm570, %v569, %v566
  %s572 = scalar_lea.vmem %s0, 130
  %s573 = smov 192
  %v574 = vld [vmem:[%s572] ss:$16 sm:%s573]
  %vm575 = vcmask 1047558
  %v576 = vsel %vm575, %v574, %v571
  %577 = vrot.lane.b32.xlu0 %v576, 32
  %v578 = vpop.permute.xlu0 %577
  %vm579 = vcmask 392448
  %s580 = scalar_lea.vmem %s1, 16
  %581 = vst.msk [vmem:[%s580] sm:$0xff] %vm579, %v578
  %s582 = scalar_lea.vmem %s0, 138
  %s583 = smov 3
  %v584 = vld [vmem:[%s582] ss:$16 sm:%s583]
  %s585 = scalar_lea.vmem %s0, 138
  %s586 = smov 12
  %v587 = vld [vmem:[%s585] ss:$16 sm:%s586]
  %vm588 = vcmask 1043458
  %v589 = vsel %vm588, %v587, %v584
  %s590 = scalar_lea.vmem %s0, 138
  %s591 = smov 48
  %v592 = vld [vmem:[%s590] ss:$16 sm:%s591]
  %vm593 = vcmask 1045508
  %v594 = vsel %vm593, %v592, %v589
  %s595 = scalar_lea.vmem %s0, 138
  %s596 = smov 192
  %v597 = vld [vmem:[%s595] ss:$16 sm:%s596]
  %vm598 = vcmask 1047558
  %v599 = vsel %vm598, %v597, %v594
  %600 = vrot.lane.b32.xlu0 %v599, 32
  %v601 = vpop.permute.xlu0 %600
  %vm602 = vcmask 392448
  %s603 = scalar_lea.vmem %s1, 24
  %604 = vst.msk [vmem:[%s603] sm:$0xff] %vm602, %v601
  %s605 = scalar_lea.vmem %s0, 1
  %s606 = smov 3
  %v607 = vld [vmem:[%s605] ss:$16 sm:%s606]
  %s608 = scalar_lea.vmem %s0, 1
  %s609 = smov 12
  %v610 = vld [vmem:[%s608] ss:$16 sm:%s609]
  %vm611 = vcmask 1043458
  %v612 = vsel %vm611, %v610, %v607
  %s613 = scalar_lea.vmem %s0, 1
  %s614 = smov 48
  %v615 = vld [vmem:[%s613] ss:$16 sm:%s614]
  %vm616 = vcmask 1045508
  %v617 = vsel %vm616, %v615, %v612
  %s618 = scalar_lea.vmem %s0, 1
  %s619 = smov 192
  %v620 = vld [vmem:[%s618] ss:$16 sm:%s619]
  %vm621 = vcmask 1047558
  %v622 = vsel %vm621, %v620, %v617
  %623 = vrot.lane.b32.xlu0 %v622, 16
  %v624 = vpop.permute.xlu0 %623
  %vm625 = vcmask 261248
  %626 = vst.msk [vmem:[%s1] sm:$0xff] %vm625, %v624
  %s627 = scalar_lea.vmem %s0, 9
  %s628 = smov 3
  %v629 = vld [vmem:[%s627] ss:$16 sm:%s628]
  %s630 = scalar_lea.vmem %s0, 9
  %s631 = smov 12
  %v632 = vld [vmem:[%s630] ss:$16 sm:%s631]
  %vm633 = vcmask 1043458
  %v634 = vsel %vm633, %v632, %v629
  %s635 = scalar_lea.vmem %s0, 9
  %s636 = smov 48
  %v637 = vld [vmem:[%s635] ss:$16 sm:%s636]
  %vm638 = vcmask 1045508
  %v639 = vsel %vm638, %v637, %v634
  %s640 = scalar_lea.vmem %s0, 9
  %s641 = smov 192
  %v642 = vld [vmem:[%s640] ss:$16 sm:%s641]
  %vm643 = vcmask 1047558
  %v644 = vsel %vm643, %v642, %v639
  %645 = vrot.lane.b32.xlu0 %v644, 16
  %v646 = vpop.permute.xlu0 %645
  %vm647 = vcmask 261248
  %s648 = scalar_lea.vmem %s1, 8
  %649 = vst.msk [vmem:[%s648] sm:$0xff] %vm647, %v646
  %s650 = scalar_lea.vmem %s0, 129
  %s651 = smov 3
  %v652 = vld [vmem:[%s650] ss:$16 sm:%s651]
  %s653 = scalar_lea.vmem %s0, 129
  %s654 = smov 12
  %v655 = vld [vmem:[%s653] ss:$16 sm:%s654]
  %vm656 = vcmask 1043458
  %v657 = vsel %vm656, %v655, %v652
  %s658 = scalar_lea.vmem %s0, 129
  %s659 = smov 48
  %v660 = vld [vmem:[%s658] ss:$16 sm:%s659]
  %vm661 = vcmask 1045508
  %v662 = vsel %vm661, %v660, %v657
  %s663 = scalar_lea.vmem %s0, 129
  %s664 = smov 192
  %v665 = vld [vmem:[%s663] ss:$16 sm:%s664]
  %vm666 = vcmask 1047558
  %v667 = vsel %vm666, %v665, %v662
  %668 = vrot.lane.b32.xlu0 %v667, 16
  %v669 = vpop.permute.xlu0 %668
  %vm670 = vcmask 261248
  %s671 = scalar_lea.vmem %s1, 16
  %672 = vst.msk [vmem:[%s671] sm:$0xff] %vm670, %v669
  %s673 = scalar_lea.vmem %s0, 137
  %s674 = smov 3
  %v675 = vld [vmem:[%s673] ss:$16 sm:%s674]
  %s676 = scalar_lea.vmem %s0, 137
  %s677 = smov 12
  %v678 = vld [vmem:[%s676] ss:$16 sm:%s677]
  %vm679 = vcmask 1043458
  %v680 = vsel %vm679, %v678, %v675
  %s681 = scalar_lea.vmem %s0, 137
  %s682 = smov 48
  %v683 = vld [vmem:[%s681] ss:$16 sm:%s682]
  %vm684 = vcmask 1045508
  %v685 = vsel %vm684, %v683, %v680
  %s686 = scalar_lea.vmem %s0, 137
  %s687 = smov 192
  %v688 = vld [vmem:[%s686] ss:$16 sm:%s687]
  %vm689 = vcmask 1047558
  %v690 = vsel %vm689, %v688, %v685
  %691 = vrot.lane.b32.xlu0 %v690, 16
  %v692 = vpop.permute.xlu0 %691
  %vm693 = vcmask 261248
  %s694 = scalar_lea.vmem %s1, 24
  %695 = vst.msk [vmem:[%s694] sm:$0xff] %vm693, %v692

// kernel: cross_domain_forward.1
$region0: #{cross_domain_forward.1}
  #allocation0 [shape = 'u32[]', space=smem, size = 0x4, offset = 0x4, fixed_abs, tag = 'smem constant byte address 0x4 - core index']
  #allocation1 [shape = 'u32[72,128]{1,0:T(1,128)}', space=vmem, size = 0x9000, scoped, tag = 'internal scratch']
  %s0 = inlined_call_operand.vmem [shape: f32[1,16,256], index: 0, kind: input, shape index: {}]
  %s1 = inlined_call_operand.vmem [shape: f32[1,16,256], index: 1, kind: input, shape index: {}]
  %s2 = inlined_call_operand.vmem [shape: f32[1,16,256], index: 2, kind: input, shape index: {}]
  %s3 = inlined_call_operand.vmem [shape: f32[16,256], index: 3, kind: input, shape index: {}]
  %s4 = inlined_call_operand.vmem [shape: bf16[32,16], index: 4, kind: input, shape index: {}]
  %s5 = inlined_call_operand.vmem [shape: bf16[32,16], index: 5, kind: input, shape index: {}]
  %s6 = inlined_call_operand.vmem [shape: bf16[256,256], index: 6, kind: input, shape index: {}]
  %s7 = inlined_call_operand.vmem [shape: bf16[256,256], index: 7, kind: input, shape index: {}]
  %s8 = inlined_call_operand.vmem [shape: bf16[128,256], index: 8, kind: input, shape index: {}]
  %s9 = inlined_call_operand.vmem [shape: bf16[256,128], index: 9, kind: input, shape index: {}]
  %s10 = inlined_call_operand.vmem [shape: bf16[256,128], index: 10, kind: input, shape index: {}]
  %s11 = inlined_call_operand.vmem [shape: bf16[3,128,256], index: 11, kind: input, shape index: {}]
  %s12 = inlined_call_operand.vmem [shape: f32[1,256], index: 12, kind: input, shape index: {}]
  %s13 = inlined_call_operand.vmem [shape: bf16[3,256,128], index: 13, kind: input, shape index: {}]
  %s14 = inlined_call_operand.vmem [shape: f32[1,128], index: 14, kind: input, shape index: {}]
  %s15 = inlined_call_operand.vmem [shape: bf16[3,128,256], index: 15, kind: input, shape index: {}]
  %s16 = inlined_call_operand.vmem [shape: f32[1,256], index: 16, kind: input, shape index: {}]
  %s17 = inlined_call_operand.vmem [shape: bf16[3,256,128], index: 17, kind: input, shape index: {}]
  %s18 = inlined_call_operand.vmem [shape: f32[1,128], index: 18, kind: input, shape index: {}]
  %s19 = inlined_call_operand.vmem [shape: f32[1,16,128], index: 19, kind: output, shape index: {}]
  %s20 = sld [smem:[#allocation0]]
  $region86: #{cross_domain_forward.1} parent=0
    _
  %s22 = ssub.s32 1, %s20
  %s23 = scalar_select 0, %s22, %s20
  // Predicated region
  $region2: #{cross_domain_forward.1} parent=0 // pred_check
    _
  $region3: #{cross_domain_forward.1} parent=0 // pred_check_branch
    %25 = sbr.rel (0) target = $region5
  $region4: #{cross_domain_forward.1} parent=0 // pred_region
    _
  $region5: #{cross_domain_forward.1} parent=0 // pred_fallthru
    _
  // Predicated region
  $region6: #{cross_domain_forward.1} parent=0 // pred_check
    _
  $region7: #{cross_domain_forward.1} parent=0 // pred_check_branch
    %27 = sbr.rel (0) target = $region9
  $region8: #{cross_domain_forward.1} parent=0 // pred_region
    _
  $region9: #{cross_domain_forward.1} parent=0 // pred_fallthru
    _
  // Predicated region
  $region10: #{cross_domain_forward.1} parent=0 // pred_check
    _
  $region11: #{cross_domain_forward.1} parent=0 // pred_check_branch
    %29 = sbr.rel (0) target = $region13
  $region12: #{cross_domain_forward.1} parent=0 // pred_region
    _
  $region13: #{cross_domain_forward.1} parent=0 // pred_fallthru
    _
  // Predicated region
  $region14: #{cross_domain_forward.1} parent=0 // pred_check
    _
  $region15: #{cross_domain_forward.1} parent=0 // pred_check_branch
    %31 = sbr.rel (0) target = $region17
  $region16: #{cross_domain_forward.1} parent=0 // pred_region
    _
  $region17: #{cross_domain_forward.1} parent=0 // pred_fallthru
    _
  // Predicated region
  $region18: #{cross_domain_forward.1} parent=0 // pred_check
    _
  $region19: #{cross_domain_forward.1} parent=0 // pred_check_branch
    %33 = sbr.rel (0) target = $region21
  $region20: #{cross_domain_forward.1} parent=0 // pred_region
    _
  $region21: #{cross_domain_forward.1} parent=0 // pred_fallthru
    _
  // Predicated region
  $region22: #{cross_domain_forward.1} parent=0 // pred_check
    _
  $region23: #{cross_domain_forward.1} parent=0 // pred_check_branch
    %35 = sbr.rel (0) target = $region25
  $region24: #{cross_domain_forward.1} parent=0 // pred_region
    _
  $region25: #{cross_domain_forward.1} parent=0 // pred_fallthru
    _
  // Predicated region
  $region26: #{cross_domain_forward.1} parent=0 // pred_check
    _
  $region27: #{cross_domain_forward.1} parent=0 // pred_check_branch
    %37 = sbr.rel (0) target = $region29
  $region28: #{cross_domain_forward.1} parent=0 // pred_region
    _
  $region29: #{cross_domain_forward.1} parent=0 // pred_fallthru
    _
  // Predicated region
  $region30: #{cross_domain_forward.1} parent=0 // pred_check
    _
  $region31: #{cross_domain_forward.1} parent=0 // pred_check_branch
    %39 = sbr.rel (0) target = $region33
  $region32: #{cross_domain_forward.1} parent=0 // pred_region
    _
  $region33: #{cross_domain_forward.1} parent=0 // pred_fallthru
    _
  // Predicated region
  $region34: #{cross_domain_forward.1} parent=0 // pred_check
    _
  $region35: #{cross_domain_forward.1} parent=0 // pred_check_branch
    %41 = sbr.rel (0) target = $region37
  $region36: #{cross_domain_forward.1} parent=0 // pred_region
    _
  $region37: #{cross_domain_forward.1} parent=0 // pred_fallthru
    _
  // Predicated region
  $region38: #{cross_domain_forward.1} parent=0 // pred_check
    _
  $region39: #{cross_domain_forward.1} parent=0 // pred_check_branch
    %43 = sbr.rel (0) target = $region41
  $region40: #{cross_domain_forward.1} parent=0 // pred_region
    _
  $region41: #{cross_domain_forward.1} parent=0 // pred_fallthru
    _
  // Predicated region
  $region42: #{cross_domain_forward.1} parent=0 // pred_check
    _
  $region43: #{cross_domain_forward.1} parent=0 // pred_check_branch
    %45 = sbr.rel (0) target = $region45
  $region44: #{cross_domain_forward.1} parent=0 // pred_region
    _
  $region45: #{cross_domain_forward.1} parent=0 // pred_fallthru
    _
  // Predicated region
  $region46: #{cross_domain_forward.1} parent=0 // pred_check
    _
  $region47: #{cross_domain_forward.1} parent=0 // pred_check_branch
    %47 = sbr.rel (0) target = $region49
  $region48: #{cross_domain_forward.1} parent=0 // pred_region
    _
  $region49: #{cross_domain_forward.1} parent=0 // pred_fallthru
    _
  // Predicated region
  $region50: #{cross_domain_forward.1} parent=0 // pred_check
    _
  $region51: #{cross_domain_forward.1} parent=0 // pred_check_branch
    %49 = sbr.rel (0) target = $region53
  $region52: #{cross_domain_forward.1} parent=0 // pred_region
    _
  $region53: #{cross_domain_forward.1} parent=0 // pred_fallthru
    _
  // Predicated region
  $region54: #{cross_domain_forward.1} parent=0 // pred_check
    _
  $region55: #{cross_domain_forward.1} parent=0 // pred_check_branch
    %51 = sbr.rel (0) target = $region57
  $region56: #{cross_domain_forward.1} parent=0 // pred_region
    _
  $region57: #{cross_domain_forward.1} parent=0 // pred_fallthru
    _
  // Predicated region
  $region58: #{cross_domain_forward.1} parent=0 // pred_check
    _
  $region59: #{cross_domain_forward.1} parent=0 // pred_check_branch
    %53 = sbr.rel (0) target = $region61
  $region60: #{cross_domain_forward.1} parent=0 // pred_region
    _
  $region61: #{cross_domain_forward.1} parent=0 // pred_fallthru
    _
  // Predicated region
  $region62: #{cross_domain_forward.1} parent=0 // pred_check
    _
  $region63: #{cross_domain_forward.1} parent=0 // pred_check_branch
    %55 = sbr.rel (0) target = $region65
  $region64: #{cross_domain_forward.1} parent=0 // pred_region
    _
  $region65: #{cross_domain_forward.1} parent=0 // pred_fallthru
    _
  // Predicated region
  $region66: #{cross_domain_forward.1} parent=0 // pred_check
    _
  $region67: #{cross_domain_forward.1} parent=0 // pred_check_branch
    %57 = sbr.rel (0) target = $region69
  $region68: #{cross_domain_forward.1} parent=0 // pred_region
    _
  $region69: #{cross_domain_forward.1} parent=0 // pred_fallthru
    _
  // Predicated region
  $region70: #{cross_domain_forward.1} parent=0 // pred_check
    _
  $region71: #{cross_domain_forward.1} parent=0 // pred_check_branch
    %59 = sbr.rel (0) target = $region73
  $region72: #{cross_domain_forward.1} parent=0 // pred_region
    _
  $region73: #{cross_domain_forward.1} parent=0 // pred_fallthru
    _
  // Predicated region
  $region74: #{cross_domain_forward.1} parent=0 // pred_check
    _
  $region75: #{cross_domain_forward.1} parent=0 // pred_check_branch
    %61 = sbr.rel (0) target = $region77
  $region76: #{cross_domain_forward.1} parent=0 // pred_region
    _
  $region77: #{cross_domain_forward.1} parent=0 // pred_fallthru
    _
  %v63 = vld [vmem:[%s0] sm:$0xff]
  %v64 = vld [vmem:[%s0 + $0x8] sm:$0xff]
  %v65 = vld [vmem:[%s0 + $0x10] sm:$0xff]
  %v66 = vld [vmem:[%s0 + $0x18] sm:$0xff]
  %v67 = vld [vmem:[%s1] sm:$0xff]
  %v68 = vld [vmem:[%s1 + $0x8] sm:$0xff]
  %v69 = vld [vmem:[%s1 + $0x10] sm:$0xff]
  %v70 = vld [vmem:[%s1 + $0x18] sm:$0xff]
  %v71 = vld [vmem:[%s2] sm:$0xff]
  %v72 = vld [vmem:[%s2 + $0x8] sm:$0xff]
  %v73 = vld [vmem:[%s2 + $0x10] sm:$0xff]
  %v74 = vld [vmem:[%s2 + $0x18] sm:$0xff]
  %v75 = vld [vmem:[%s3] sm:$0xff]
  %v76 = vld [vmem:[%s3 + $0x8] sm:$0xff]
  %v77 = vld [vmem:[%s3 + $0x10] sm:$0xff]
  %v78 = vld [vmem:[%s3 + $0x18] sm:$0xff]
  %v79 = vld [vmem:[%s4] sm:$0xf]
  %v80 = vld [vmem:[%s4 + $0x4] sm:$0xf]
  %v81 = vld [vmem:[%s4 + $0x8] sm:$0xf]
  %v82 = vld [vmem:[%s4 + $0xc] sm:$0xf]
  %v83 = vld [vmem:[%s5] sm:$0xf]
  %v84 = vld [vmem:[%s5 + $0x4] sm:$0xf]
  %v85 = vld [vmem:[%s5 + $0x8] sm:$0xf]
  %v86 = vld [vmem:[%s5 + $0xc] sm:$0xf]
  %v87 = vld [vmem:[%s6] sm:$0xff]
  %v88 = vld [vmem:[%s6 + $0x8] sm:$0xff]
  %v89 = vld [vmem:[%s6 + $0x10] sm:$0xff]
  %v90 = vld [vmem:[%s6 + $0x18] sm:$0xff]
  %v91 = vld [vmem:[%s6 + $0x20] sm:$0xff]
  %v92 = vld [vmem:[%s6 + $0x28] sm:$0xff]
  %v93 = vld [vmem:[%s6 + $0x30] sm:$0xff]
  %v94 = vld [vmem:[%s6 + $0x38] sm:$0xff]
  %v95 = vld [vmem:[%s6 + $0x40] sm:$0xff]
  %v96 = vld [vmem:[%s6 + $0x48] sm:$0xff]
  %v97 = vld [vmem:[%s6 + $0x50] sm:$0xff]
  %v98 = vld [vmem:[%s6 + $0x58] sm:$0xff]
  %v99 = vld [vmem:[%s6 + $0x60] sm:$0xff]
  %v100 = vld [vmem:[%s6 + $0x68] sm:$0xff]
  %v101 = vld [vmem:[%s6 + $0x70] sm:$0xff]
  %v102 = vld [vmem:[%s6 + $0x78] sm:$0xff]
  %v103 = vld [vmem:[%s6 + $0x80] sm:$0xff]
  %v104 = vld [vmem:[%s6 + $0x88] sm:$0xff]
  %v105 = vld [vmem:[%s6 + $0x90] sm:$0xff]
  %v106 = vld [vmem:[%s6 + $0x98] sm:$0xff]
  %v107 = vld [vmem:[%s6 + $0xa0] sm:$0xff]
  %v108 = vld [vmem:[%s6 + $0xa8] sm:$0xff]
  %v109 = vld [vmem:[%s6 + $0xb0] sm:$0xff]
  %v110 = vld [vmem:[%s6 + $0xb8] sm:$0xff]
  %v111 = vld [vmem:[%s6 + $0xc0] sm:$0xff]
  %v112 = vld [vmem:[%s6 + $0xc8] sm:$0xff]
  %v113 = vld [vmem:[%s6 + $0xd0] sm:$0xff]
  %v114 = vld [vmem:[%s6 + $0xd8] sm:$0xff]
  %v115 = vld [vmem:[%s6 + $0xe0] sm:$0xff]
  %v116 = vld [vmem:[%s6 + $0xe8] sm:$0xff]
  %v117 = vld [vmem:[%s6 + $0xf0] sm:$0xff]
  %v118 = vld [vmem:[%s6 + $0xf8] sm:$0xff]
  %v119 = vld [vmem:[%s7] sm:$0xff]
  %v120 = vld [vmem:[%s7 + $0x8] sm:$0xff]
  %v121 = vld [vmem:[%s7 + $0x10] sm:$0xff]
  %v122 = vld [vmem:[%s7 + $0x18] sm:$0xff]
  %v123 = vld [vmem:[%s7 + $0x20] sm:$0xff]
  %v124 = vld [vmem:[%s7 + $0x28] sm:$0xff]
  %v125 = vld [vmem:[%s7 + $0x30] sm:$0xff]
  %v126 = vld [vmem:[%s7 + $0x38] sm:$0xff]
  %v127 = vld [vmem:[%s7 + $0x40] sm:$0xff]
  %v128 = vld [vmem:[%s7 + $0x48] sm:$0xff]
  %v129 = vld [vmem:[%s7 + $0x50] sm:$0xff]
  %v130 = vld [vmem:[%s7 + $0x58] sm:$0xff]
  %v131 = vld [vmem:[%s7 + $0x60] sm:$0xff]
  %v132 = vld [vmem:[%s7 + $0x68] sm:$0xff]
  %v133 = vld [vmem:[%s7 + $0x70] sm:$0xff]
  %v134 = vld [vmem:[%s7 + $0x78] sm:$0xff]
  %v135 = vld [vmem:[%s7 + $0x80] sm:$0xff]
  %v136 = vld [vmem:[%s7 + $0x88] sm:$0xff]
  %v137 = vld [vmem:[%s7 + $0x90] sm:$0xff]
  %v138 = vld [vmem:[%s7 + $0x98] sm:$0xff]
  %v139 = vld [vmem:[%s7 + $0xa0] sm:$0xff]
  %v140 = vld [vmem:[%s7 + $0xa8] sm:$0xff]
  %v141 = vld [vmem:[%s7 + $0xb0] sm:$0xff]
  %v142 = vld [vmem:[%s7 + $0xb8] sm:$0xff]
  %v143 = vld [vmem:[%s7 + $0xc0] sm:$0xff]
  %v144 = vld [vmem:[%s7 + $0xc8] sm:$0xff]
  %v145 = vld [vmem:[%s7 + $0xd0] sm:$0xff]
  %v146 = vld [vmem:[%s7 + $0xd8] sm:$0xff]
  %v147 = vld [vmem:[%s7 + $0xe0] sm:$0xff]
  %v148 = vld [vmem:[%s7 + $0xe8] sm:$0xff]
  %v149 = vld [vmem:[%s7 + $0xf0] sm:$0xff]
  %v150 = vld [vmem:[%s7 + $0xf8] sm:$0xff]
  %v151 = vld [vmem:[%s8] sm:$0xff]
  %v152 = vld [vmem:[%s8 + $0x8] sm:$0xff]
  %v153 = vld [vmem:[%s8 + $0x10] sm:$0xff]
  %v154 = vld [vmem:[%s8 + $0x18] sm:$0xff]
  %v155 = vld [vmem:[%s8 + $0x20] sm:$0xff]
  %v156 = vld [vmem:[%s8 + $0x28] sm:$0xff]
  %v157 = vld [vmem:[%s8 + $0x30] sm:$0xff]
  %v158 = vld [vmem:[%s8 + $0x38] sm:$0xff]
  %v159 = vld [vmem:[%s8 + $0x40] sm:$0xff]
  %v160 = vld [vmem:[%s8 + $0x48] sm:$0xff]
  %v161 = vld [vmem:[%s8 + $0x50] sm:$0xff]
  %v162 = vld [vmem:[%s8 + $0x58] sm:$0xff]
  %v163 = vld [vmem:[%s8 + $0x60] sm:$0xff]
  %v164 = vld [vmem:[%s8 + $0x68] sm:$0xff]
  %v165 = vld [vmem:[%s8 + $0x70] sm:$0xff]
  %v166 = vld [vmem:[%s8 + $0x78] sm:$0xff]
  %v167 = vld [vmem:[%s9] sm:$0xf]
  %v168 = vld [vmem:[%s9 + $0x4] sm:$0xf]
  %v169 = vld [vmem:[%s9 + $0x8] sm:$0xf]
  %v170 = vld [vmem:[%s9 + $0xc] sm:$0xf]
  %v171 = vld [vmem:[%s9 + $0x10] sm:$0xf]
  %v172 = vld [vmem:[%s9 + $0x14] sm:$0xf]
  %v173 = vld [vmem:[%s9 + $0x18] sm:$0xf]
  %v174 = vld [vmem:[%s9 + $0x1c] sm:$0xf]
  %v175 = vld [vmem:[%s9 + $0x20] sm:$0xf]
  %v176 = vld [vmem:[%s9 + $0x24] sm:$0xf]
  %v177 = vld [vmem:[%s9 + $0x28] sm:$0xf]
  %v178 = vld [vmem:[%s9 + $0x2c] sm:$0xf]
  %v179 = vld [vmem:[%s9 + $0x30] sm:$0xf]
  %v180 = vld [vmem:[%s9 + $0x34] sm:$0xf]
  %v181 = vld [vmem:[%s9 + $0x38] sm:$0xf]
  %v182 = vld [vmem:[%s9 + $0x3c] sm:$0xf]
  %v183 = vld [vmem:[%s9 + $0x40] sm:$0xf]
  %v184 = vld [vmem:[%s9 + $0x44] sm:$0xf]
  %v185 = vld [vmem:[%s9 + $0x48] sm:$0xf]
  %v186 = vld [vmem:[%s9 + $0x4c] sm:$0xf]
  %v187 = vld [vmem:[%s9 + $0x50] sm:$0xf]
  %v188 = vld [vmem:[%s9 + $0x54] sm:$0xf]
  %v189 = vld [vmem:[%s9 + $0x58] sm:$0xf]
  %v190 = vld [vmem:[%s9 + $0x5c] sm:$0xf]
  %v191 = vld [vmem:[%s9 + $0x60] sm:$0xf]
  %v192 = vld [vmem:[%s9 + $0x64] sm:$0xf]
  %v193 = vld [vmem:[%s9 + $0x68] sm:$0xf]
  %v194 = vld [vmem:[%s9 + $0x6c] sm:$0xf]
  %v195 = vld [vmem:[%s9 + $0x70] sm:$0xf]
  %v196 = vld [vmem:[%s9 + $0x74] sm:$0xf]
  %v197 = vld [vmem:[%s9 + $0x78] sm:$0xf]
  %v198 = vld [vmem:[%s9 + $0x7c] sm:$0xf]
  %v199 = vld [vmem:[%s10] sm:$0xf]
  %v200 = vld [vmem:[%s10 + $0x4] sm:$0xf]
  %v201 = vld [vmem:[%s10 + $0x8] sm:$0xf]
  %v202 = vld [vmem:[%s10 + $0xc] sm:$0xf]
  %v203 = vld [vmem:[%s10 + $0x10] sm:$0xf]
  %v204 = vld [vmem:[%s10 + $0x14] sm:$0xf]
  %v205 = vld [vmem:[%s10 + $0x18] sm:$0xf]
  %v206 = vld [vmem:[%s10 + $0x1c] sm:$0xf]
  %v207 = vld [vmem:[%s10 + $0x20] sm:$0xf]
  %v208 = vld [vmem:[%s10 + $0x24] sm:$0xf]
  %v209 = vld [vmem:[%s10 + $0x28] sm:$0xf]
  %v210 = vld [vmem:[%s10 + $0x2c] sm:$0xf]
  %v211 = vld [vmem:[%s10 + $0x30] sm:$0xf]
  %v212 = vld [vmem:[%s10 + $0x34] sm:$0xf]
  %v213 = vld [vmem:[%s10 + $0x38] sm:$0xf]
  %v214 = vld [vmem:[%s10 + $0x3c] sm:$0xf]
  %v215 = vld [vmem:[%s10 + $0x40] sm:$0xf]
  %v216 = vld [vmem:[%s10 + $0x44] sm:$0xf]
  %v217 = vld [vmem:[%s10 + $0x48] sm:$0xf]
  %v218 = vld [vmem:[%s10 + $0x4c] sm:$0xf]
  %v219 = vld [vmem:[%s10 + $0x50] sm:$0xf]
  %v220 = vld [vmem:[%s10 + $0x54] sm:$0xf]
  %v221 = vld [vmem:[%s10 + $0x58] sm:$0xf]
  %v222 = vld [vmem:[%s10 + $0x5c] sm:$0xf]
  %v223 = vld [vmem:[%s10 + $0x60] sm:$0xf]
  %v224 = vld [vmem:[%s10 + $0x64] sm:$0xf]
  %v225 = vld [vmem:[%s10 + $0x68] sm:$0xf]
  %v226 = vld [vmem:[%s10 + $0x6c] sm:$0xf]
  %v227 = vld [vmem:[%s10 + $0x70] sm:$0xf]
  %v228 = vld [vmem:[%s10 + $0x74] sm:$0xf]
  %v229 = vld [vmem:[%s10 + $0x78] sm:$0xf]
  %v230 = vld [vmem:[%s10 + $0x7c] sm:$0xf]
  %v231 = vlaneseq
  %v232 = vand.u32 %v231, 127
  %v233 = vadd.s32 %v232, 128
  %vm234 = vcmp.lt.s32.totalorder %v232, 128
  %vm235 = vcmp.lt.s32.totalorder %v233, 128
  %v236 = vsel %vm234, -1.0, 1.0
  %v237 = vsel %vm235, -1.0, 1.0
  %v238 = vlaneseq
  %v239 = vshrl.u32 %v238, 7
  %v240 = vadd.s32 %v239, 8
  %vm241 = vcmp.gt.s32.totalorder %v239, 0
  %vm242 = vcmp.gt.s32.totalorder %v240, 0
  %v243 = vsel %vm241, 1, 0
  %v244 = vsel %vm242, 1, 0
  %v245 = vcvt.s32.f32 %v243
  %v246 = vcvt.s32.f32 %v244
  %vm247 = vcmp.lt.s32.totalorder %v239, 15
  %vm248 = vcmp.lt.s32.totalorder %v240, 15
  %v249 = vsel %vm247, 1, 0
  %v250 = vsel %vm248, 1, 0
  %v251 = vcvt.s32.f32 %v249
  %v252 = vcvt.s32.f32 %v250
  %v253 = vmul.f32 %v75, %v63
  %v254 = vmul.f32 %v76, %v64
  %v255 = vmul.f32 %v77, %v65
  %v256 = vmul.f32 %v78, %v66
  %v257 = vpack.c.bf16 %v255, %v253
  %v258 = vpack.c.bf16 %v256, %v254
  %v291 = vunpack.c.l.b16 %v119
  %v292 = vunpack.c.h.b16 %v119
  %v293 = vunpack.c.l.b16 %v120
  %v294 = vunpack.c.h.b16 %v120
  %v295 = vunpack.c.l.b16 %v121
  %v296 = vunpack.c.h.b16 %v121
  %v297 = vunpack.c.l.b16 %v122
  %v298 = vunpack.c.h.b16 %v122
  %v299 = vunpack.c.l.b16 %v123
  %v300 = vunpack.c.h.b16 %v123
  %v301 = vunpack.c.l.b16 %v124
  %v302 = vunpack.c.h.b16 %v124
  %v303 = vunpack.c.l.b16 %v125
  %v304 = vunpack.c.h.b16 %v125
  %v305 = vunpack.c.l.b16 %v126
  %v306 = vunpack.c.h.b16 %v126
  %v307 = vunpack.c.l.b16 %v127
  %v308 = vunpack.c.h.b16 %v127
  %v309 = vunpack.c.l.b16 %v128
  %v310 = vunpack.c.h.b16 %v128
  %v311 = vunpack.c.l.b16 %v129
  %v312 = vunpack.c.h.b16 %v129
  %v313 = vunpack.c.l.b16 %v130
  %v314 = vunpack.c.h.b16 %v130
  %v315 = vunpack.c.l.b16 %v131
  %v316 = vunpack.c.h.b16 %v131
  %v317 = vunpack.c.l.b16 %v132
  %v318 = vunpack.c.h.b16 %v132
  %v319 = vunpack.c.l.b16 %v133
  %v320 = vunpack.c.h.b16 %v133
  %v321 = vunpack.c.l.b16 %v134
  %v322 = vunpack.c.h.b16 %v134
  %v323 = vunpack.c.l.b16 %v135
  %v324 = vunpack.c.h.b16 %v135
  %v325 = vunpack.c.l.b16 %v136
  %v326 = vunpack.c.h.b16 %v136
  %v327 = vunpack.c.l.b16 %v137
  %v328 = vunpack.c.h.b16 %v137
  %v329 = vunpack.c.l.b16 %v138
  %v330 = vunpack.c.h.b16 %v138
  %v331 = vunpack.c.l.b16 %v139
  %v332 = vunpack.c.h.b16 %v139
  %v333 = vunpack.c.l.b16 %v140
  %v334 = vunpack.c.h.b16 %v140
  %v335 = vunpack.c.l.b16 %v141
  %v336 = vunpack.c.h.b16 %v141
  %v337 = vunpack.c.l.b16 %v142
  %v338 = vunpack.c.h.b16 %v142
  %v339 = vunpack.c.l.b16 %v143
  %v340 = vunpack.c.h.b16 %v143
  %v341 = vunpack.c.l.b16 %v144
  %v342 = vunpack.c.h.b16 %v144
  %v343 = vunpack.c.l.b16 %v145
  %v344 = vunpack.c.h.b16 %v145
  %v345 = vunpack.c.l.b16 %v146
  %v346 = vunpack.c.h.b16 %v146
  %v347 = vunpack.c.l.b16 %v147
  %v348 = vunpack.c.h.b16 %v147
  %v349 = vunpack.c.l.b16 %v148
  %v350 = vunpack.c.h.b16 %v148
  %v351 = vunpack.c.l.b16 %v149
  %v352 = vunpack.c.h.b16 %v149
  %v353 = vunpack.c.l.b16 %v150
  %v354 = vunpack.c.h.b16 %v150
  %v355 = vpack.c.b16 %v293, %v291
  %v356 = vpack.c.b16 %v294, %v292
  %v357 = vpack.c.b16 %v297, %v295
  %v358 = vpack.c.b16 %v298, %v296
  %v359 = vpack.c.b16 %v301, %v299
  %v360 = vpack.c.b16 %v302, %v300
  %v361 = vpack.c.b16 %v305, %v303
  %v362 = vpack.c.b16 %v306, %v304
  %v363 = vpack.c.b16 %v309, %v307
  %v364 = vpack.c.b16 %v310, %v308
  %v365 = vpack.c.b16 %v313, %v311
  %v366 = vpack.c.b16 %v314, %v312
  %v367 = vpack.c.b16 %v317, %v315
  %v368 = vpack.c.b16 %v318, %v316
  %v369 = vpack.c.b16 %v321, %v319
  %v370 = vpack.c.b16 %v322, %v320
  %v371 = vpack.c.b16 %v325, %v323
  %v372 = vpack.c.b16 %v326, %v324
  %v373 = vpack.c.b16 %v329, %v327
  %v374 = vpack.c.b16 %v330, %v328
  %v375 = vpack.c.b16 %v333, %v331
  %v376 = vpack.c.b16 %v334, %v332
  %v377 = vpack.c.b16 %v337, %v335
  %v378 = vpack.c.b16 %v338, %v336
  %v379 = vpack.c.b16 %v341, %v339
  %v380 = vpack.c.b16 %v342, %v340
  %v381 = vpack.c.b16 %v345, %v343
  %v382 = vpack.c.b16 %v346, %v344
  %v383 = vpack.c.b16 %v349, %v347
  %v384 = vpack.c.b16 %v350, %v348
  %v385 = vpack.c.b16 %v353, %v351
  %v386 = vpack.c.b16 %v354, %v352
  %419 = vmatpush.bf16.msra.mxu0 %v369
  %420 = vmatpush.bf16.msra.mxu0 %v367
  %421 = vmatpush.bf16.msra.mxu0 %v365
  %422 = vmatpush.bf16.msra.mxu0 %v363
  %423 = vmatpush.bf16.msra.mxu0 %v361
  %424 = vmatpush.bf16.msra.mxu0 %v359
  %425 = vmatpush.bf16.msra.mxu0 %v357
  %426 = vmatpush.bf16.msra.mxu0 %v355
  %427 = vmatmul.bf16.gmra.mxu0 %v257
  %v428 = vpop.f32.mrf.mxu0
  %v429 = vadd.f32 0.0, %v428
  %v430 = vpop.f32.mrf.mxu0
  %v431 = vadd.f32 0.0, %v430
  %432 = vdwg.mxu0
  %433 = vmatpush.bf16.msra.mxu0 %v385
  %434 = vmatpush.bf16.msra.mxu0 %v383
  %435 = vmatpush.bf16.msra.mxu0 %v381
  %436 = vmatpush.bf16.msra.mxu0 %v379
  %437 = vmatpush.bf16.msra.mxu0 %v377
  %438 = vmatpush.bf16.msra.mxu0 %v375
  %439 = vmatpush.bf16.msra.mxu0 %v373
  %440 = vmatpush.bf16.msra.mxu0 %v371
  %441 = vmatmul.bf16.gmra.mxu0 %v258
  %v442 = vpop.f32.mrf.mxu0
  %v443 = vadd.f32 %v429, %v442
  %v444 = vpop.f32.mrf.mxu0
  %v445 = vadd.f32 %v431, %v444
  %446 = vdwg.mxu0
  %447 = vmatpush.bf16.msra.mxu0 %v370
  %448 = vmatpush.bf16.msra.mxu0 %v368
  %449 = vmatpush.bf16.msra.mxu0 %v366
  %450 = vmatpush.bf16.msra.mxu0 %v364
  %451 = vmatpush.bf16.msra.mxu0 %v362
  %452 = vmatpush.bf16.msra.mxu0 %v360
  %453 = vmatpush.bf16.msra.mxu0 %v358
  %454 = vmatpush.bf16.msra.mxu0 %v356
  %455 = vmatmul.bf16.gmra.mxu0 %v257
  %v456 = vpop.f32.mrf.mxu0
  %v457 = vadd.f32 0.0, %v456
  %v458 = vpop.f32.mrf.mxu0
  %v459 = vadd.f32 0.0, %v458
  %460 = vdwg.mxu0
  %461 = vmatpush.bf16.msra.mxu0 %v386
  %462 = vmatpush.bf16.msra.mxu0 %v384
  %463 = vmatpush.bf16.msra.mxu0 %v382
  %464 = vmatpush.bf16.msra.mxu0 %v380
  %465 = vmatpush.bf16.msra.mxu0 %v378
  %466 = vmatpush.bf16.msra.mxu0 %v376
  %467 = vmatpush.bf16.msra.mxu0 %v374
  %468 = vmatpush.bf16.msra.mxu0 %v372
  %469 = vmatmul.bf16.gmra.mxu0 %v258
  %v470 = vpop.f32.mrf.mxu0
  %v471 = vadd.f32 %v457, %v470
  %v472 = vpop.f32.mrf.mxu0
  %v473 = vadd.f32 %v459, %v472
  %474 = vdwg.mxu0
  %v475 = vpack.c.bf16 %v445, %v443
  %v476 = vpack.c.bf16 %v473, %v471
  %v481 = vunpack.c.l.b16 %v83
  %v482 = vunpack.c.l.b16 %v84
  %v483 = vunpack.c.l.b16 %v85
  %v484 = vunpack.c.l.b16 %v86
  %v485 = vpack.c.b16 %v482, %v481
  %v486 = vpack.c.b16 %v484, %v483
  %vm487 = vcmask 130048
  %v489 = vsel %vm487, %v485, 0
  %v492 = vsel %vm487, %v486, 0
  %494 = vmatpush.bf16.msra.mxu0 0
  %495 = vmatpush.bf16.msra.mxu0 0
  %496 = vmatpush.bf16.msra.mxu0 0
  %497 = vmatpush.bf16.msra.mxu0 0
  %498 = vmatpush.bf16.msra.mxu0 0
  %499 = vmatpush.bf16.msra.mxu0 0
  %500 = vmatpush.bf16.msra.mxu0 0
  %501 = vmatpush.bf16.msra.mxu0 %v475
  %502 = vmatmul.bf16.gmra.mxu0 %v489
  %v503 = vpop.f32.mrf.mxu0
  %v504 = vadd.f32 0.0, %v503
  %v505 = vpop.f32.mrf.mxu0
  %v506 = vadd.f32 0.0, %v505
  %507 = vmatmul.bf16.gmra.mxu0 %v492
  %v508 = vpop.f32.mrf.mxu0
  %v509 = vadd.f32 0.0, %v508
  %v510 = vpop.f32.mrf.mxu0
  %v511 = vadd.f32 0.0, %v510
  %512 = vdwg.mxu0
  %513 = vmatpush.bf16.msra.mxu0 0
  %514 = vmatpush.bf16.msra.mxu0 0
  %515 = vmatpush.bf16.msra.mxu0 0
  %516 = vmatpush.bf16.msra.mxu0 0
  %517 = vmatpush.bf16.msra.mxu0 0
  %518 = vmatpush.bf16.msra.mxu0 0
  %519 = vmatpush.bf16.msra.mxu0 0
  %520 = vmatpush.bf16.msra.mxu0 %v476
  %521 = vmatmul.bf16.gmra.mxu0 %v489
  %v522 = vpop.f32.mrf.mxu0
  %v523 = vadd.f32 0.0, %v522
  %v524 = vpop.f32.mrf.mxu0
  %v525 = vadd.f32 0.0, %v524
  %526 = vmatmul.bf16.gmra.mxu0 %v492
  %v527 = vpop.f32.mrf.mxu0
  %v528 = vadd.f32 0.0, %v527
  %v529 = vpop.f32.mrf.mxu0
  %v530 = vadd.f32 0.0, %v529
  %531 = vdwg.mxu0
  %v532 = vmul.f32 %v236, %v528
  %v533 = vmul.f32 %v237, %v509
  %v534 = vmul.f32 %v236, %v530
  %v535 = vmul.f32 %v237, %v511
  %v536 = vadd.f32 %v504, %v532
  %v537 = vadd.f32 %v523, %v533
  %v538 = vadd.f32 %v506, %v534
  %v539 = vadd.f32 %v525, %v535
  %v540 = vmul.f32 %v536, %v67
  %v541 = vmul.f32 %v537, %v68
  %v542 = vmul.f32 %v538, %v69
  %v543 = vmul.f32 %v539, %v70
  %v544 = vmul.f32 %v537, %v71
  %v545 = vmul.f32 %v536, %v72
  %v546 = vmul.f32 %v539, %v73
  %v547 = vmul.f32 %v538, %v74
  %v548 = vadd.f32 %v540, %v544
  %v549 = vadd.f32 %v541, %v545
  %v550 = vadd.f32 %v542, %v546
  %v551 = vadd.f32 %v543, %v547
  %v552 = vpack.c.bf16 %v550, %v548
  %v553 = vpack.c.bf16 %v551, %v549
  %v586 = vunpack.c.l.b16 %v167
  %v587 = vunpack.c.l.b16 %v168
  %v588 = vunpack.c.l.b16 %v169
  %v589 = vunpack.c.l.b16 %v170
  %v590 = vunpack.c.l.b16 %v171
  %v591 = vunpack.c.l.b16 %v172
  %v592 = vunpack.c.l.b16 %v173
  %v593 = vunpack.c.l.b16 %v174
  %v594 = vunpack.c.l.b16 %v175
  %v595 = vunpack.c.l.b16 %v176
  %v596 = vunpack.c.l.b16 %v177
  %v597 = vunpack.c.l.b16 %v178
  %v598 = vunpack.c.l.b16 %v179
  %v599 = vunpack.c.l.b16 %v180
  %v600 = vunpack.c.l.b16 %v181
  %v601 = vunpack.c.l.b16 %v182
  %v602 = vunpack.c.l.b16 %v183
  %v603 = vunpack.c.l.b16 %v184
  %v604 = vunpack.c.l.b16 %v185
  %v605 = vunpack.c.l.b16 %v186
  %v606 = vunpack.c.l.b16 %v187
  %v607 = vunpack.c.l.b16 %v188
  %v608 = vunpack.c.l.b16 %v189
  %v609 = vunpack.c.l.b16 %v190
  %v610 = vunpack.c.l.b16 %v191
  %v611 = vunpack.c.l.b16 %v192
  %v612 = vunpack.c.l.b16 %v193
  %v613 = vunpack.c.l.b16 %v194
  %v614 = vunpack.c.l.b16 %v195
  %v615 = vunpack.c.l.b16 %v196
  %v616 = vunpack.c.l.b16 %v197
  %v617 = vunpack.c.l.b16 %v198
  %v618 = vpack.c.b16 %v587, %v586
  %v619 = vpack.c.b16 %v589, %v588
  %v620 = vpack.c.b16 %v591, %v590
  %v621 = vpack.c.b16 %v593, %v592
  %v622 = vpack.c.b16 %v595, %v594
  %v623 = vpack.c.b16 %v597, %v596
  %v624 = vpack.c.b16 %v599, %v598
  %v625 = vpack.c.b16 %v601, %v600
  %v626 = vpack.c.b16 %v603, %v602
  %v627 = vpack.c.b16 %v605, %v604
  %v628 = vpack.c.b16 %v607, %v606
  %v629 = vpack.c.b16 %v609, %v608
  %v630 = vpack.c.b16 %v611, %v610
  %v631 = vpack.c.b16 %v613, %v612
  %v632 = vpack.c.b16 %v615, %v614
  %v633 = vpack.c.b16 %v617, %v616
  %650 = vmatpush.bf16.msra.mxu0 %v625
  %651 = vmatpush.bf16.msra.mxu0 %v624
  %652 = vmatpush.bf16.msra.mxu0 %v623
  %653 = vmatpush.bf16.msra.mxu0 %v622
  %654 = vmatpush.bf16.msra.mxu0 %v621
  %655 = vmatpush.bf16.msra.mxu0 %v620
  %656 = vmatpush.bf16.msra.mxu0 %v619
  %657 = vmatpush.bf16.msra.mxu0 %v618
  %658 = vmatmul.bf16.gmra.mxu0 %v552
  %v659 = vpop.f32.mrf.mxu0
  %v660 = vadd.f32 0.0, %v659
  %v661 = vpop.f32.mrf.mxu0
  %v662 = vadd.f32 0.0, %v661
  %663 = vdwg.mxu0
  %664 = vmatpush.bf16.msra.mxu0 %v633
  %665 = vmatpush.bf16.msra.mxu0 %v632
  %666 = vmatpush.bf16.msra.mxu0 %v631
  %667 = vmatpush.bf16.msra.mxu0 %v630
  %668 = vmatpush.bf16.msra.mxu0 %v629
  %669 = vmatpush.bf16.msra.mxu0 %v628
  %670 = vmatpush.bf16.msra.mxu0 %v627
  %671 = vmatpush.bf16.msra.mxu0 %v626
  %672 = vmatmul.bf16.gmra.mxu0 %v553
  %v673 = vpop.f32.mrf.mxu0
  %v674 = vadd.f32 %v660, %v673
  %v675 = vpop.f32.mrf.mxu0
  %v676 = vadd.f32 %v662, %v675
  %677 = vdwg.mxu0
  %v678 = vpack.c.bf16 %v676, %v674
  %v695 = vunpack.c.l.b16 %v151
  %v696 = vunpack.c.h.b16 %v151
  %v697 = vunpack.c.l.b16 %v152
  %v698 = vunpack.c.h.b16 %v152
  %v699 = vunpack.c.l.b16 %v153
  %v700 = vunpack.c.h.b16 %v153
  %v701 = vunpack.c.l.b16 %v154
  %v702 = vunpack.c.h.b16 %v154
  %v703 = vunpack.c.l.b16 %v155
  %v704 = vunpack.c.h.b16 %v155
  %v705 = vunpack.c.l.b16 %v156
  %v706 = vunpack.c.h.b16 %v156
  %v707 = vunpack.c.l.b16 %v157
  %v708 = vunpack.c.h.b16 %v157
  %v709 = vunpack.c.l.b16 %v158
  %v710 = vunpack.c.h.b16 %v158
  %v711 = vunpack.c.l.b16 %v159
  %v712 = vunpack.c.h.b16 %v159
  %v713 = vunpack.c.l.b16 %v160
  %v714 = vunpack.c.h.b16 %v160
  %v715 = vunpack.c.l.b16 %v161
  %v716 = vunpack.c.h.b16 %v161
  %v717 = vunpack.c.l.b16 %v162
  %v718 = vunpack.c.h.b16 %v162
  %v719 = vunpack.c.l.b16 %v163
  %v720 = vunpack.c.h.b16 %v163
  %v721 = vunpack.c.l.b16 %v164
  %v722 = vunpack.c.h.b16 %v164
  %v723 = vunpack.c.l.b16 %v165
  %v724 = vunpack.c.h.b16 %v165
  %v725 = vunpack.c.l.b16 %v166
  %v726 = vunpack.c.h.b16 %v166
  %v727 = vpack.c.b16 %v697, %v695
  %v728 = vpack.c.b16 %v698, %v696
  %v729 = vpack.c.b16 %v701, %v699
  %v730 = vpack.c.b16 %v702, %v700
  %v731 = vpack.c.b16 %v705, %v703
  %v732 = vpack.c.b16 %v706, %v704
  %v733 = vpack.c.b16 %v709, %v707
  %v734 = vpack.c.b16 %v710, %v708
  %v735 = vpack.c.b16 %v713, %v711
  %v736 = vpack.c.b16 %v714, %v712
  %v737 = vpack.c.b16 %v717, %v715
  %v738 = vpack.c.b16 %v718, %v716
  %v739 = vpack.c.b16 %v721, %v719
  %v740 = vpack.c.b16 %v722, %v720
  %v741 = vpack.c.b16 %v725, %v723
  %v742 = vpack.c.b16 %v726, %v724
  %759 = vmatpush.bf16.msra.mxu0 %v741
  %760 = vmatpush.bf16.msra.mxu0 %v739
  %761 = vmatpush.bf16.msra.mxu0 %v737
  %762 = vmatpush.bf16.msra.mxu0 %v735
  %763 = vmatpush.bf16.msra.mxu0 %v733
  %764 = vmatpush.bf16.msra.mxu0 %v731
  %765 = vmatpush.bf16.msra.mxu0 %v729
  %766 = vmatpush.bf16.msra.mxu0 %v727
  %767 = vmatmul.bf16.gmra.mxu0 %v678
  %v768 = vpop.f32.mrf.mxu0
  %v769 = vadd.f32 0.0, %v768
  %v770 = vpop.f32.mrf.mxu0
  %v771 = vadd.f32 0.0, %v770
  %772 = vdwg.mxu0
  %773 = vmatpush.bf16.msra.mxu0 %v742
  %774 = vmatpush.bf16.msra.mxu0 %v740
  %775 = vmatpush.bf16.msra.mxu0 %v738
  %776 = vmatpush.bf16.msra.mxu0 %v736
  %777 = vmatpush.bf16.msra.mxu0 %v734
  %778 = vmatpush.bf16.msra.mxu0 %v732
  %779 = vmatpush.bf16.msra.mxu0 %v730
  %780 = vmatpush.bf16.msra.mxu0 %v728
  %781 = vmatmul.bf16.gmra.mxu0 %v678
  %v782 = vpop.f32.mrf.mxu0
  %v783 = vadd.f32 0.0, %v782
  %v784 = vpop.f32.mrf.mxu0
  %v785 = vadd.f32 0.0, %v784
  %786 = vdwg.mxu0
  %v787 = vmul.f32 %v769, %v67
  %v788 = vmul.f32 %v783, %v68
  %v789 = vmul.f32 %v771, %v69
  %v790 = vmul.f32 %v785, %v70
  %v791 = vmul.f32 %v783, %v71
  %v792 = vmul.f32 %v769, %v72
  %v793 = vmul.f32 %v785, %v73
  %v794 = vmul.f32 %v771, %v74
  %v795 = vsub.f32 %v787, %v791
  %v796 = vsub.f32 %v788, %v792
  %v797 = vsub.f32 %v789, %v793
  %v798 = vsub.f32 %v790, %v794
  %v799 = vpack.c.bf16 %v797, %v795
  %v800 = vpack.c.bf16 %v798, %v796
  %v805 = vunpack.c.l.b16 %v79
  %v806 = vunpack.c.l.b16 %v80
  %v807 = vunpack.c.l.b16 %v81
  %v808 = vunpack.c.l.b16 %v82
  %v809 = vpack.c.b16 %v806, %v805
  %v810 = vpack.c.b16 %v808, %v807
  %v812 = vsel %vm487, %v809, 0
  %v815 = vsel %vm487, %v810, 0
  %817 = vmatpush.bf16.msra.mxu0 0
  %818 = vmatpush.bf16.msra.mxu0 0
  %819 = vmatpush.bf16.msra.mxu0 0
  %820 = vmatpush.bf16.msra.mxu0 0
  %821 = vmatpush.bf16.msra.mxu0 0
  %822 = vmatpush.bf16.msra.mxu0 0
  %823 = vmatpush.bf16.msra.mxu0 0
  %824 = vmatpush.bf16.msra.mxu0 %v799
  %825 = vmatmul.bf16.gmra.mxu0 %v812
  %v826 = vpop.f32.mrf.mxu0
  %v827 = vadd.f32 0.0, %v826
  %v828 = vpop.f32.mrf.mxu0
  %v829 = vadd.f32 0.0, %v828
  %830 = vmatmul.bf16.gmra.mxu0 %v815
  %v831 = vpop.f32.mrf.mxu0
  %v832 = vadd.f32 0.0, %v831
  %v833 = vpop.f32.mrf.mxu0
  %v834 = vadd.f32 0.0, %v833
  %835 = vdwg.mxu0
  %836 = vmatpush.bf16.msra.mxu0 0
  %837 = vmatpush.bf16.msra.mxu0 0
  %838 = vmatpush.bf16.msra.mxu0 0
  %839 = vmatpush.bf16.msra.mxu0 0
  %840 = vmatpush.bf16.msra.mxu0 0
  %841 = vmatpush.bf16.msra.mxu0 0
  %842 = vmatpush.bf16.msra.mxu0 0
  %843 = vmatpush.bf16.msra.mxu0 %v800
  %844 = vmatmul.bf16.gmra.mxu0 %v812
  %v845 = vpop.f32.mrf.mxu0
  %v846 = vadd.f32 0.0, %v845
  %v847 = vpop.f32.mrf.mxu0
  %v848 = vadd.f32 0.0, %v847
  %849 = vmatmul.bf16.gmra.mxu0 %v815
  %v850 = vpop.f32.mrf.mxu0
  %v851 = vadd.f32 0.0, %v850
  %v852 = vpop.f32.mrf.mxu0
  %v853 = vadd.f32 0.0, %v852
  %854 = vdwg.mxu0
  %v855 = vmul.f32 %v236, %v851
  %v856 = vmul.f32 %v237, %v832
  %v857 = vmul.f32 %v236, %v853
  %v858 = vmul.f32 %v237, %v834
  %v859 = vadd.f32 %v827, %v855
  %v860 = vadd.f32 %v846, %v856
  %v861 = vadd.f32 %v829, %v857
  %v862 = vadd.f32 %v848, %v858
  %v863 = vpack.c.bf16 %v861, %v859
  %v864 = vpack.c.bf16 %v862, %v860
  %v897 = vunpack.c.l.b16 %v87
  %v898 = vunpack.c.h.b16 %v87
  %v899 = vunpack.c.l.b16 %v88
  %v900 = vunpack.c.h.b16 %v88
  %v901 = vunpack.c.l.b16 %v89
  %v902 = vunpack.c.h.b16 %v89
  %v903 = vunpack.c.l.b16 %v90
  %v904 = vunpack.c.h.b16 %v90
  %v905 = vunpack.c.l.b16 %v91
  %v906 = vunpack.c.h.b16 %v91
  %v907 = vunpack.c.l.b16 %v92
  %v908 = vunpack.c.h.b16 %v92
  %v909 = vunpack.c.l.b16 %v93
  %v910 = vunpack.c.h.b16 %v93
  %v911 = vunpack.c.l.b16 %v94
  %v912 = vunpack.c.h.b16 %v94
  %v913 = vunpack.c.l.b16 %v95
  %v914 = vunpack.c.h.b16 %v95
  %v915 = vunpack.c.l.b16 %v96
  %v916 = vunpack.c.h.b16 %v96
  %v917 = vunpack.c.l.b16 %v97
  %v918 = vunpack.c.h.b16 %v97
  %v919 = vunpack.c.l.b16 %v98
  %v920 = vunpack.c.h.b16 %v98
  %v921 = vunpack.c.l.b16 %v99
  %v922 = vunpack.c.h.b16 %v99
  %v923 = vunpack.c.l.b16 %v100
  %v924 = vunpack.c.h.b16 %v100
  %v925 = vunpack.c.l.b16 %v101
  %v926 = vunpack.c.h.b16 %v101
  %v927 = vunpack.c.l.b16 %v102
  %v928 = vunpack.c.h.b16 %v102
  %v929 = vunpack.c.l.b16 %v103
  %v930 = vunpack.c.h.b16 %v103
  %v931 = vunpack.c.l.b16 %v104
  %v932 = vunpack.c.h.b16 %v104
  %v933 = vunpack.c.l.b16 %v105
  %v934 = vunpack.c.h.b16 %v105
  %v935 = vunpack.c.l.b16 %v106
  %v936 = vunpack.c.h.b16 %v106
  %v937 = vunpack.c.l.b16 %v107
  %v938 = vunpack.c.h.b16 %v107
  %v939 = vunpack.c.l.b16 %v108
  %v940 = vunpack.c.h.b16 %v108
  %v941 = vunpack.c.l.b16 %v109
  %v942 = vunpack.c.h.b16 %v109
  %v943 = vunpack.c.l.b16 %v110
  %v944 = vunpack.c.h.b16 %v110
  %v945 = vunpack.c.l.b16 %v111
  %v946 = vunpack.c.h.b16 %v111
  %v947 = vunpack.c.l.b16 %v112
  %v948 = vunpack.c.h.b16 %v112
  %v949 = vunpack.c.l.b16 %v113
  %v950 = vunpack.c.h.b16 %v113
  %v951 = vunpack.c.l.b16 %v114
  %v952 = vunpack.c.h.b16 %v114
  %v953 = vunpack.c.l.b16 %v115
  %v954 = vunpack.c.h.b16 %v115
  %v955 = vunpack.c.l.b16 %v116
  %v956 = vunpack.c.h.b16 %v116
  %v957 = vunpack.c.l.b16 %v117
  %v958 = vunpack.c.h.b16 %v117
  %v959 = vunpack.c.l.b16 %v118
  %v960 = vunpack.c.h.b16 %v118
  %v961 = vpack.c.b16 %v899, %v897
  %v962 = vpack.c.b16 %v900, %v898
  %v963 = vpack.c.b16 %v903, %v901
  %v964 = vpack.c.b16 %v904, %v902
  %v965 = vpack.c.b16 %v907, %v905
  %v966 = vpack.c.b16 %v908, %v906
  %v967 = vpack.c.b16 %v911, %v909
  %v968 = vpack.c.b16 %v912, %v910
  %v969 = vpack.c.b16 %v915, %v913
  %v970 = vpack.c.b16 %v916, %v914
  %v971 = vpack.c.b16 %v919, %v917
  %v972 = vpack.c.b16 %v920, %v918
  %v973 = vpack.c.b16 %v923, %v921
  %v974 = vpack.c.b16 %v924, %v922
  %v975 = vpack.c.b16 %v927, %v925
  %v976 = vpack.c.b16 %v928, %v926
  %v977 = vpack.c.b16 %v931, %v929
  %v978 = vpack.c.b16 %v932, %v930
  %v979 = vpack.c.b16 %v935, %v933
  %v980 = vpack.c.b16 %v936, %v934
  %v981 = vpack.c.b16 %v939, %v937
  %v982 = vpack.c.b16 %v940, %v938
  %v983 = vpack.c.b16 %v943, %v941
  %v984 = vpack.c.b16 %v944, %v942
  %v985 = vpack.c.b16 %v947, %v945
  %v986 = vpack.c.b16 %v948, %v946
  %v987 = vpack.c.b16 %v951, %v949
  %v988 = vpack.c.b16 %v952, %v950
  %v989 = vpack.c.b16 %v955, %v953
  %v990 = vpack.c.b16 %v956, %v954
  %v991 = vpack.c.b16 %v959, %v957
  %v992 = vpack.c.b16 %v960, %v958
  %1025 = vmatpush.bf16.msra.mxu0 %v975
  %1026 = vmatpush.bf16.msra.mxu0 %v973
  %1027 = vmatpush.bf16.msra.mxu0 %v971
  %1028 = vmatpush.bf16.msra.mxu0 %v969
  %1029 = vmatpush.bf16.msra.mxu0 %v967
  %1030 = vmatpush.bf16.msra.mxu0 %v965
  %1031 = vmatpush.bf16.msra.mxu0 %v963
  %1032 = vmatpush.bf16.msra.mxu0 %v961
  %1033 = vmatmul.bf16.gmra.mxu0 %v863
  %v1034 = vpop.f32.mrf.mxu0
  %v1035 = vadd.f32 0.0, %v1034
  %v1036 = vpop.f32.mrf.mxu0
  %v1037 = vadd.f32 0.0, %v1036
  %1038 = vdwg.mxu0
  %1039 = vmatpush.bf16.msra.mxu0 %v991
  %1040 = vmatpush.bf16.msra.mxu0 %v989
  %1041 = vmatpush.bf16.msra.mxu0 %v987
  %1042 = vmatpush.bf16.msra.mxu0 %v985
  %1043 = vmatpush.bf16.msra.mxu0 %v983
  %1044 = vmatpush.bf16.msra.mxu0 %v981
  %1045 = vmatpush.bf16.msra.mxu0 %v979
  %1046 = vmatpush.bf16.msra.mxu0 %v977
  %1047 = vmatmul.bf16.gmra.mxu0 %v864
  %v1048 = vpop.f32.mrf.mxu0
  %v1049 = vadd.f32 %v1035, %v1048
  %v1050 = vpop.f32.mrf.mxu0
  %v1051 = vadd.f32 %v1037, %v1050
  %1052 = vdwg.mxu0
  %1053 = vmatpush.bf16.msra.mxu0 %v976
  %1054 = vmatpush.bf16.msra.mxu0 %v974
  %1055 = vmatpush.bf16.msra.mxu0 %v972
  %1056 = vmatpush.bf16.msra.mxu0 %v970
  %1057 = vmatpush.bf16.msra.mxu0 %v968
  %1058 = vmatpush.bf16.msra.mxu0 %v966
  %1059 = vmatpush.bf16.msra.mxu0 %v964
  %1060 = vmatpush.bf16.msra.mxu0 %v962
  %1061 = vmatmul.bf16.gmra.mxu0 %v863
  %v1062 = vpop.f32.mrf.mxu0
  %v1063 = vadd.f32 0.0, %v1062
  %v1064 = vpop.f32.mrf.mxu0
  %v1065 = vadd.f32 0.0, %v1064
  %1066 = vdwg.mxu0
  %1067 = vmatpush.bf16.msra.mxu0 %v992
  %1068 = vmatpush.bf16.msra.mxu0 %v990
  %1069 = vmatpush.bf16.msra.mxu0 %v988
  %1070 = vmatpush.bf16.msra.mxu0 %v986
  %1071 = vmatpush.bf16.msra.mxu0 %v984
  %1072 = vmatpush.bf16.msra.mxu0 %v982
  %1073 = vmatpush.bf16.msra.mxu0 %v980
  %1074 = vmatpush.bf16.msra.mxu0 %v978
  %1075 = vmatmul.bf16.gmra.mxu0 %v864
  %v1076 = vpop.f32.mrf.mxu0
  %v1077 = vadd.f32 %v1063, %v1076
  %v1078 = vpop.f32.mrf.mxu0
  %v1079 = vadd.f32 %v1065, %v1078
  %1080 = vdwg.mxu0
  %v1081 = vmul.f32 %v75, %v1049
  %v1082 = vmul.f32 %v76, %v1077
  %v1083 = vmul.f32 %v77, %v1051
  %v1084 = vmul.f32 %v78, %v1079
  %v1085 = vsub.f32 %v63, %v1081
  %v1086 = vsub.f32 %v64, %v1082
  %v1087 = vsub.f32 %v65, %v1083
  %v1088 = vsub.f32 %v66, %v1084
  %v1089 = vmul.f32 %v75, %v1085
  %v1090 = vmul.f32 %v76, %v1086
  %v1091 = vmul.f32 %v77, %v1087
  %v1092 = vmul.f32 %v78, %v1088
  %v1093 = vpack.c.bf16 %v1091, %v1089
  %v1094 = vpack.c.bf16 %v1092, %v1090
  %1095 = vmatpush.bf16.msra.mxu0 %v369
  %1096 = vmatpush.bf16.msra.mxu0 %v367
  %1097 = vmatpush.bf16.msra.mxu0 %v365
  %1098 = vmatpush.bf16.msra.mxu0 %v363
  %1099 = vmatpush.bf16.msra.mxu0 %v361
  %1100 = vmatpush.bf16.msra.mxu0 %v359
  %1101 = vmatpush.bf16.msra.mxu0 %v357
  %1102 = vmatpush.bf16.msra.mxu0 %v355
  %1103 = vmatmul.bf16.gmra.mxu0 %v1093
  %v1104 = vpop.f32.mrf.mxu0
  %v1105 = vadd.f32 0.0, %v1104
  %v1106 = vpop.f32.mrf.mxu0
  %v1107 = vadd.f32 0.0, %v1106
  %1108 = vdwg.mxu0
  %1109 = vmatpush.bf16.msra.mxu0 %v385
  %1110 = vmatpush.bf16.msra.mxu0 %v383
  %1111 = vmatpush.bf16.msra.mxu0 %v381
  %1112 = vmatpush.bf16.msra.mxu0 %v379
  %1113 = vmatpush.bf16.msra.mxu0 %v377
  %1114 = vmatpush.bf16.msra.mxu0 %v375
  %1115 = vmatpush.bf16.msra.mxu0 %v373
  %1116 = vmatpush.bf16.msra.mxu0 %v371
  %1117 = vmatmul.bf16.gmra.mxu0 %v1094
  %v1118 = vpop.f32.mrf.mxu0
  %v1119 = vadd.f32 %v1105, %v1118
  %v1120 = vpop.f32.mrf.mxu0
  %v1121 = vadd.f32 %v1107, %v1120
  %1122 = vdwg.mxu0
  %1123 = vmatpush.bf16.msra.mxu0 %v370
  %1124 = vmatpush.bf16.msra.mxu0 %v368
  %1125 = vmatpush.bf16.msra.mxu0 %v366
  %1126 = vmatpush.bf16.msra.mxu0 %v364
  %1127 = vmatpush.bf16.msra.mxu0 %v362
  %1128 = vmatpush.bf16.msra.mxu0 %v360
  %1129 = vmatpush.bf16.msra.mxu0 %v358
  %1130 = vmatpush.bf16.msra.mxu0 %v356
  %1131 = vmatmul.bf16.gmra.mxu0 %v1093
  %v1132 = vpop.f32.mrf.mxu0
  %v1133 = vadd.f32 0.0, %v1132
  %v1134 = vpop.f32.mrf.mxu0
  %v1135 = vadd.f32 0.0, %v1134
  %1136 = vdwg.mxu0
  %1137 = vmatpush.bf16.msra.mxu0 %v386
  %1138 = vmatpush.bf16.msra.mxu0 %v384
  %1139 = vmatpush.bf16.msra.mxu0 %v382
  %1140 = vmatpush.bf16.msra.mxu0 %v380
  %1141 = vmatpush.bf16.msra.mxu0 %v378
  %1142 = vmatpush.bf16.msra.mxu0 %v376
  %1143 = vmatpush.bf16.msra.mxu0 %v374
  %1144 = vmatpush.bf16.msra.mxu0 %v372
  %1145 = vmatmul.bf16.gmra.mxu0 %v1094
  %v1146 = vpop.f32.mrf.mxu0
  %v1147 = vadd.f32 %v1133, %v1146
  %v1148 = vpop.f32.mrf.mxu0
  %v1149 = vadd.f32 %v1135, %v1148
  %1150 = vdwg.mxu0
  %v1151 = vpack.c.bf16 %v1121, %v1119
  %v1152 = vpack.c.bf16 %v1149, %v1147
  %1153 = vmatpush.bf16.msra.mxu0 0
  %1154 = vmatpush.bf16.msra.mxu0 0
  %1155 = vmatpush.bf16.msra.mxu0 0
  %1156 = vmatpush.bf16.msra.mxu0 0
  %1157 = vmatpush.bf16.msra.mxu0 0
  %1158 = vmatpush.bf16.msra.mxu0 0
  %1159 = vmatpush.bf16.msra.mxu0 0
  %1160 = vmatpush.bf16.msra.mxu0 %v1151
  %1161 = vmatmul.bf16.gmra.mxu0 %v489
  %v1162 = vpop.f32.mrf.mxu0
  %v1163 = vadd.f32 0.0, %v1162
  %v1164 = vpop.f32.mrf.mxu0
  %v1165 = vadd.f32 0.0, %v1164
  %1166 = vmatmul.bf16.gmra.mxu0 %v492
  %v1167 = vpop.f32.mrf.mxu0
  %v1168 = vadd.f32 0.0, %v1167
  %v1169 = vpop.f32.mrf.mxu0
  %v1170 = vadd.f32 0.0, %v1169
  %1171 = vdwg.mxu0
  %1172 = vmatpush.bf16.msra.mxu0 0
  %1173 = vmatpush.bf16.msra.mxu0 0
  %1174 = vmatpush.bf16.msra.mxu0 0
  %1175 = vmatpush.bf16.msra.mxu0 0
  %1176 = vmatpush.bf16.msra.mxu0 0
  %1177 = vmatpush.bf16.msra.mxu0 0
  %1178 = vmatpush.bf16.msra.mxu0 0
  %1179 = vmatpush.bf16.msra.mxu0 %v1152
  %1180 = vmatmul.bf16.gmra.mxu0 %v489
  %v1181 = vpop.f32.mrf.mxu0
  %v1182 = vadd.f32 0.0, %v1181
  %v1183 = vpop.f32.mrf.mxu0
  %v1184 = vadd.f32 0.0, %v1183
  %1185 = vmatmul.bf16.gmra.mxu0 %v492
  %v1186 = vpop.f32.mrf.mxu0
  %v1187 = vadd.f32 0.0, %v1186
  %v1188 = vpop.f32.mrf.mxu0
  %v1189 = vadd.f32 0.0, %v1188
  %1190 = vdwg.mxu0
  %v1191 = vmul.f32 %v236, %v1187
  %v1192 = vmul.f32 %v237, %v1168
  %v1193 = vmul.f32 %v236, %v1189
  %v1194 = vmul.f32 %v237, %v1170
  %v1195 = vadd.f32 %v1163, %v1191
  %v1196 = vadd.f32 %v1182, %v1192
  %v1197 = vadd.f32 %v1165, %v1193
  %v1198 = vadd.f32 %v1184, %v1194
  %v1199 = vmul.f32 %v1195, %v67
  %v1200 = vmul.f32 %v1196, %v68
  %v1201 = vmul.f32 %v1197, %v69
  %v1202 = vmul.f32 %v1198, %v70
  %v1203 = vmul.f32 %v1196, %v71
  %v1204 = vmul.f32 %v1195, %v72
  %v1205 = vmul.f32 %v1198, %v73
  %v1206 = vmul.f32 %v1197, %v74
  %v1207 = vadd.f32 %v1199, %v1203
  %v1208 = vadd.f32 %v1200, %v1204
  %v1209 = vadd.f32 %v1201, %v1205
  %v1210 = vadd.f32 %v1202, %v1206
  %v1211 = vpack.c.bf16 %v1209, %v1207
  %v1212 = vpack.c.bf16 %v1210, %v1208
  %v1245 = vunpack.c.l.b16 %v199
  %v1246 = vunpack.c.l.b16 %v200
  %v1247 = vunpack.c.l.b16 %v201
  %v1248 = vunpack.c.l.b16 %v202
  %v1249 = vunpack.c.l.b16 %v203
  %v1250 = vunpack.c.l.b16 %v204
  %v1251 = vunpack.c.l.b16 %v205
  %v1252 = vunpack.c.l.b16 %v206
  %v1253 = vunpack.c.l.b16 %v207
  %v1254 = vunpack.c.l.b16 %v208
  %v1255 = vunpack.c.l.b16 %v209
  %v1256 = vunpack.c.l.b16 %v210
  %v1257 = vunpack.c.l.b16 %v211
  %v1258 = vunpack.c.l.b16 %v212
  %v1259 = vunpack.c.l.b16 %v213
  %v1260 = vunpack.c.l.b16 %v214
  %v1261 = vunpack.c.l.b16 %v215
  %v1262 = vunpack.c.l.b16 %v216
  %v1263 = vunpack.c.l.b16 %v217
  %v1264 = vunpack.c.l.b16 %v218
  %v1265 = vunpack.c.l.b16 %v219
  %v1266 = vunpack.c.l.b16 %v220
  %v1267 = vunpack.c.l.b16 %v221
  %v1268 = vunpack.c.l.b16 %v222
  %v1269 = vunpack.c.l.b16 %v223
  %v1270 = vunpack.c.l.b16 %v224
  %v1271 = vunpack.c.l.b16 %v225
  %v1272 = vunpack.c.l.b16 %v226
  %v1273 = vunpack.c.l.b16 %v227
  %v1274 = vunpack.c.l.b16 %v228
  %v1275 = vunpack.c.l.b16 %v229
  %v1276 = vunpack.c.l.b16 %v230
  %v1277 = vpack.c.b16 %v1246, %v1245
  %v1278 = vpack.c.b16 %v1248, %v1247
  %v1279 = vpack.c.b16 %v1250, %v1249
  %v1280 = vpack.c.b16 %v1252, %v1251
  %v1281 = vpack.c.b16 %v1254, %v1253
  %v1282 = vpack.c.b16 %v1256, %v1255
  %v1283 = vpack.c.b16 %v1258, %v1257
  %v1284 = vpack.c.b16 %v1260, %v1259
  %v1285 = vpack.c.b16 %v1262, %v1261
  %v1286 = vpack.c.b16 %v1264, %v1263
  %v1287 = vpack.c.b16 %v1266, %v1265
  %v1288 = vpack.c.b16 %v1268, %v1267
  %v1289 = vpack.c.b16 %v1270, %v1269
  %v1290 = vpack.c.b16 %v1272, %v1271
  %v1291 = vpack.c.b16 %v1274, %v1273
  %v1292 = vpack.c.b16 %v1276, %v1275
  %1309 = vmatpush.bf16.msra.mxu0 %v1284
  %1310 = vmatpush.bf16.msra.mxu0 %v1283
  %1311 = vmatpush.bf16.msra.mxu0 %v1282
  %1312 = vmatpush.bf16.msra.mxu0 %v1281
  %1313 = vmatpush.bf16.msra.mxu0 %v1280
  %1314 = vmatpush.bf16.msra.mxu0 %v1279
  %1315 = vmatpush.bf16.msra.mxu0 %v1278
  %1316 = vmatpush.bf16.msra.mxu0 %v1277
  %1317 = vmatmul.bf16.gmra.mxu0 %v1211
  %v1318 = vpop.f32.mrf.mxu0
  %v1319 = vadd.f32 0.0, %v1318
  %v1320 = vpop.f32.mrf.mxu0
  %v1321 = vadd.f32 0.0, %v1320
  %1322 = vdwg.mxu0
  %1323 = vmatpush.bf16.msra.mxu0 %v1292
  %1324 = vmatpush.bf16.msra.mxu0 %v1291
  %1325 = vmatpush.bf16.msra.mxu0 %v1290
  %1326 = vmatpush.bf16.msra.mxu0 %v1289
  %1327 = vmatpush.bf16.msra.mxu0 %v1288
  %1328 = vmatpush.bf16.msra.mxu0 %v1287
  %1329 = vmatpush.bf16.msra.mxu0 %v1286
  %1330 = vmatpush.bf16.msra.mxu0 %v1285
  %1331 = vmatmul.bf16.gmra.mxu0 %v1212
  %v1332 = vpop.f32.mrf.mxu0
  %v1333 = vadd.f32 %v1319, %v1332
  %v1334 = vpop.f32.mrf.mxu0
  %v1335 = vadd.f32 %v1321, %v1334
  %1336 = vdwg.mxu0
  %v1337 = vadd.f32 %v674, %v1333
  %v1338 = vadd.f32 %v676, %v1335
  %v1339 = vld [vmem:[%s11] sm:$0xff]
  %v1340 = vld [vmem:[%s11 + $0x8] sm:$0xff]
  %v1341 = vld [vmem:[%s11 + $0x10] sm:$0xff]
  %v1342 = vld [vmem:[%s11 + $0x18] sm:$0xff]
  %v1343 = vld [vmem:[%s11 + $0x20] sm:$0xff]
  %v1344 = vld [vmem:[%s11 + $0x28] sm:$0xff]
  %v1345 = vld [vmem:[%s11 + $0x30] sm:$0xff]
  %v1346 = vld [vmem:[%s11 + $0x38] sm:$0xff]
  %v1347 = vld [vmem:[%s11 + $0x40] sm:$0xff]
  %v1348 = vld [vmem:[%s11 + $0x48] sm:$0xff]
  %v1349 = vld [vmem:[%s11 + $0x50] sm:$0xff]
  %v1350 = vld [vmem:[%s11 + $0x58] sm:$0xff]
  %v1351 = vld [vmem:[%s11 + $0x60] sm:$0xff]
  %v1352 = vld [vmem:[%s11 + $0x68] sm:$0xff]
  %v1353 = vld [vmem:[%s11 + $0x70] sm:$0xff]
  %v1354 = vld [vmem:[%s11 + $0x78] sm:$0xff]
  %v1355 = vld [vmem:[%s11 + $0x80] sm:$0xff]
  %v1356 = vld [vmem:[%s11 + $0x88] sm:$0xff]
  %v1357 = vld [vmem:[%s11 + $0x90] sm:$0xff]
  %v1358 = vld [vmem:[%s11 + $0x98] sm:$0xff]
  %v1359 = vld [vmem:[%s11 + $0xa0] sm:$0xff]
  %v1360 = vld [vmem:[%s11 + $0xa8] sm:$0xff]
  %v1361 = vld [vmem:[%s11 + $0xb0] sm:$0xff]
  %v1362 = vld [vmem:[%s11 + $0xb8] sm:$0xff]
  %v1363 = vld [vmem:[%s11 + $0xc0] sm:$0xff]
  %v1364 = vld [vmem:[%s11 + $0xc8] sm:$0xff]
  %v1365 = vld [vmem:[%s11 + $0xd0] sm:$0xff]
  %v1366 = vld [vmem:[%s11 + $0xd8] sm:$0xff]
  %v1367 = vld [vmem:[%s11 + $0xe0] sm:$0xff]
  %v1368 = vld [vmem:[%s11 + $0xe8] sm:$0xff]
  %v1369 = vld [vmem:[%s11 + $0xf0] sm:$0xff]
  %v1370 = vld [vmem:[%s11 + $0xf8] sm:$0xff]
  %v1371 = vld [vmem:[%s11 + $0x100] sm:$0xff]
  %v1372 = vld [vmem:[%s11 + $0x108] sm:$0xff]
  %v1373 = vld [vmem:[%s11 + $0x110] sm:$0xff]
  %v1374 = vld [vmem:[%s11 + $0x118] sm:$0xff]
  %v1375 = vld [vmem:[%s11 + $0x120] sm:$0xff]
  %v1376 = vld [vmem:[%s11 + $0x128] sm:$0xff]
  %v1377 = vld [vmem:[%s11 + $0x130] sm:$0xff]
  %v1378 = vld [vmem:[%s11 + $0x138] sm:$0xff]
  %v1379 = vld [vmem:[%s11 + $0x140] sm:$0xff]
  %v1380 = vld [vmem:[%s11 + $0x148] sm:$0xff]
  %v1381 = vld [vmem:[%s11 + $0x150] sm:$0xff]
  %v1382 = vld [vmem:[%s11 + $0x158] sm:$0xff]
  %v1383 = vld [vmem:[%s11 + $0x160] sm:$0xff]
  %v1384 = vld [vmem:[%s11 + $0x168] sm:$0xff]
  %v1385 = vld [vmem:[%s11 + $0x170] sm:$0xff]
  %v1386 = vld [vmem:[%s11 + $0x178] sm:$0xff]
  %v1387 = vrot.slane %v1337, 7
  %v1388 = vrot.slane %v1338, 7
  %vm1389 = vcmp.lt.s32.totalorder %v239, 1
  %v1390 = vsel %vm1389, %v1387, %v1388
  %v1391 = vsel %vm1389, %v1388, %v1387
  %v1392 = vmul.f32 %v1391, %v245
  %v1393 = vmul.f32 %v1390, %v246
  %v1394 = vrot.slane %v1337, 1
  %v1395 = vrot.slane %v1338, 1
  %vm1396 = vcmp.lt.s32.totalorder %v239, 7
  %v1397 = vsel %vm1396, %v1394, %v1395
  %v1398 = vsel %vm1396, %v1395, %v1394
  %v1399 = vmul.f32 %v1397, %v251
  %v1400 = vmul.f32 %v1398, %v252
  %v1401 = vpack.c.bf16 %v1393, %v1392
  %v1402 = vpack.c.bf16 %v1338, %v1337
  %v1419 = vunpack.c.l.b16 %v1355
  %v1420 = vunpack.c.h.b16 %v1355
  %v1421 = vunpack.c.l.b16 %v1356
  %v1422 = vunpack.c.h.b16 %v1356
  %v1423 = vunpack.c.l.b16 %v1357
  %v1424 = vunpack.c.h.b16 %v1357
  %v1425 = vunpack.c.l.b16 %v1358
  %v1426 = vunpack.c.h.b16 %v1358
  %v1427 = vunpack.c.l.b16 %v1359
  %v1428 = vunpack.c.h.b16 %v1359
  %v1429 = vunpack.c.l.b16 %v1360
  %v1430 = vunpack.c.h.b16 %v1360
  %v1431 = vunpack.c.l.b16 %v1361
  %v1432 = vunpack.c.h.b16 %v1361
  %v1433 = vunpack.c.l.b16 %v1362
  %v1434 = vunpack.c.h.b16 %v1362
  %v1435 = vunpack.c.l.b16 %v1363
  %v1436 = vunpack.c.h.b16 %v1363
  %v1437 = vunpack.c.l.b16 %v1364
  %v1438 = vunpack.c.h.b16 %v1364
  %v1439 = vunpack.c.l.b16 %v1365
  %v1440 = vunpack.c.h.b16 %v1365
  %v1441 = vunpack.c.l.b16 %v1366
  %v1442 = vunpack.c.h.b16 %v1366
  %v1443 = vunpack.c.l.b16 %v1367
  %v1444 = vunpack.c.h.b16 %v1367
  %v1445 = vunpack.c.l.b16 %v1368
  %v1446 = vunpack.c.h.b16 %v1368
  %v1447 = vunpack.c.l.b16 %v1369
  %v1448 = vunpack.c.h.b16 %v1369
  %v1449 = vunpack.c.l.b16 %v1370
  %v1450 = vunpack.c.h.b16 %v1370
  %v1451 = vpack.c.b16 %v1421, %v1419
  %v1452 = vpack.c.b16 %v1422, %v1420
  %v1453 = vpack.c.b16 %v1425, %v1423
  %v1454 = vpack.c.b16 %v1426, %v1424
  %v1455 = vpack.c.b16 %v1429, %v1427
  %v1456 = vpack.c.b16 %v1430, %v1428
  %v1457 = vpack.c.b16 %v1433, %v1431
  %v1458 = vpack.c.b16 %v1434, %v1432
  %v1459 = vpack.c.b16 %v1437, %v1435
  %v1460 = vpack.c.b16 %v1438, %v1436
  %v1461 = vpack.c.b16 %v1441, %v1439
  %v1462 = vpack.c.b16 %v1442, %v1440
  %v1463 = vpack.c.b16 %v1445, %v1443
  %v1464 = vpack.c.b16 %v1446, %v1444
  %v1465 = vpack.c.b16 %v1449, %v1447
  %v1466 = vpack.c.b16 %v1450, %v1448
  %1483 = vmatpush.bf16.msra.mxu0 %v1465
  %1484 = vmatpush.bf16.msra.mxu0 %v1463
  %1485 = vmatpush.bf16.msra.mxu0 %v1461
  %1486 = vmatpush.bf16.msra.mxu0 %v1459
  %1487 = vmatpush.bf16.msra.mxu0 %v1457
  %1488 = vmatpush.bf16.msra.mxu0 %v1455
  %1489 = vmatpush.bf16.msra.mxu0 %v1453
  %1490 = vmatpush.bf16.msra.mxu0 %v1451
  %1491 = vmatmul.bf16.gmra.mxu0 %v1402
  %v1492 = vpop.f32.mrf.mxu0
  %v1493 = vadd.f32 0.0, %v1492
  %v1494 = vpop.f32.mrf.mxu0
  %v1495 = vadd.f32 0.0, %v1494
  %1496 = vdwg.mxu0
  %1497 = vmatpush.bf16.msra.mxu0 %v1466
  %1498 = vmatpush.bf16.msra.mxu0 %v1464
  %1499 = vmatpush.bf16.msra.mxu0 %v1462
  %1500 = vmatpush.bf16.msra.mxu0 %v1460
  %1501 = vmatpush.bf16.msra.mxu0 %v1458
  %1502 = vmatpush.bf16.msra.mxu0 %v1456
  %1503 = vmatpush.bf16.msra.mxu0 %v1454
  %1504 = vmatpush.bf16.msra.mxu0 %v1452
  %1505 = vmatmul.bf16.gmra.mxu0 %v1402
  %v1506 = vpop.f32.mrf.mxu0
  %v1507 = vadd.f32 0.0, %v1506
  %v1508 = vpop.f32.mrf.mxu0
  %v1509 = vadd.f32 0.0, %v1508
  %1510 = vdwg.mxu0
  %v1527 = vunpack.c.l.b16 %v1339
  %v1528 = vunpack.c.h.b16 %v1339
  %v1529 = vunpack.c.l.b16 %v1340
  %v1530 = vunpack.c.h.b16 %v1340
  %v1531 = vunpack.c.l.b16 %v1341
  %v1532 = vunpack.c.h.b16 %v1341
  %v1533 = vunpack.c.l.b16 %v1342
  %v1534 = vunpack.c.h.b16 %v1342
  %v1535 = vunpack.c.l.b16 %v1343
  %v1536 = vunpack.c.h.b16 %v1343
  %v1537 = vunpack.c.l.b16 %v1344
  %v1538 = vunpack.c.h.b16 %v1344
  %v1539 = vunpack.c.l.b16 %v1345
  %v1540 = vunpack.c.h.b16 %v1345
  %v1541 = vunpack.c.l.b16 %v1346
  %v1542 = vunpack.c.h.b16 %v1346
  %v1543 = vunpack.c.l.b16 %v1347
  %v1544 = vunpack.c.h.b16 %v1347
  %v1545 = vunpack.c.l.b16 %v1348
  %v1546 = vunpack.c.h.b16 %v1348
  %v1547 = vunpack.c.l.b16 %v1349
  %v1548 = vunpack.c.h.b16 %v1349
  %v1549 = vunpack.c.l.b16 %v1350
  %v1550 = vunpack.c.h.b16 %v1350
  %v1551 = vunpack.c.l.b16 %v1351
  %v1552 = vunpack.c.h.b16 %v1351
  %v1553 = vunpack.c.l.b16 %v1352
  %v1554 = vunpack.c.h.b16 %v1352
  %v1555 = vunpack.c.l.b16 %v1353
  %v1556 = vunpack.c.h.b16 %v1353
  %v1557 = vunpack.c.l.b16 %v1354
  %v1558 = vunpack.c.h.b16 %v1354
  %v1559 = vpack.c.b16 %v1529, %v1527
  %v1560 = vpack.c.b16 %v1530, %v1528
  %v1561 = vpack.c.b16 %v1533, %v1531
  %v1562 = vpack.c.b16 %v1534, %v1532
  %v1563 = vpack.c.b16 %v1537, %v1535
  %v1564 = vpack.c.b16 %v1538, %v1536
  %v1565 = vpack.c.b16 %v1541, %v1539
  %v1566 = vpack.c.b16 %v1542, %v1540
  %v1567 = vpack.c.b16 %v1545, %v1543
  %v1568 = vpack.c.b16 %v1546, %v1544
  %v1569 = vpack.c.b16 %v1549, %v1547
  %v1570 = vpack.c.b16 %v1550, %v1548
  %v1571 = vpack.c.b16 %v1553, %v1551
  %v1572 = vpack.c.b16 %v1554, %v1552
  %v1573 = vpack.c.b16 %v1557, %v1555
  %v1574 = vpack.c.b16 %v1558, %v1556
  %1591 = vmatpush.bf16.msra.mxu0 %v1573
  %1592 = vmatpush.bf16.msra.mxu0 %v1571
  %1593 = vmatpush.bf16.msra.mxu0 %v1569
  %1594 = vmatpush.bf16.msra.mxu0 %v1567
  %1595 = vmatpush.bf16.msra.mxu0 %v1565
  %1596 = vmatpush.bf16.msra.mxu0 %v1563
  %1597 = vmatpush.bf16.msra.mxu0 %v1561
  %1598 = vmatpush.bf16.msra.mxu0 %v1559
  %1599 = vmatmul.bf16.gmra.mxu0 %v1401
  %v1600 = vpop.f32.mrf.mxu0
  %v1601 = vadd.f32 %v1493, %v1600
  %v1602 = vpop.f32.mrf.mxu0
  %v1603 = vadd.f32 %v1495, %v1602
  %1604 = vdwg.mxu0
  %1605 = vmatpush.bf16.msra.mxu0 %v1574
  %1606 = vmatpush.bf16.msra.mxu0 %v1572
  %1607 = vmatpush.bf16.msra.mxu0 %v1570
  %1608 = vmatpush.bf16.msra.mxu0 %v1568
  %1609 = vmatpush.bf16.msra.mxu0 %v1566
  %1610 = vmatpush.bf16.msra.mxu0 %v1564
  %1611 = vmatpush.bf16.msra.mxu0 %v1562
  %1612 = vmatpush.bf16.msra.mxu0 %v1560
  %1613 = vmatmul.bf16.gmra.mxu0 %v1401
  %v1614 = vpop.f32.mrf.mxu0
  %v1615 = vadd.f32 %v1507, %v1614
  %v1616 = vpop.f32.mrf.mxu0
  %v1617 = vadd.f32 %v1509, %v1616
  %1618 = vdwg.mxu0
  %v1619 = vpack.c.bf16 %v1400, %v1399
  %v1636 = vunpack.c.l.b16 %v1371
  %v1637 = vunpack.c.h.b16 %v1371
  %v1638 = vunpack.c.l.b16 %v1372
  %v1639 = vunpack.c.h.b16 %v1372
  %v1640 = vunpack.c.l.b16 %v1373
  %v1641 = vunpack.c.h.b16 %v1373
  %v1642 = vunpack.c.l.b16 %v1374
  %v1643 = vunpack.c.h.b16 %v1374
  %v1644 = vunpack.c.l.b16 %v1375
  %v1645 = vunpack.c.h.b16 %v1375
  %v1646 = vunpack.c.l.b16 %v1376
  %v1647 = vunpack.c.h.b16 %v1376
  %v1648 = vunpack.c.l.b16 %v1377
  %v1649 = vunpack.c.h.b16 %v1377
  %v1650 = vunpack.c.l.b16 %v1378
  %v1651 = vunpack.c.h.b16 %v1378
  %v1652 = vunpack.c.l.b16 %v1379
  %v1653 = vunpack.c.h.b16 %v1379
  %v1654 = vunpack.c.l.b16 %v1380
  %v1655 = vunpack.c.h.b16 %v1380
  %v1656 = vunpack.c.l.b16 %v1381
  %v1657 = vunpack.c.h.b16 %v1381
  %v1658 = vunpack.c.l.b16 %v1382
  %v1659 = vunpack.c.h.b16 %v1382
  %v1660 = vunpack.c.l.b16 %v1383
  %v1661 = vunpack.c.h.b16 %v1383
  %v1662 = vunpack.c.l.b16 %v1384
  %v1663 = vunpack.c.h.b16 %v1384
  %v1664 = vunpack.c.l.b16 %v1385
  %v1665 = vunpack.c.h.b16 %v1385
  %v1666 = vunpack.c.l.b16 %v1386
  %v1667 = vunpack.c.h.b16 %v1386
  %v1668 = vpack.c.b16 %v1638, %v1636
  %v1669 = vpack.c.b16 %v1639, %v1637
  %v1670 = vpack.c.b16 %v1642, %v1640
  %v1671 = vpack.c.b16 %v1643, %v1641
  %v1672 = vpack.c.b16 %v1646, %v1644
  %v1673 = vpack.c.b16 %v1647, %v1645
  %v1674 = vpack.c.b16 %v1650, %v1648
  %v1675 = vpack.c.b16 %v1651, %v1649
  %v1676 = vpack.c.b16 %v1654, %v1652
  %v1677 = vpack.c.b16 %v1655, %v1653
  %v1678 = vpack.c.b16 %v1658, %v1656
  %v1679 = vpack.c.b16 %v1659, %v1657
  %v1680 = vpack.c.b16 %v1662, %v1660
  %v1681 = vpack.c.b16 %v1663, %v1661
  %v1682 = vpack.c.b16 %v1666, %v1664
  %v1683 = vpack.c.b16 %v1667, %v1665
  %1700 = vmatpush.bf16.msra.mxu0 %v1682
  %1701 = vmatpush.bf16.msra.mxu0 %v1680
  %1702 = vmatpush.bf16.msra.mxu0 %v1678
  %1703 = vmatpush.bf16.msra.mxu0 %v1676
  %1704 = vmatpush.bf16.msra.mxu0 %v1674
  %1705 = vmatpush.bf16.msra.mxu0 %v1672
  %1706 = vmatpush.bf16.msra.mxu0 %v1670
  %1707 = vmatpush.bf16.msra.mxu0 %v1668
  %1708 = vmatmul.bf16.gmra.mxu0 %v1619
  %v1709 = vpop.f32.mrf.mxu0
  %v1710 = vadd.f32 0.0, %v1709
  %v1711 = vpop.f32.mrf.mxu0
  %v1712 = vadd.f32 0.0, %v1711
  %1713 = vdwg.mxu0
  %1714 = vmatpush.bf16.msra.mxu0 %v1683
  %1715 = vmatpush.bf16.msra.mxu0 %v1681
  %1716 = vmatpush.bf16.msra.mxu0 %v1679
  %1717 = vmatpush.bf16.msra.mxu0 %v1677
  %1718 = vmatpush.bf16.msra.mxu0 %v1675
  %1719 = vmatpush.bf16.msra.mxu0 %v1673
  %1720 = vmatpush.bf16.msra.mxu0 %v1671
  %1721 = vmatpush.bf16.msra.mxu0 %v1669
  %1722 = vmatmul.bf16.gmra.mxu0 %v1619
  %v1723 = vpop.f32.mrf.mxu0
  %v1724 = vadd.f32 0.0, %v1723
  %v1725 = vpop.f32.mrf.mxu0
  %v1726 = vadd.f32 0.0, %v1725
  %1727 = vdwg.mxu0
  %v1728 = vadd.f32 %v1601, %v1710
  %v1729 = vadd.f32 %v1615, %v1724
  %v1730 = vadd.f32 %v1603, %v1712
  %v1731 = vadd.f32 %v1617, %v1726
  %v1732 = vld [vmem:[%s12] sm:$0x3]
  %v1734 = vperm.slane %v1732, 0
  %v1735 = vperm.slane %v1732, 1
  %v1738 = vadd.f32 %v1728, %v1734
  %v1739 = vadd.f32 %v1729, %v1735
  %v1740 = vadd.f32 %v1730, %v1734
  %v1741 = vadd.f32 %v1731, %v1735
  %v1742 = vmax.f32 %v1738, 0.0
  %v1743 = vmax.f32 %v1739, 0.0
  %v1744 = vmax.f32 %v1740, 0.0
  %v1745 = vmax.f32 %v1741, 0.0
  %v1746 = vld [vmem:[%s13] sm:$0xf]
  %v1747 = vld [vmem:[%s13 + $0x4] sm:$0xf]
  %v1748 = vld [vmem:[%s13 + $0x8] sm:$0xf]
  %v1749 = vld [vmem:[%s13 + $0xc] sm:$0xf]
  %v1750 = vld [vmem:[%s13 + $0x10] sm:$0xf]
  %v1751 = vld [vmem:[%s13 + $0x14] sm:$0xf]
  %v1752 = vld [vmem:[%s13 + $0x18] sm:$0xf]
  %v1753 = vld [vmem:[%s13 + $0x1c] sm:$0xf]
  %v1754 = vld [vmem:[%s13 + $0x20] sm:$0xf]
  %v1755 = vld [vmem:[%s13 + $0x24] sm:$0xf]
  %v1756 = vld [vmem:[%s13 + $0x28] sm:$0xf]
  %v1757 = vld [vmem:[%s13 + $0x2c] sm:$0xf]
  %v1758 = vld [vmem:[%s13 + $0x30] sm:$0xf]
  %v1759 = vld [vmem:[%s13 + $0x34] sm:$0xf]
  %v1760 = vld [vmem:[%s13 + $0x38] sm:$0xf]
  %v1761 = vld [vmem:[%s13 + $0x3c] sm:$0xf]
  %v1762 = vld [vmem:[%s13 + $0x40] sm:$0xf]
  %v1763 = vld [vmem:[%s13 + $0x44] sm:$0xf]
  %v1764 = vld [vmem:[%s13 + $0x48] sm:$0xf]
  %v1765 = vld [vmem:[%s13 + $0x4c] sm:$0xf]
  %v1766 = vld [vmem:[%s13 + $0x50] sm:$0xf]
  %v1767 = vld [vmem:[%s13 + $0x54] sm:$0xf]
  %v1768 = vld [vmem:[%s13 + $0x58] sm:$0xf]
  %v1769 = vld [vmem:[%s13 + $0x5c] sm:$0xf]
  %v1770 = vld [vmem:[%s13 + $0x60] sm:$0xf]
  %v1771 = vld [vmem:[%s13 + $0x64] sm:$0xf]
  %v1772 = vld [vmem:[%s13 + $0x68] sm:$0xf]
  %v1773 = vld [vmem:[%s13 + $0x6c] sm:$0xf]
  %v1774 = vld [vmem:[%s13 + $0x70] sm:$0xf]
  %v1775 = vld [vmem:[%s13 + $0x74] sm:$0xf]
  %v1776 = vld [vmem:[%s13 + $0x78] sm:$0xf]
  %v1777 = vld [vmem:[%s13 + $0x7c] sm:$0xf]
  %v1778 = vld [vmem:[%s13 + $0x80] sm:$0xf]
  %v1779 = vld [vmem:[%s13 + $0x84] sm:$0xf]
  %v1780 = vld [vmem:[%s13 + $0x88] sm:$0xf]
  %v1781 = vld [vmem:[%s13 + $0x8c] sm:$0xf]
  %v1782 = vld [vmem:[%s13 + $0x90] sm:$0xf]
  %v1783 = vld [vmem:[%s13 + $0x94] sm:$0xf]
  %v1784 = vld [vmem:[%s13 + $0x98] sm:$0xf]
  %v1785 = vld [vmem:[%s13 + $0x9c] sm:$0xf]
  %v1786 = vld [vmem:[%s13 + $0xa0] sm:$0xf]
  %v1787 = vld [vmem:[%s13 + $0xa4] sm:$0xf]
  %v1788 = vld [vmem:[%s13 + $0xa8] sm:$0xf]
  %v1789 = vld [vmem:[%s13 + $0xac] sm:$0xf]
  %v1790 = vld [vmem:[%s13 + $0xb0] sm:$0xf]
  %v1791 = vld [vmem:[%s13 + $0xb4] sm:$0xf]
  %v1792 = vld [vmem:[%s13 + $0xb8] sm:$0xf]
  %v1793 = vld [vmem:[%s13 + $0xbc] sm:$0xf]
  %v1794 = vld [vmem:[%s13 + $0xc0] sm:$0xf]
  %v1795 = vld [vmem:[%s13 + $0xc4] sm:$0xf]
  %v1796 = vld [vmem:[%s13 + $0xc8] sm:$0xf]
  %v1797 = vld [vmem:[%s13 + $0xcc] sm:$0xf]
  %v1798 = vld [vmem:[%s13 + $0xd0] sm:$0xf]
  %v1799 = vld [vmem:[%s13 + $0xd4] sm:$0xf]
  %v1800 = vld [vmem:[%s13 + $0xd8] sm:$0xf]
  %v1801 = vld [vmem:[%s13 + $0xdc] sm:$0xf]
  %v1802 = vld [vmem:[%s13 + $0xe0] sm:$0xf]
  %v1803 = vld [vmem:[%s13 + $0xe4] sm:$0xf]
  %v1804 = vld [vmem:[%s13 + $0xe8] sm:$0xf]
  %v1805 = vld [vmem:[%s13 + $0xec] sm:$0xf]
  %v1806 = vld [vmem:[%s13 + $0xf0] sm:$0xf]
  %v1807 = vld [vmem:[%s13 + $0xf4] sm:$0xf]
  %v1808 = vld [vmem:[%s13 + $0xf8] sm:$0xf]
  %v1809 = vld [vmem:[%s13 + $0xfc] sm:$0xf]
  %v1810 = vld [vmem:[%s13 + $0x100] sm:$0xf]
  %v1811 = vld [vmem:[%s13 + $0x104] sm:$0xf]
  %v1812 = vld [vmem:[%s13 + $0x108] sm:$0xf]
  %v1813 = vld [vmem:[%s13 + $0x10c] sm:$0xf]
  %v1814 = vld [vmem:[%s13 + $0x110] sm:$0xf]
  %v1815 = vld [vmem:[%s13 + $0x114] sm:$0xf]
  %v1816 = vld [vmem:[%s13 + $0x118] sm:$0xf]
  %v1817 = vld [vmem:[%s13 + $0x11c] sm:$0xf]
  %v1818 = vld [vmem:[%s13 + $0x120] sm:$0xf]
  %v1819 = vld [vmem:[%s13 + $0x124] sm:$0xf]
  %v1820 = vld [vmem:[%s13 + $0x128] sm:$0xf]
  %v1821 = vld [vmem:[%s13 + $0x12c] sm:$0xf]
  %v1822 = vld [vmem:[%s13 + $0x130] sm:$0xf]
  %v1823 = vld [vmem:[%s13 + $0x134] sm:$0xf]
  %v1824 = vld [vmem:[%s13 + $0x138] sm:$0xf]
  %v1825 = vld [vmem:[%s13 + $0x13c] sm:$0xf]
  %v1826 = vld [vmem:[%s13 + $0x140] sm:$0xf]
  %v1827 = vld [vmem:[%s13 + $0x144] sm:$0xf]
  %v1828 = vld [vmem:[%s13 + $0x148] sm:$0xf]
  %v1829 = vld [vmem:[%s13 + $0x14c] sm:$0xf]
  %v1830 = vld [vmem:[%s13 + $0x150] sm:$0xf]
  %v1831 = vld [vmem:[%s13 + $0x154] sm:$0xf]
  %v1832 = vld [vmem:[%s13 + $0x158] sm:$0xf]
  %v1833 = vld [vmem:[%s13 + $0x15c] sm:$0xf]
  %v1834 = vld [vmem:[%s13 + $0x160] sm:$0xf]
  %v1835 = vld [vmem:[%s13 + $0x164] sm:$0xf]
  %v1836 = vld [vmem:[%s13 + $0x168] sm:$0xf]
  %v1837 = vld [vmem:[%s13 + $0x16c] sm:$0xf]
  %v1838 = vld [vmem:[%s13 + $0x170] sm:$0xf]
  %v1839 = vld [vmem:[%s13 + $0x174] sm:$0xf]
  %v1840 = vld [vmem:[%s13 + $0x178] sm:$0xf]
  %v1841 = vld [vmem:[%s13 + $0x17c] sm:$0xf]
  %v1842 = vrot.slane %v1742, 7
  %v1843 = vrot.slane %v1743, 7
  %v1844 = vrot.slane %v1744, 7
  %v1845 = vrot.slane %v1745, 7
  %v1846 = vsel %vm1389, %v1842, %v1844
  %v1847 = vsel %vm1389, %v1843, %v1845
  %v1848 = vsel %vm1389, %v1844, %v1842
  %v1849 = vsel %vm1389, %v1845, %v1843
  %v1850 = vmul.f32 %v1848, %v245
  %v1851 = vmul.f32 %v1849, %v245
  %v1852 = vmul.f32 %v1846, %v246
  %v1853 = vmul.f32 %v1847, %v246
  %v1854 = vrot.slane %v1742, 1
  %v1855 = vrot.slane %v1743, 1
  %v1856 = vrot.slane %v1744, 1
  %v1857 = vrot.slane %v1745, 1
  %v1858 = vsel %vm1396, %v1854, %v1856
  %v1859 = vsel %vm1396, %v1855, %v1857
  %v1860 = vsel %vm1396, %v1856, %v1854
  %v1861 = vsel %vm1396, %v1857, %v1855
  %v1862 = vmul.f32 %v1858, %v251
  %v1863 = vmul.f32 %v1859, %v251
  %v1864 = vmul.f32 %v1860, %v252
  %v1865 = vmul.f32 %v1861, %v252
  %v1866 = vpack.c.bf16 %v1852, %v1850
  %v1867 = vpack.c.bf16 %v1853, %v1851
  %v1868 = vpack.c.bf16 %v1744, %v1742
  %v1869 = vpack.c.bf16 %v1745, %v1743
  %v1902 = vunpack.c.l.b16 %v1778
  %v1903 = vunpack.c.l.b16 %v1779
  %v1904 = vunpack.c.l.b16 %v1780
  %v1905 = vunpack.c.l.b16 %v1781
  %v1906 = vunpack.c.l.b16 %v1782
  %v1907 = vunpack.c.l.b16 %v1783
  %v1908 = vunpack.c.l.b16 %v1784
  %v1909 = vunpack.c.l.b16 %v1785
  %v1910 = vunpack.c.l.b16 %v1786
  %v1911 = vunpack.c.l.b16 %v1787
  %v1912 = vunpack.c.l.b16 %v1788
  %v1913 = vunpack.c.l.b16 %v1789
  %v1914 = vunpack.c.l.b16 %v1790
  %v1915 = vunpack.c.l.b16 %v1791
  %v1916 = vunpack.c.l.b16 %v1792
  %v1917 = vunpack.c.l.b16 %v1793
  %v1918 = vunpack.c.l.b16 %v1794
  %v1919 = vunpack.c.l.b16 %v1795
  %v1920 = vunpack.c.l.b16 %v1796
  %v1921 = vunpack.c.l.b16 %v1797
  %v1922 = vunpack.c.l.b16 %v1798
  %v1923 = vunpack.c.l.b16 %v1799
  %v1924 = vunpack.c.l.b16 %v1800
  %v1925 = vunpack.c.l.b16 %v1801
  %v1926 = vunpack.c.l.b16 %v1802
  %v1927 = vunpack.c.l.b16 %v1803
  %v1928 = vunpack.c.l.b16 %v1804
  %v1929 = vunpack.c.l.b16 %v1805
  %v1930 = vunpack.c.l.b16 %v1806
  %v1931 = vunpack.c.l.b16 %v1807
  %v1932 = vunpack.c.l.b16 %v1808
  %v1933 = vunpack.c.l.b16 %v1809
  %v1934 = vpack.c.b16 %v1903, %v1902
  %v1935 = vpack.c.b16 %v1905, %v1904
  %v1936 = vpack.c.b16 %v1907, %v1906
  %v1937 = vpack.c.b16 %v1909, %v1908
  %v1938 = vpack.c.b16 %v1911, %v1910
  %v1939 = vpack.c.b16 %v1913, %v1912
  %v1940 = vpack.c.b16 %v1915, %v1914
  %v1941 = vpack.c.b16 %v1917, %v1916
  %v1942 = vpack.c.b16 %v1919, %v1918
  %v1943 = vpack.c.b16 %v1921, %v1920
  %v1944 = vpack.c.b16 %v1923, %v1922
  %v1945 = vpack.c.b16 %v1925, %v1924
  %v1946 = vpack.c.b16 %v1927, %v1926
  %v1947 = vpack.c.b16 %v1929, %v1928
  %v1948 = vpack.c.b16 %v1931, %v1930
  %v1949 = vpack.c.b16 %v1933, %v1932
  %1966 = vmatpush.bf16.msra.mxu0 %v1941
  %1967 = vmatpush.bf16.msra.mxu0 %v1940
  %1968 = vmatpush.bf16.msra.mxu0 %v1939
  %1969 = vmatpush.bf16.msra.mxu0 %v1938
  %1970 = vmatpush.bf16.msra.mxu0 %v1937
  %1971 = vmatpush.bf16.msra.mxu0 %v1936
  %1972 = vmatpush.bf16.msra.mxu0 %v1935
  %1973 = vmatpush.bf16.msra.mxu0 %v1934
  %1974 = vmatmul.bf16.gmra.mxu0 %v1868
  %v1975 = vpop.f32.mrf.mxu0
  %v1976 = vadd.f32 0.0, %v1975
  %v1977 = vpop.f32.mrf.mxu0
  %v1978 = vadd.f32 0.0, %v1977
  %1979 = vdwg.mxu0
  %1980 = vmatpush.bf16.msra.mxu0 %v1949
  %1981 = vmatpush.bf16.msra.mxu0 %v1948
  %1982 = vmatpush.bf16.msra.mxu0 %v1947
  %1983 = vmatpush.bf16.msra.mxu0 %v1946
  %1984 = vmatpush.bf16.msra.mxu0 %v1945
  %1985 = vmatpush.bf16.msra.mxu0 %v1944
  %1986 = vmatpush.bf16.msra.mxu0 %v1943
  %1987 = vmatpush.bf16.msra.mxu0 %v1942
  %1988 = vmatmul.bf16.gmra.mxu0 %v1869
  %v1989 = vpop.f32.mrf.mxu0
  %v1990 = vadd.f32 %v1976, %v1989
  %v1991 = vpop.f32.mrf.mxu0
  %v1992 = vadd.f32 %v1978, %v1991
  %1993 = vdwg.mxu0
  %v2026 = vunpack.c.l.b16 %v1746
  %v2027 = vunpack.c.l.b16 %v1747
  %v2028 = vunpack.c.l.b16 %v1748
  %v2029 = vunpack.c.l.b16 %v1749
  %v2030 = vunpack.c.l.b16 %v1750
  %v2031 = vunpack.c.l.b16 %v1751
  %v2032 = vunpack.c.l.b16 %v1752
  %v2033 = vunpack.c.l.b16 %v1753
  %v2034 = vunpack.c.l.b16 %v1754
  %v2035 = vunpack.c.l.b16 %v1755
  %v2036 = vunpack.c.l.b16 %v1756
  %v2037 = vunpack.c.l.b16 %v1757
  %v2038 = vunpack.c.l.b16 %v1758
  %v2039 = vunpack.c.l.b16 %v1759
  %v2040 = vunpack.c.l.b16 %v1760
  %v2041 = vunpack.c.l.b16 %v1761
  %v2042 = vunpack.c.l.b16 %v1762
  %v2043 = vunpack.c.l.b16 %v1763
  %v2044 = vunpack.c.l.b16 %v1764
  %v2045 = vunpack.c.l.b16 %v1765
  %v2046 = vunpack.c.l.b16 %v1766
  %v2047 = vunpack.c.l.b16 %v1767
  %v2048 = vunpack.c.l.b16 %v1768
  %v2049 = vunpack.c.l.b16 %v1769
  %v2050 = vunpack.c.l.b16 %v1770
  %v2051 = vunpack.c.l.b16 %v1771
  %v2052 = vunpack.c.l.b16 %v1772
  %v2053 = vunpack.c.l.b16 %v1773
  %v2054 = vunpack.c.l.b16 %v1774
  %v2055 = vunpack.c.l.b16 %v1775
  %v2056 = vunpack.c.l.b16 %v1776
  %v2057 = vunpack.c.l.b16 %v1777
  %v2058 = vpack.c.b16 %v2027, %v2026
  %v2059 = vpack.c.b16 %v2029, %v2028
  %v2060 = vpack.c.b16 %v2031, %v2030
  %v2061 = vpack.c.b16 %v2033, %v2032
  %v2062 = vpack.c.b16 %v2035, %v2034
  %v2063 = vpack.c.b16 %v2037, %v2036
  %v2064 = vpack.c.b16 %v2039, %v2038
  %v2065 = vpack.c.b16 %v2041, %v2040
  %v2066 = vpack.c.b16 %v2043, %v2042
  %v2067 = vpack.c.b16 %v2045, %v2044
  %v2068 = vpack.c.b16 %v2047, %v2046
  %v2069 = vpack.c.b16 %v2049, %v2048
  %v2070 = vpack.c.b16 %v2051, %v2050
  %v2071 = vpack.c.b16 %v2053, %v2052
  %v2072 = vpack.c.b16 %v2055, %v2054
  %v2073 = vpack.c.b16 %v2057, %v2056
  %2090 = vmatpush.bf16.msra.mxu0 %v2065
  %2091 = vmatpush.bf16.msra.mxu0 %v2064
  %2092 = vmatpush.bf16.msra.mxu0 %v2063
  %2093 = vmatpush.bf16.msra.mxu0 %v2062
  %2094 = vmatpush.bf16.msra.mxu0 %v2061
  %2095 = vmatpush.bf16.msra.mxu0 %v2060
  %2096 = vmatpush.bf16.msra.mxu0 %v2059
  %2097 = vmatpush.bf16.msra.mxu0 %v2058
  %2098 = vmatmul.bf16.gmra.mxu0 %v1866
  %v2099 = vpop.f32.mrf.mxu0
  %v2100 = vadd.f32 %v1990, %v2099
  %v2101 = vpop.f32.mrf.mxu0
  %v2102 = vadd.f32 %v1992, %v2101
  %2103 = vdwg.mxu0
  %2104 = vmatpush.bf16.msra.mxu0 %v2073
  %2105 = vmatpush.bf16.msra.mxu0 %v2072
  %2106 = vmatpush.bf16.msra.mxu0 %v2071
  %2107 = vmatpush.bf16.msra.mxu0 %v2070
  %2108 = vmatpush.bf16.msra.mxu0 %v2069
  %2109 = vmatpush.bf16.msra.mxu0 %v2068
  %2110 = vmatpush.bf16.msra.mxu0 %v2067
  %2111 = vmatpush.bf16.msra.mxu0 %v2066
  %2112 = vmatmul.bf16.gmra.mxu0 %v1867
  %v2113 = vpop.f32.mrf.mxu0
  %v2114 = vadd.f32 %v2100, %v2113
  %v2115 = vpop.f32.mrf.mxu0
  %v2116 = vadd.f32 %v2102, %v2115
  %2117 = vdwg.mxu0
  %v2118 = vpack.c.bf16 %v1864, %v1862
  %v2119 = vpack.c.bf16 %v1865, %v1863
  %v2152 = vunpack.c.l.b16 %v1810
  %v2153 = vunpack.c.l.b16 %v1811
  %v2154 = vunpack.c.l.b16 %v1812
  %v2155 = vunpack.c.l.b16 %v1813
  %v2156 = vunpack.c.l.b16 %v1814
  %v2157 = vunpack.c.l.b16 %v1815
  %v2158 = vunpack.c.l.b16 %v1816
  %v2159 = vunpack.c.l.b16 %v1817
  %v2160 = vunpack.c.l.b16 %v1818
  %v2161 = vunpack.c.l.b16 %v1819
  %v2162 = vunpack.c.l.b16 %v1820
  %v2163 = vunpack.c.l.b16 %v1821
  %v2164 = vunpack.c.l.b16 %v1822
  %v2165 = vunpack.c.l.b16 %v1823
  %v2166 = vunpack.c.l.b16 %v1824
  %v2167 = vunpack.c.l.b16 %v1825
  %v2168 = vunpack.c.l.b16 %v1826
  %v2169 = vunpack.c.l.b16 %v1827
  %v2170 = vunpack.c.l.b16 %v1828
  %v2171 = vunpack.c.l.b16 %v1829
  %v2172 = vunpack.c.l.b16 %v1830
  %v2173 = vunpack.c.l.b16 %v1831
  %v2174 = vunpack.c.l.b16 %v1832
  %v2175 = vunpack.c.l.b16 %v1833
  %v2176 = vunpack.c.l.b16 %v1834
  %v2177 = vunpack.c.l.b16 %v1835
  %v2178 = vunpack.c.l.b16 %v1836
  %v2179 = vunpack.c.l.b16 %v1837
  %v2180 = vunpack.c.l.b16 %v1838
  %v2181 = vunpack.c.l.b16 %v1839
  %v2182 = vunpack.c.l.b16 %v1840
  %v2183 = vunpack.c.l.b16 %v1841
  %v2184 = vpack.c.b16 %v2153, %v2152
  %v2185 = vpack.c.b16 %v2155, %v2154
  %v2186 = vpack.c.b16 %v2157, %v2156
  %v2187 = vpack.c.b16 %v2159, %v2158
  %v2188 = vpack.c.b16 %v2161, %v2160
  %v2189 = vpack.c.b16 %v2163, %v2162
  %v2190 = vpack.c.b16 %v2165, %v2164
  %v2191 = vpack.c.b16 %v2167, %v2166
  %v2192 = vpack.c.b16 %v2169, %v2168
  %v2193 = vpack.c.b16 %v2171, %v2170
  %v2194 = vpack.c.b16 %v2173, %v2172
  %v2195 = vpack.c.b16 %v2175, %v2174
  %v2196 = vpack.c.b16 %v2177, %v2176
  %v2197 = vpack.c.b16 %v2179, %v2178
  %v2198 = vpack.c.b16 %v2181, %v2180
  %v2199 = vpack.c.b16 %v2183, %v2182
  %2216 = vmatpush.bf16.msra.mxu0 %v2191
  %2217 = vmatpush.bf16.msra.mxu0 %v2190
  %2218 = vmatpush.bf16.msra.mxu0 %v2189
  %2219 = vmatpush.bf16.msra.mxu0 %v2188
  %2220 = vmatpush.bf16.msra.mxu0 %v2187
  %2221 = vmatpush.bf16.msra.mxu0 %v2186
  %2222 = vmatpush.bf16.msra.mxu0 %v2185
  %2223 = vmatpush.bf16.msra.mxu0 %v2184
  %2224 = vmatmul.bf16.gmra.mxu0 %v2118
  %v2225 = vpop.f32.mrf.mxu0
  %v2226 = vadd.f32 0.0, %v2225
  %v2227 = vpop.f32.mrf.mxu0
  %v2228 = vadd.f32 0.0, %v2227
  %2229 = vdwg.mxu0
  %2230 = vmatpush.bf16.msra.mxu0 %v2199
  %2231 = vmatpush.bf16.msra.mxu0 %v2198
  %2232 = vmatpush.bf16.msra.mxu0 %v2197
  %2233 = vmatpush.bf16.msra.mxu0 %v2196
  %2234 = vmatpush.bf16.msra.mxu0 %v2195
  %2235 = vmatpush.bf16.msra.mxu0 %v2194
  %2236 = vmatpush.bf16.msra.mxu0 %v2193
  %2237 = vmatpush.bf16.msra.mxu0 %v2192
  %2238 = vmatmul.bf16.gmra.mxu0 %v2119
  %v2239 = vpop.f32.mrf.mxu0
  %v2240 = vadd.f32 %v2226, %v2239
  %v2241 = vpop.f32.mrf.mxu0
  %v2242 = vadd.f32 %v2228, %v2241
  %2243 = vdwg.mxu0
  %v2244 = vadd.f32 %v2114, %v2240
  %v2245 = vadd.f32 %v2116, %v2242
  %v2246 = vld [vmem:[%s14] sm:$0x1]
  %v2248 = vperm.slane %v2246, 0
  %v2250 = vadd.f32 %v2244, %v2248
  %v2251 = vadd.f32 %v2245, %v2248
  %v2252 = vpack.c.bf16 %v2251, %v2250
  %2253 = vmatpush.bf16.msra.mxu0 %v741
  %2254 = vmatpush.bf16.msra.mxu0 %v739
  %2255 = vmatpush.bf16.msra.mxu0 %v737
  %2256 = vmatpush.bf16.msra.mxu0 %v735
  %2257 = vmatpush.bf16.msra.mxu0 %v733
  %2258 = vmatpush.bf16.msra.mxu0 %v731
  %2259 = vmatpush.bf16.msra.mxu0 %v729
  %2260 = vmatpush.bf16.msra.mxu0 %v727
  %2261 = vmatmul.bf16.gmra.mxu0 %v2252
  %v2262 = vpop.f32.mrf.mxu0
  %v2263 = vadd.f32 0.0, %v2262
  %v2264 = vpop.f32.mrf.mxu0
  %v2265 = vadd.f32 0.0, %v2264
  %2266 = vdwg.mxu0
  %2267 = vmatpush.bf16.msra.mxu0 %v742
  %2268 = vmatpush.bf16.msra.mxu0 %v740
  %2269 = vmatpush.bf16.msra.mxu0 %v738
  %2270 = vmatpush.bf16.msra.mxu0 %v736
  %2271 = vmatpush.bf16.msra.mxu0 %v734
  %2272 = vmatpush.bf16.msra.mxu0 %v732
  %2273 = vmatpush.bf16.msra.mxu0 %v730
  %2274 = vmatpush.bf16.msra.mxu0 %v728
  %2275 = vmatmul.bf16.gmra.mxu0 %v2252
  %v2276 = vpop.f32.mrf.mxu0
  %v2277 = vadd.f32 0.0, %v2276
  %v2278 = vpop.f32.mrf.mxu0
  %v2279 = vadd.f32 0.0, %v2278
  %2280 = vdwg.mxu0
  %v2281 = vmul.f32 %v2263, %v67
  %v2282 = vmul.f32 %v2277, %v68
  %v2283 = vmul.f32 %v2265, %v69
  %v2284 = vmul.f32 %v2279, %v70
  %v2285 = vmul.f32 %v2277, %v71
  %v2286 = vmul.f32 %v2263, %v72
  %v2287 = vmul.f32 %v2279, %v73
  %v2288 = vmul.f32 %v2265, %v74
  %v2289 = vsub.f32 %v2281, %v2285
  %v2290 = vsub.f32 %v2282, %v2286
  %v2291 = vsub.f32 %v2283, %v2287
  %v2292 = vsub.f32 %v2284, %v2288
  %v2293 = vpack.c.bf16 %v2291, %v2289
  %v2294 = vpack.c.bf16 %v2292, %v2290
  %2295 = vmatpush.bf16.msra.mxu0 0
  %2296 = vmatpush.bf16.msra.mxu0 0
  %2297 = vmatpush.bf16.msra.mxu0 0
  %2298 = vmatpush.bf16.msra.mxu0 0
  %2299 = vmatpush.bf16.msra.mxu0 0
  %2300 = vmatpush.bf16.msra.mxu0 0
  %2301 = vmatpush.bf16.msra.mxu0 0
  %2302 = vmatpush.bf16.msra.mxu0 %v2293
  %2303 = vmatmul.bf16.gmra.mxu0 %v812
  %v2304 = vpop.f32.mrf.mxu0
  %v2305 = vadd.f32 0.0, %v2304
  %v2306 = vpop.f32.mrf.mxu0
  %v2307 = vadd.f32 0.0, %v2306
  %2308 = vmatmul.bf16.gmra.mxu0 %v815
  %v2309 = vpop.f32.mrf.mxu0
  %v2310 = vadd.f32 0.0, %v2309
  %v2311 = vpop.f32.mrf.mxu0
  %v2312 = vadd.f32 0.0, %v2311
  %2313 = vdwg.mxu0
  %2314 = vmatpush.bf16.msra.mxu0 0
  %2315 = vmatpush.bf16.msra.mxu0 0
  %2316 = vmatpush.bf16.msra.mxu0 0
  %2317 = vmatpush.bf16.msra.mxu0 0
  %2318 = vmatpush.bf16.msra.mxu0 0
  %2319 = vmatpush.bf16.msra.mxu0 0
  %2320 = vmatpush.bf16.msra.mxu0 0
  %2321 = vmatpush.bf16.msra.mxu0 %v2294
  %2322 = vmatmul.bf16.gmra.mxu0 %v812
  %v2323 = vpop.f32.mrf.mxu0
  %v2324 = vadd.f32 0.0, %v2323
  %v2325 = vpop.f32.mrf.mxu0
  %v2326 = vadd.f32 0.0, %v2325
  %2327 = vmatmul.bf16.gmra.mxu0 %v815
  %v2328 = vpop.f32.mrf.mxu0
  %v2329 = vadd.f32 0.0, %v2328
  %v2330 = vpop.f32.mrf.mxu0
  %v2331 = vadd.f32 0.0, %v2330
  %2332 = vdwg.mxu0
  %v2333 = vmul.f32 %v236, %v2329
  %v2334 = vmul.f32 %v237, %v2310
  %v2335 = vmul.f32 %v236, %v2331
  %v2336 = vmul.f32 %v237, %v2312
  %v2337 = vadd.f32 %v2305, %v2333
  %v2338 = vadd.f32 %v2324, %v2334
  %v2339 = vadd.f32 %v2307, %v2335
  %v2340 = vadd.f32 %v2326, %v2336
  %v2341 = vpack.c.bf16 %v2339, %v2337
  %v2342 = vpack.c.bf16 %v2340, %v2338
  %2343 = vmatpush.bf16.msra.mxu0 %v975
  %2344 = vmatpush.bf16.msra.mxu0 %v973
  %2345 = vmatpush.bf16.msra.mxu0 %v971
  %2346 = vmatpush.bf16.msra.mxu0 %v969
  %2347 = vmatpush.bf16.msra.mxu0 %v967
  %2348 = vmatpush.bf16.msra.mxu0 %v965
  %2349 = vmatpush.bf16.msra.mxu0 %v963
  %2350 = vmatpush.bf16.msra.mxu0 %v961
  %2351 = vmatmul.bf16.gmra.mxu0 %v2341
  %v2352 = vpop.f32.mrf.mxu0
  %v2353 = vadd.f32 0.0, %v2352
  %v2354 = vpop.f32.mrf.mxu0
  %v2355 = vadd.f32 0.0, %v2354
  %2356 = vdwg.mxu0
  %2357 = vmatpush.bf16.msra.mxu0 %v991
  %2358 = vmatpush.bf16.msra.mxu0 %v989
  %2359 = vmatpush.bf16.msra.mxu0 %v987
  %2360 = vmatpush.bf16.msra.mxu0 %v985
  %2361 = vmatpush.bf16.msra.mxu0 %v983
  %2362 = vmatpush.bf16.msra.mxu0 %v981
  %2363 = vmatpush.bf16.msra.mxu0 %v979
  %2364 = vmatpush.bf16.msra.mxu0 %v977
  %2365 = vmatmul.bf16.gmra.mxu0 %v2342
  %v2366 = vpop.f32.mrf.mxu0
  %v2367 = vadd.f32 %v2353, %v2366
  %v2368 = vpop.f32.mrf.mxu0
  %v2369 = vadd.f32 %v2355, %v2368
  %2370 = vdwg.mxu0
  %2371 = vmatpush.bf16.msra.mxu0 %v976
  %2372 = vmatpush.bf16.msra.mxu0 %v974
  %2373 = vmatpush.bf16.msra.mxu0 %v972
  %2374 = vmatpush.bf16.msra.mxu0 %v970
  %2375 = vmatpush.bf16.msra.mxu0 %v968
  %2376 = vmatpush.bf16.msra.mxu0 %v966
  %2377 = vmatpush.bf16.msra.mxu0 %v964
  %2378 = vmatpush.bf16.msra.mxu0 %v962
  %2379 = vmatmul.bf16.gmra.mxu0 %v2341
  %v2380 = vpop.f32.mrf.mxu0
  %v2381 = vadd.f32 0.0, %v2380
  %v2382 = vpop.f32.mrf.mxu0
  %v2383 = vadd.f32 0.0, %v2382
  %2384 = vdwg.mxu0
  %2385 = vmatpush.bf16.msra.mxu0 %v992
  %2386 = vmatpush.bf16.msra.mxu0 %v990
  %2387 = vmatpush.bf16.msra.mxu0 %v988
  %2388 = vmatpush.bf16.msra.mxu0 %v986
  %2389 = vmatpush.bf16.msra.mxu0 %v984
  %2390 = vmatpush.bf16.msra.mxu0 %v982
  %2391 = vmatpush.bf16.msra.mxu0 %v980
  %2392 = vmatpush.bf16.msra.mxu0 %v978
  %2393 = vmatmul.bf16.gmra.mxu0 %v2342
  %v2394 = vpop.f32.mrf.mxu0
  %v2395 = vadd.f32 %v2381, %v2394
  %v2396 = vpop.f32.mrf.mxu0
  %v2397 = vadd.f32 %v2383, %v2396
  %2398 = vdwg.mxu0
  %v2399 = vmul.f32 %v75, %v2367
  %v2400 = vmul.f32 %v76, %v2395
  %v2401 = vmul.f32 %v77, %v2369
  %v2402 = vmul.f32 %v78, %v2397
  %v2403 = vsub.f32 %v1085, %v2399
  %v2404 = vsub.f32 %v1086, %v2400
  %v2405 = vsub.f32 %v1087, %v2401
  %v2406 = vsub.f32 %v1088, %v2402
  %v2407 = vmul.f32 %v75, %v2403
  %v2408 = vmul.f32 %v76, %v2404
  %v2409 = vmul.f32 %v77, %v2405
  %v2410 = vmul.f32 %v78, %v2406
  %v2411 = vpack.c.bf16 %v2409, %v2407
  %v2412 = vpack.c.bf16 %v2410, %v2408
  %2413 = vmatpush.bf16.msra.mxu0 %v369
  %2414 = vmatpush.bf16.msra.mxu0 %v367
  %2415 = vmatpush.bf16.msra.mxu0 %v365
  %2416 = vmatpush.bf16.msra.mxu0 %v363
  %2417 = vmatpush.bf16.msra.mxu0 %v361
  %2418 = vmatpush.bf16.msra.mxu0 %v359
  %2419 = vmatpush.bf16.msra.mxu0 %v357
  %2420 = vmatpush.bf16.msra.mxu0 %v355
  %2421 = vmatmul.bf16.gmra.mxu0 %v2411
  %v2422 = vpop.f32.mrf.mxu0
  %v2423 = vadd.f32 0.0, %v2422
  %v2424 = vpop.f32.mrf.mxu0
  %v2425 = vadd.f32 0.0, %v2424
  %2426 = vdwg.mxu0
  %2427 = vmatpush.bf16.msra.mxu0 %v385
  %2428 = vmatpush.bf16.msra.mxu0 %v383
  %2429 = vmatpush.bf16.msra.mxu0 %v381
  %2430 = vmatpush.bf16.msra.mxu0 %v379
  %2431 = vmatpush.bf16.msra.mxu0 %v377
  %2432 = vmatpush.bf16.msra.mxu0 %v375
  %2433 = vmatpush.bf16.msra.mxu0 %v373
  %2434 = vmatpush.bf16.msra.mxu0 %v371
  %2435 = vmatmul.bf16.gmra.mxu0 %v2412
  %v2436 = vpop.f32.mrf.mxu0
  %v2437 = vadd.f32 %v2423, %v2436
  %v2438 = vpop.f32.mrf.mxu0
  %v2439 = vadd.f32 %v2425, %v2438
  %2440 = vdwg.mxu0
  %2441 = vmatpush.bf16.msra.mxu0 %v370
  %2442 = vmatpush.bf16.msra.mxu0 %v368
  %2443 = vmatpush.bf16.msra.mxu0 %v366
  %2444 = vmatpush.bf16.msra.mxu0 %v364
  %2445 = vmatpush.bf16.msra.mxu0 %v362
  %2446 = vmatpush.bf16.msra.mxu0 %v360
  %2447 = vmatpush.bf16.msra.mxu0 %v358
  %2448 = vmatpush.bf16.msra.mxu0 %v356
  %2449 = vmatmul.bf16.gmra.mxu0 %v2411
  %v2450 = vpop.f32.mrf.mxu0
  %v2451 = vadd.f32 0.0, %v2450
  %v2452 = vpop.f32.mrf.mxu0
  %v2453 = vadd.f32 0.0, %v2452
  %2454 = vdwg.mxu0
  %2455 = vmatpush.bf16.msra.mxu0 %v386
  %2456 = vmatpush.bf16.msra.mxu0 %v384
  %2457 = vmatpush.bf16.msra.mxu0 %v382
  %2458 = vmatpush.bf16.msra.mxu0 %v380
  %2459 = vmatpush.bf16.msra.mxu0 %v378
  %2460 = vmatpush.bf16.msra.mxu0 %v376
  %2461 = vmatpush.bf16.msra.mxu0 %v374
  %2462 = vmatpush.bf16.msra.mxu0 %v372
  %2463 = vmatmul.bf16.gmra.mxu0 %v2412
  %v2464 = vpop.f32.mrf.mxu0
  %v2465 = vadd.f32 %v2451, %v2464
  %v2466 = vpop.f32.mrf.mxu0
  %v2467 = vadd.f32 %v2453, %v2466
  %2468 = vdwg.mxu0
  %v2469 = vpack.c.bf16 %v2439, %v2437
  %v2470 = vpack.c.bf16 %v2467, %v2465
  %2471 = vmatpush.bf16.msra.mxu0 0
  %2472 = vmatpush.bf16.msra.mxu0 0
  %2473 = vmatpush.bf16.msra.mxu0 0
  %2474 = vmatpush.bf16.msra.mxu0 0
  %2475 = vmatpush.bf16.msra.mxu0 0
  %2476 = vmatpush.bf16.msra.mxu0 0
  %2477 = vmatpush.bf16.msra.mxu0 0
  %2478 = vmatpush.bf16.msra.mxu0 %v2469
  %2479 = vmatmul.bf16.gmra.mxu0 %v489
  %v2480 = vpop.f32.mrf.mxu0
  %v2481 = vadd.f32 0.0, %v2480
  %v2482 = vpop.f32.mrf.mxu0
  %v2483 = vadd.f32 0.0, %v2482
  %2484 = vmatmul.bf16.gmra.mxu0 %v492
  %v2485 = vpop.f32.mrf.mxu0
  %v2486 = vadd.f32 0.0, %v2485
  %v2487 = vpop.f32.mrf.mxu0
  %v2488 = vadd.f32 0.0, %v2487
  %2489 = vdwg.mxu0
  %2490 = vmatpush.bf16.msra.mxu0 0
  %2491 = vmatpush.bf16.msra.mxu0 0
  %2492 = vmatpush.bf16.msra.mxu0 0
  %2493 = vmatpush.bf16.msra.mxu0 0
  %2494 = vmatpush.bf16.msra.mxu0 0
  %2495 = vmatpush.bf16.msra.mxu0 0
  %2496 = vmatpush.bf16.msra.mxu0 0
  %2497 = vmatpush.bf16.msra.mxu0 %v2470
  %2498 = vmatmul.bf16.gmra.mxu0 %v489
  %v2499 = vpop.f32.mrf.mxu0
  %v2500 = vadd.f32 0.0, %v2499
  %v2501 = vpop.f32.mrf.mxu0
  %v2502 = vadd.f32 0.0, %v2501
  %2503 = vmatmul.bf16.gmra.mxu0 %v492
  %v2504 = vpop.f32.mrf.mxu0
  %v2505 = vadd.f32 0.0, %v2504
  %v2506 = vpop.f32.mrf.mxu0
  %v2507 = vadd.f32 0.0, %v2506
  %2508 = vdwg.mxu0
  %v2509 = vmul.f32 %v236, %v2505
  %v2510 = vmul.f32 %v237, %v2486
  %v2511 = vmul.f32 %v236, %v2507
  %v2512 = vmul.f32 %v237, %v2488
  %v2513 = vadd.f32 %v2481, %v2509
  %v2514 = vadd.f32 %v2500, %v2510
  %v2515 = vadd.f32 %v2483, %v2511
  %v2516 = vadd.f32 %v2502, %v2512
  %v2517 = vmul.f32 %v2513, %v67
  %v2518 = vmul.f32 %v2514, %v68
  %v2519 = vmul.f32 %v2515, %v69
  %v2520 = vmul.f32 %v2516, %v70
  %v2521 = vmul.f32 %v2514, %v71
  %v2522 = vmul.f32 %v2513, %v72
  %v2523 = vmul.f32 %v2516, %v73
  %v2524 = vmul.f32 %v2515, %v74
  %v2525 = vadd.f32 %v2517, %v2521
  %v2526 = vadd.f32 %v2518, %v2522
  %v2527 = vadd.f32 %v2519, %v2523
  %v2528 = vadd.f32 %v2520, %v2524
  %v2529 = vpack.c.bf16 %v2527, %v2525
  %v2530 = vpack.c.bf16 %v2528, %v2526
  %2531 = vmatpush.bf16.msra.mxu0 %v1284
  %2532 = vmatpush.bf16.msra.mxu0 %v1283
  %2533 = vmatpush.bf16.msra.mxu0 %v1282
  %2534 = vmatpush.bf16.msra.mxu0 %v1281
  %2535 = vmatpush.bf16.msra.mxu0 %v1280
  %2536 = vmatpush.bf16.msra.mxu0 %v1279
  %2537 = vmatpush.bf16.msra.mxu0 %v1278
  %2538 = vmatpush.bf16.msra.mxu0 %v1277
  %2539 = vmatmul.bf16.gmra.mxu0 %v2529
  %v2540 = vpop.f32.mrf.mxu0
  %v2541 = vadd.f32 0.0, %v2540
  %v2542 = vpop.f32.mrf.mxu0
  %v2543 = vadd.f32 0.0, %v2542
  %2544 = vdwg.mxu0
  %2545 = vmatpush.bf16.msra.mxu0 %v1292
  %2546 = vmatpush.bf16.msra.mxu0 %v1291
  %2547 = vmatpush.bf16.msra.mxu0 %v1290
  %2548 = vmatpush.bf16.msra.mxu0 %v1289
  %2549 = vmatpush.bf16.msra.mxu0 %v1288
  %2550 = vmatpush.bf16.msra.mxu0 %v1287
  %2551 = vmatpush.bf16.msra.mxu0 %v1286
  %2552 = vmatpush.bf16.msra.mxu0 %v1285
  %2553 = vmatmul.bf16.gmra.mxu0 %v2530
  %v2554 = vpop.f32.mrf.mxu0
  %v2555 = vadd.f32 %v2541, %v2554
  %v2556 = vpop.f32.mrf.mxu0
  %v2557 = vadd.f32 %v2543, %v2556
  %2558 = vdwg.mxu0
  %v2559 = vadd.f32 %v2250, %v2555
  %v2560 = vadd.f32 %v2251, %v2557
  %v2561 = vld [vmem:[%s15] sm:$0xff]
  %v2562 = vld [vmem:[%s15 + $0x8] sm:$0xff]
  %v2563 = vld [vmem:[%s15 + $0x10] sm:$0xff]
  %v2564 = vld [vmem:[%s15 + $0x18] sm:$0xff]
  %v2565 = vld [vmem:[%s15 + $0x20] sm:$0xff]
  %v2566 = vld [vmem:[%s15 + $0x28] sm:$0xff]
  %v2567 = vld [vmem:[%s15 + $0x30] sm:$0xff]
  %v2568 = vld [vmem:[%s15 + $0x38] sm:$0xff]
  %v2569 = vld [vmem:[%s15 + $0x40] sm:$0xff]
  %v2570 = vld [vmem:[%s15 + $0x48] sm:$0xff]
  %v2571 = vld [vmem:[%s15 + $0x50] sm:$0xff]
  %v2572 = vld [vmem:[%s15 + $0x58] sm:$0xff]
  %v2573 = vld [vmem:[%s15 + $0x60] sm:$0xff]
  %v2574 = vld [vmem:[%s15 + $0x68] sm:$0xff]
  %v2575 = vld [vmem:[%s15 + $0x70] sm:$0xff]
  %v2576 = vld [vmem:[%s15 + $0x78] sm:$0xff]
  %v2577 = vld [vmem:[%s15 + $0x80] sm:$0xff]
  %v2578 = vld [vmem:[%s15 + $0x88] sm:$0xff]
  %v2579 = vld [vmem:[%s15 + $0x90] sm:$0xff]
  %v2580 = vld [vmem:[%s15 + $0x98] sm:$0xff]
  %v2581 = vld [vmem:[%s15 + $0xa0] sm:$0xff]
  %v2582 = vld [vmem:[%s15 + $0xa8] sm:$0xff]
  %v2583 = vld [vmem:[%s15 + $0xb0] sm:$0xff]
  %v2584 = vld [vmem:[%s15 + $0xb8] sm:$0xff]
  %v2585 = vld [vmem:[%s15 + $0xc0] sm:$0xff]
  %v2586 = vld [vmem:[%s15 + $0xc8] sm:$0xff]
  %v2587 = vld [vmem:[%s15 + $0xd0] sm:$0xff]
  %v2588 = vld [vmem:[%s15 + $0xd8] sm:$0xff]
  %v2589 = vld [vmem:[%s15 + $0xe0] sm:$0xff]
  %v2590 = vld [vmem:[%s15 + $0xe8] sm:$0xff]
  %v2591 = vld [vmem:[%s15 + $0xf0] sm:$0xff]
  %v2592 = vld [vmem:[%s15 + $0xf8] sm:$0xff]
  %v2593 = vld [vmem:[%s15 + $0x100] sm:$0xff]
  %v2594 = vld [vmem:[%s15 + $0x108] sm:$0xff]
  %v2595 = vld [vmem:[%s15 + $0x110] sm:$0xff]
  %v2596 = vld [vmem:[%s15 + $0x118] sm:$0xff]
  %v2597 = vld [vmem:[%s15 + $0x120] sm:$0xff]
  %v2598 = vld [vmem:[%s15 + $0x128] sm:$0xff]
  %v2599 = vld [vmem:[%s15 + $0x130] sm:$0xff]
  %v2600 = vld [vmem:[%s15 + $0x138] sm:$0xff]
  %v2601 = vld [vmem:[%s15 + $0x140] sm:$0xff]
  %v2602 = vld [vmem:[%s15 + $0x148] sm:$0xff]
  %v2603 = vld [vmem:[%s15 + $0x150] sm:$0xff]
  %v2604 = vld [vmem:[%s15 + $0x158] sm:$0xff]
  %v2605 = vld [vmem:[%s15 + $0x160] sm:$0xff]
  %v2606 = vld [vmem:[%s15 + $0x168] sm:$0xff]
  %v2607 = vld [vmem:[%s15 + $0x170] sm:$0xff]
  %v2608 = vld [vmem:[%s15 + $0x178] sm:$0xff]
  %v2609 = vrot.slane %v2559, 7
  %v2610 = vrot.slane %v2560, 7
  %v2611 = vsel %vm1389, %v2609, %v2610
  %v2612 = vsel %vm1389, %v2610, %v2609
  %v2613 = vmul.f32 %v2612, %v245
  %v2614 = vmul.f32 %v2611, %v246
  %v2615 = vrot.slane %v2559, 1
  %v2616 = vrot.slane %v2560, 1
  %v2617 = vsel %vm1396, %v2615, %v2616
  %v2618 = vsel %vm1396, %v2616, %v2615
  %v2619 = vmul.f32 %v2617, %v251
  %v2620 = vmul.f32 %v2618, %v252
  %v2621 = vpack.c.bf16 %v2614, %v2613
  %v2622 = vpack.c.bf16 %v2560, %v2559
  %v2639 = vunpack.c.l.b16 %v2577
  %v2640 = vunpack.c.h.b16 %v2577
  %v2641 = vunpack.c.l.b16 %v2578
  %v2642 = vunpack.c.h.b16 %v2578
  %v2643 = vunpack.c.l.b16 %v2579
  %v2644 = vunpack.c.h.b16 %v2579
  %v2645 = vunpack.c.l.b16 %v2580
  %v2646 = vunpack.c.h.b16 %v2580
  %v2647 = vunpack.c.l.b16 %v2581
  %v2648 = vunpack.c.h.b16 %v2581
  %v2649 = vunpack.c.l.b16 %v2582
  %v2650 = vunpack.c.h.b16 %v2582
  %v2651 = vunpack.c.l.b16 %v2583
  %v2652 = vunpack.c.h.b16 %v2583
  %v2653 = vunpack.c.l.b16 %v2584
  %v2654 = vunpack.c.h.b16 %v2584
  %v2655 = vunpack.c.l.b16 %v2585
  %v2656 = vunpack.c.h.b16 %v2585
  %v2657 = vunpack.c.l.b16 %v2586
  %v2658 = vunpack.c.h.b16 %v2586
  %v2659 = vunpack.c.l.b16 %v2587
  %v2660 = vunpack.c.h.b16 %v2587
  %v2661 = vunpack.c.l.b16 %v2588
  %v2662 = vunpack.c.h.b16 %v2588
  %v2663 = vunpack.c.l.b16 %v2589
  %v2664 = vunpack.c.h.b16 %v2589
  %v2665 = vunpack.c.l.b16 %v2590
  %v2666 = vunpack.c.h.b16 %v2590
  %v2667 = vunpack.c.l.b16 %v2591
  %v2668 = vunpack.c.h.b16 %v2591
  %v2669 = vunpack.c.l.b16 %v2592
  %v2670 = vunpack.c.h.b16 %v2592
  %v2671 = vpack.c.b16 %v2641, %v2639
  %v2672 = vpack.c.b16 %v2642, %v2640
  %v2673 = vpack.c.b16 %v2645, %v2643
  %v2674 = vpack.c.b16 %v2646, %v2644
  %v2675 = vpack.c.b16 %v2649, %v2647
  %v2676 = vpack.c.b16 %v2650, %v2648
  %v2677 = vpack.c.b16 %v2653, %v2651
  %v2678 = vpack.c.b16 %v2654, %v2652
  %v2679 = vpack.c.b16 %v2657, %v2655
  %v2680 = vpack.c.b16 %v2658, %v2656
  %v2681 = vpack.c.b16 %v2661, %v2659
  %v2682 = vpack.c.b16 %v2662, %v2660
  %v2683 = vpack.c.b16 %v2665, %v2663
  %v2684 = vpack.c.b16 %v2666, %v2664
  %v2685 = vpack.c.b16 %v2669, %v2667
  %v2686 = vpack.c.b16 %v2670, %v2668
  %2703 = vmatpush.bf16.msra.mxu0 %v2685
  %2704 = vmatpush.bf16.msra.mxu0 %v2683
  %2705 = vmatpush.bf16.msra.mxu0 %v2681
  %2706 = vmatpush.bf16.msra.mxu0 %v2679
  %2707 = vmatpush.bf16.msra.mxu0 %v2677
  %2708 = vmatpush.bf16.msra.mxu0 %v2675
  %2709 = vmatpush.bf16.msra.mxu0 %v2673
  %2710 = vmatpush.bf16.msra.mxu0 %v2671
  %2711 = vmatmul.bf16.gmra.mxu0 %v2622
  %v2712 = vpop.f32.mrf.mxu0
  %v2713 = vadd.f32 0.0, %v2712
  %v2714 = vpop.f32.mrf.mxu0
  %v2715 = vadd.f32 0.0, %v2714
  %2716 = vdwg.mxu0
  %2717 = vmatpush.bf16.msra.mxu0 %v2686
  %2718 = vmatpush.bf16.msra.mxu0 %v2684
  %2719 = vmatpush.bf16.msra.mxu0 %v2682
  %2720 = vmatpush.bf16.msra.mxu0 %v2680
  %2721 = vmatpush.bf16.msra.mxu0 %v2678
  %2722 = vmatpush.bf16.msra.mxu0 %v2676
  %2723 = vmatpush.bf16.msra.mxu0 %v2674
  %2724 = vmatpush.bf16.msra.mxu0 %v2672
  %2725 = vmatmul.bf16.gmra.mxu0 %v2622
  %v2726 = vpop.f32.mrf.mxu0
  %v2727 = vadd.f32 0.0, %v2726
  %v2728 = vpop.f32.mrf.mxu0
  %v2729 = vadd.f32 0.0, %v2728
  %2730 = vdwg.mxu0
  %v2747 = vunpack.c.l.b16 %v2561
  %v2748 = vunpack.c.h.b16 %v2561
  %v2749 = vunpack.c.l.b16 %v2562
  %v2750 = vunpack.c.h.b16 %v2562
  %v2751 = vunpack.c.l.b16 %v2563
  %v2752 = vunpack.c.h.b16 %v2563
  %v2753 = vunpack.c.l.b16 %v2564
  %v2754 = vunpack.c.h.b16 %v2564
  %v2755 = vunpack.c.l.b16 %v2565
  %v2756 = vunpack.c.h.b16 %v2565
  %v2757 = vunpack.c.l.b16 %v2566
  %v2758 = vunpack.c.h.b16 %v2566
  %v2759 = vunpack.c.l.b16 %v2567
  %v2760 = vunpack.c.h.b16 %v2567
  %v2761 = vunpack.c.l.b16 %v2568
  %v2762 = vunpack.c.h.b16 %v2568
  %v2763 = vunpack.c.l.b16 %v2569
  %v2764 = vunpack.c.h.b16 %v2569
  %v2765 = vunpack.c.l.b16 %v2570
  %v2766 = vunpack.c.h.b16 %v2570
  %v2767 = vunpack.c.l.b16 %v2571
  %v2768 = vunpack.c.h.b16 %v2571
  %v2769 = vunpack.c.l.b16 %v2572
  %v2770 = vunpack.c.h.b16 %v2572
  %v2771 = vunpack.c.l.b16 %v2573
  %v2772 = vunpack.c.h.b16 %v2573
  %v2773 = vunpack.c.l.b16 %v2574
  %v2774 = vunpack.c.h.b16 %v2574
  %v2775 = vunpack.c.l.b16 %v2575
  %v2776 = vunpack.c.h.b16 %v2575
  %v2777 = vunpack.c.l.b16 %v2576
  %v2778 = vunpack.c.h.b16 %v2576
  %v2779 = vpack.c.b16 %v2749, %v2747
  %v2780 = vpack.c.b16 %v2750, %v2748
  %v2781 = vpack.c.b16 %v2753, %v2751
  %v2782 = vpack.c.b16 %v2754, %v2752
  %v2783 = vpack.c.b16 %v2757, %v2755
  %v2784 = vpack.c.b16 %v2758, %v2756
  %v2785 = vpack.c.b16 %v2761, %v2759
  %v2786 = vpack.c.b16 %v2762, %v2760
  %v2787 = vpack.c.b16 %v2765, %v2763
  %v2788 = vpack.c.b16 %v2766, %v2764
  %v2789 = vpack.c.b16 %v2769, %v2767
  %v2790 = vpack.c.b16 %v2770, %v2768
  %v2791 = vpack.c.b16 %v2773, %v2771
  %v2792 = vpack.c.b16 %v2774, %v2772
  %v2793 = vpack.c.b16 %v2777, %v2775
  %v2794 = vpack.c.b16 %v2778, %v2776
  %2811 = vmatpush.bf16.msra.mxu0 %v2793
  %2812 = vmatpush.bf16.msra.mxu0 %v2791
  %2813 = vmatpush.bf16.msra.mxu0 %v2789
  %2814 = vmatpush.bf16.msra.mxu0 %v2787
  %2815 = vmatpush.bf16.msra.mxu0 %v2785
  %2816 = vmatpush.bf16.msra.mxu0 %v2783
  %2817 = vmatpush.bf16.msra.mxu0 %v2781
  %2818 = vmatpush.bf16.msra.mxu0 %v2779
  %2819 = vmatmul.bf16.gmra.mxu0 %v2621
  %v2820 = vpop.f32.mrf.mxu0
  %v2821 = vadd.f32 %v2713, %v2820
  %v2822 = vpop.f32.mrf.mxu0
  %v2823 = vadd.f32 %v2715, %v2822
  %2824 = vdwg.mxu0
  %2825 = vmatpush.bf16.msra.mxu0 %v2794
  %2826 = vmatpush.bf16.msra.mxu0 %v2792
  %2827 = vmatpush.bf16.msra.mxu0 %v2790
  %2828 = vmatpush.bf16.msra.mxu0 %v2788
  %2829 = vmatpush.bf16.msra.mxu0 %v2786
  %2830 = vmatpush.bf16.msra.mxu0 %v2784
  %2831 = vmatpush.bf16.msra.mxu0 %v2782
  %2832 = vmatpush.bf16.msra.mxu0 %v2780
  %2833 = vmatmul.bf16.gmra.mxu0 %v2621
  %v2834 = vpop.f32.mrf.mxu0
  %v2835 = vadd.f32 %v2727, %v2834
  %v2836 = vpop.f32.mrf.mxu0
  %v2837 = vadd.f32 %v2729, %v2836
  %2838 = vdwg.mxu0
  %v2839 = vpack.c.bf16 %v2620, %v2619
  %v2856 = vunpack.c.l.b16 %v2593
  %v2857 = vunpack.c.h.b16 %v2593
  %v2858 = vunpack.c.l.b16 %v2594
  %v2859 = vunpack.c.h.b16 %v2594
  %v2860 = vunpack.c.l.b16 %v2595
  %v2861 = vunpack.c.h.b16 %v2595
  %v2862 = vunpack.c.l.b16 %v2596
  %v2863 = vunpack.c.h.b16 %v2596
  %v2864 = vunpack.c.l.b16 %v2597
  %v2865 = vunpack.c.h.b16 %v2597
  %v2866 = vunpack.c.l.b16 %v2598
  %v2867 = vunpack.c.h.b16 %v2598
  %v2868 = vunpack.c.l.b16 %v2599
  %v2869 = vunpack.c.h.b16 %v2599
  %v2870 = vunpack.c.l.b16 %v2600
  %v2871 = vunpack.c.h.b16 %v2600
  %v2872 = vunpack.c.l.b16 %v2601
  %v2873 = vunpack.c.h.b16 %v2601
  %v2874 = vunpack.c.l.b16 %v2602
  %v2875 = vunpack.c.h.b16 %v2602
  %v2876 = vunpack.c.l.b16 %v2603
  %v2877 = vunpack.c.h.b16 %v2603
  %v2878 = vunpack.c.l.b16 %v2604
  %v2879 = vunpack.c.h.b16 %v2604
  %v2880 = vunpack.c.l.b16 %v2605
  %v2881 = vunpack.c.h.b16 %v2605
  %v2882 = vunpack.c.l.b16 %v2606
  %v2883 = vunpack.c.h.b16 %v2606
  %v2884 = vunpack.c.l.b16 %v2607
  %v2885 = vunpack.c.h.b16 %v2607
  %v2886 = vunpack.c.l.b16 %v2608
  %v2887 = vunpack.c.h.b16 %v2608
  %v2888 = vpack.c.b16 %v2858, %v2856
  %v2889 = vpack.c.b16 %v2859, %v2857
  %v2890 = vpack.c.b16 %v2862, %v2860
  %v2891 = vpack.c.b16 %v2863, %v2861
  %v2892 = vpack.c.b16 %v2866, %v2864
  %v2893 = vpack.c.b16 %v2867, %v2865
  %v2894 = vpack.c.b16 %v2870, %v2868
  %v2895 = vpack.c.b16 %v2871, %v2869
  %v2896 = vpack.c.b16 %v2874, %v2872
  %v2897 = vpack.c.b16 %v2875, %v2873
  %v2898 = vpack.c.b16 %v2878, %v2876
  %v2899 = vpack.c.b16 %v2879, %v2877
  %v2900 = vpack.c.b16 %v2882, %v2880
  %v2901 = vpack.c.b16 %v2883, %v2881
  %v2902 = vpack.c.b16 %v2886, %v2884
  %v2903 = vpack.c.b16 %v2887, %v2885
  %2920 = vmatpush.bf16.msra.mxu0 %v2902
  %2921 = vmatpush.bf16.msra.mxu0 %v2900
  %2922 = vmatpush.bf16.msra.mxu0 %v2898
  %2923 = vmatpush.bf16.msra.mxu0 %v2896
  %2924 = vmatpush.bf16.msra.mxu0 %v2894
  %2925 = vmatpush.bf16.msra.mxu0 %v2892
  %2926 = vmatpush.bf16.msra.mxu0 %v2890
  %2927 = vmatpush.bf16.msra.mxu0 %v2888
  %2928 = vmatmul.bf16.gmra.mxu0 %v2839
  %v2929 = vpop.f32.mrf.mxu0
  %v2930 = vadd.f32 0.0, %v2929
  %v2931 = vpop.f32.mrf.mxu0
  %v2932 = vadd.f32 0.0, %v2931
  %2933 = vdwg.mxu0
  %2934 = vmatpush.bf16.msra.mxu0 %v2903
  %2935 = vmatpush.bf16.msra.mxu0 %v2901
  %2936 = vmatpush.bf16.msra.mxu0 %v2899
  %2937 = vmatpush.bf16.msra.mxu0 %v2897
  %2938 = vmatpush.bf16.msra.mxu0 %v2895
  %2939 = vmatpush.bf16.msra.mxu0 %v2893
  %2940 = vmatpush.bf16.msra.mxu0 %v2891
  %2941 = vmatpush.bf16.msra.mxu0 %v2889
  %2942 = vmatmul.bf16.gmra.mxu0 %v2839
  %v2943 = vpop.f32.mrf.mxu0
  %v2944 = vadd.f32 0.0, %v2943
  %v2945 = vpop.f32.mrf.mxu0
  %v2946 = vadd.f32 0.0, %v2945
  %2947 = vdwg.mxu0
  %v2948 = vadd.f32 %v2821, %v2930
  %v2949 = vadd.f32 %v2835, %v2944
  %v2950 = vadd.f32 %v2823, %v2932
  %v2951 = vadd.f32 %v2837, %v2946
  %v2952 = vld [vmem:[%s16] sm:$0x3]
  %v2954 = vperm.slane %v2952, 0
  %v2955 = vperm.slane %v2952, 1
  %v2958 = vadd.f32 %v2948, %v2954
  %v2959 = vadd.f32 %v2949, %v2955
  %v2960 = vadd.f32 %v2950, %v2954
  %v2961 = vadd.f32 %v2951, %v2955
  %v2962 = vmax.f32 %v2958, 0.0
  %v2963 = vmax.f32 %v2959, 0.0
  %v2964 = vmax.f32 %v2960, 0.0
  %v2965 = vmax.f32 %v2961, 0.0
  %v2966 = vld [vmem:[%s17] sm:$0xf]
  %v2967 = vld [vmem:[%s17 + $0x4] sm:$0xf]
  %v2968 = vld [vmem:[%s17 + $0x8] sm:$0xf]
  %v2969 = vld [vmem:[%s17 + $0xc] sm:$0xf]
  %v2970 = vld [vmem:[%s17 + $0x10] sm:$0xf]
  %v2971 = vld [vmem:[%s17 + $0x14] sm:$0xf]
  %v2972 = vld [vmem:[%s17 + $0x18] sm:$0xf]
  %v2973 = vld [vmem:[%s17 + $0x1c] sm:$0xf]
  %v2974 = vld [vmem:[%s17 + $0x20] sm:$0xf]
  %v2975 = vld [vmem:[%s17 + $0x24] sm:$0xf]
  %v2976 = vld [vmem:[%s17 + $0x28] sm:$0xf]
  %v2977 = vld [vmem:[%s17 + $0x2c] sm:$0xf]
  %v2978 = vld [vmem:[%s17 + $0x30] sm:$0xf]
  %v2979 = vld [vmem:[%s17 + $0x34] sm:$0xf]
  %v2980 = vld [vmem:[%s17 + $0x38] sm:$0xf]
  %v2981 = vld [vmem:[%s17 + $0x3c] sm:$0xf]
  %v2982 = vld [vmem:[%s17 + $0x40] sm:$0xf]
  %v2983 = vld [vmem:[%s17 + $0x44] sm:$0xf]
  %v2984 = vld [vmem:[%s17 + $0x48] sm:$0xf]
  %v2985 = vld [vmem:[%s17 + $0x4c] sm:$0xf]
  %v2986 = vld [vmem:[%s17 + $0x50] sm:$0xf]
  %v2987 = vld [vmem:[%s17 + $0x54] sm:$0xf]
  %v2988 = vld [vmem:[%s17 + $0x58] sm:$0xf]
  %v2989 = vld [vmem:[%s17 + $0x5c] sm:$0xf]
  %v2990 = vld [vmem:[%s17 + $0x60] sm:$0xf]
  %v2991 = vld [vmem:[%s17 + $0x64] sm:$0xf]
  %v2992 = vld [vmem:[%s17 + $0x68] sm:$0xf]
  %v2993 = vld [vmem:[%s17 + $0x6c] sm:$0xf]
  %v2994 = vld [vmem:[%s17 + $0x70] sm:$0xf]
  %v2995 = vld [vmem:[%s17 + $0x74] sm:$0xf]
  %v2996 = vld [vmem:[%s17 + $0x78] sm:$0xf]
  %v2997 = vld [vmem:[%s17 + $0x7c] sm:$0xf]
  %v2998 = vld [vmem:[%s17 + $0x80] sm:$0xf]
  %v2999 = vld [vmem:[%s17 + $0x84] sm:$0xf]
  %v3000 = vld [vmem:[%s17 + $0x88] sm:$0xf]
  %v3001 = vld [vmem:[%s17 + $0x8c] sm:$0xf]
  %v3002 = vld [vmem:[%s17 + $0x90] sm:$0xf]
  %v3003 = vld [vmem:[%s17 + $0x94] sm:$0xf]
  %v3004 = vld [vmem:[%s17 + $0x98] sm:$0xf]
  %v3005 = vld [vmem:[%s17 + $0x9c] sm:$0xf]
  %v3006 = vld [vmem:[%s17 + $0xa0] sm:$0xf]
  %v3007 = vld [vmem:[%s17 + $0xa4] sm:$0xf]
  %v3008 = vld [vmem:[%s17 + $0xa8] sm:$0xf]
  %v3009 = vld [vmem:[%s17 + $0xac] sm:$0xf]
  %v3010 = vld [vmem:[%s17 + $0xb0] sm:$0xf]
  %v3011 = vld [vmem:[%s17 + $0xb4] sm:$0xf]
  %v3012 = vld [vmem:[%s17 + $0xb8] sm:$0xf]
  %v3013 = vld [vmem:[%s17 + $0xbc] sm:$0xf]
  %v3014 = vld [vmem:[%s17 + $0xc0] sm:$0xf]
  %v3015 = vld [vmem:[%s17 + $0xc4] sm:$0xf]
  %v3016 = vld [vmem:[%s17 + $0xc8] sm:$0xf]
  %v3017 = vld [vmem:[%s17 + $0xcc] sm:$0xf]
  %v3018 = vld [vmem:[%s17 + $0xd0] sm:$0xf]
  %v3019 = vld [vmem:[%s17 + $0xd4] sm:$0xf]
  %v3020 = vld [vmem:[%s17 + $0xd8] sm:$0xf]
  %v3021 = vld [vmem:[%s17 + $0xdc] sm:$0xf]
  %v3022 = vld [vmem:[%s17 + $0xe0] sm:$0xf]
  %v3023 = vld [vmem:[%s17 + $0xe4] sm:$0xf]
  %v3024 = vld [vmem:[%s17 + $0xe8] sm:$0xf]
  %v3025 = vld [vmem:[%s17 + $0xec] sm:$0xf]
  %v3026 = vld [vmem:[%s17 + $0xf0] sm:$0xf]
  %v3027 = vld [vmem:[%s17 + $0xf4] sm:$0xf]
  %v3028 = vld [vmem:[%s17 + $0xf8] sm:$0xf]
  %v3029 = vld [vmem:[%s17 + $0xfc] sm:$0xf]
  %v3030 = vld [vmem:[%s17 + $0x100] sm:$0xf]
  %v3031 = vld [vmem:[%s17 + $0x104] sm:$0xf]
  %v3032 = vld [vmem:[%s17 + $0x108] sm:$0xf]
  %v3033 = vld [vmem:[%s17 + $0x10c] sm:$0xf]
  %v3034 = vld [vmem:[%s17 + $0x110] sm:$0xf]
  %v3035 = vld [vmem:[%s17 + $0x114] sm:$0xf]
  %v3036 = vld [vmem:[%s17 + $0x118] sm:$0xf]
  %v3037 = vld [vmem:[%s17 + $0x11c] sm:$0xf]
  %v3038 = vld [vmem:[%s17 + $0x120] sm:$0xf]
  %v3039 = vld [vmem:[%s17 + $0x124] sm:$0xf]
  %v3040 = vld [vmem:[%s17 + $0x128] sm:$0xf]
  %v3041 = vld [vmem:[%s17 + $0x12c] sm:$0xf]
  %v3042 = vld [vmem:[%s17 + $0x130] sm:$0xf]
  %v3043 = vld [vmem:[%s17 + $0x134] sm:$0xf]
  %v3044 = vld [vmem:[%s17 + $0x138] sm:$0xf]
  %v3045 = vld [vmem:[%s17 + $0x13c] sm:$0xf]
  %v3046 = vld [vmem:[%s17 + $0x140] sm:$0xf]
  %v3047 = vld [vmem:[%s17 + $0x144] sm:$0xf]
  %v3048 = vld [vmem:[%s17 + $0x148] sm:$0xf]
  %v3049 = vld [vmem:[%s17 + $0x14c] sm:$0xf]
  %v3050 = vld [vmem:[%s17 + $0x150] sm:$0xf]
  %v3051 = vld [vmem:[%s17 + $0x154] sm:$0xf]
  %v3052 = vld [vmem:[%s17 + $0x158] sm:$0xf]
  %v3053 = vld [vmem:[%s17 + $0x15c] sm:$0xf]
  %v3054 = vld [vmem:[%s17 + $0x160] sm:$0xf]
  %v3055 = vld [vmem:[%s17 + $0x164] sm:$0xf]
  %v3056 = vld [vmem:[%s17 + $0x168] sm:$0xf]
  %v3057 = vld [vmem:[%s17 + $0x16c] sm:$0xf]
  %v3058 = vld [vmem:[%s17 + $0x170] sm:$0xf]
  %v3059 = vld [vmem:[%s17 + $0x174] sm:$0xf]
  %v3060 = vld [vmem:[%s17 + $0x178] sm:$0xf]
  %v3061 = vld [vmem:[%s17 + $0x17c] sm:$0xf]
  %v3062 = vrot.slane %v2962, 7
  %v3063 = vrot.slane %v2963, 7
  %v3064 = vrot.slane %v2964, 7
  %v3065 = vrot.slane %v2965, 7
  %v3066 = vsel %vm1389, %v3062, %v3064
  %v3067 = vsel %vm1389, %v3063, %v3065
  %v3068 = vsel %vm1389, %v3064, %v3062
  %v3069 = vsel %vm1389, %v3065, %v3063
  %v3070 = vmul.f32 %v3068, %v245
  %v3071 = vmul.f32 %v3069, %v245
  %v3072 = vmul.f32 %v3066, %v246
  %v3073 = vmul.f32 %v3067, %v246
  %v3074 = vrot.slane %v2962, 1
  %v3075 = vrot.slane %v2963, 1
  %v3076 = vrot.slane %v2964, 1
  %v3077 = vrot.slane %v2965, 1
  %v3078 = vsel %vm1396, %v3074, %v3076
  %v3079 = vsel %vm1396, %v3075, %v3077
  %v3080 = vsel %vm1396, %v3076, %v3074
  %v3081 = vsel %vm1396, %v3077, %v3075
  %v3082 = vmul.f32 %v3078, %v251
  %v3083 = vmul.f32 %v3079, %v251
  %v3084 = vmul.f32 %v3080, %v252
  %v3085 = vmul.f32 %v3081, %v252
  %v3086 = vpack.c.bf16 %v3072, %v3070
  %v3087 = vpack.c.bf16 %v3073, %v3071
  %v3088 = vpack.c.bf16 %v2964, %v2962
  %v3089 = vpack.c.bf16 %v2965, %v2963
  %v3122 = vunpack.c.l.b16 %v2998
  %v3123 = vunpack.c.l.b16 %v2999
  %v3124 = vunpack.c.l.b16 %v3000
  %v3125 = vunpack.c.l.b16 %v3001
  %v3126 = vunpack.c.l.b16 %v3002
  %v3127 = vunpack.c.l.b16 %v3003
  %v3128 = vunpack.c.l.b16 %v3004
  %v3129 = vunpack.c.l.b16 %v3005
  %v3130 = vunpack.c.l.b16 %v3006
  %v3131 = vunpack.c.l.b16 %v3007
  %v3132 = vunpack.c.l.b16 %v3008
  %v3133 = vunpack.c.l.b16 %v3009
  %v3134 = vunpack.c.l.b16 %v3010
  %v3135 = vunpack.c.l.b16 %v3011
  %v3136 = vunpack.c.l.b16 %v3012
  %v3137 = vunpack.c.l.b16 %v3013
  %v3138 = vunpack.c.l.b16 %v3014
  %v3139 = vunpack.c.l.b16 %v3015
  %v3140 = vunpack.c.l.b16 %v3016
  %v3141 = vunpack.c.l.b16 %v3017
  %v3142 = vunpack.c.l.b16 %v3018
  %v3143 = vunpack.c.l.b16 %v3019
  %v3144 = vunpack.c.l.b16 %v3020
  %v3145 = vunpack.c.l.b16 %v3021
  %v3146 = vunpack.c.l.b16 %v3022
  %v3147 = vunpack.c.l.b16 %v3023
  %v3148 = vunpack.c.l.b16 %v3024
  %v3149 = vunpack.c.l.b16 %v3025
  %v3150 = vunpack.c.l.b16 %v3026
  %v3151 = vunpack.c.l.b16 %v3027
  %v3152 = vunpack.c.l.b16 %v3028
  %v3153 = vunpack.c.l.b16 %v3029
  %v3154 = vpack.c.b16 %v3123, %v3122
  %v3155 = vpack.c.b16 %v3125, %v3124
  %v3156 = vpack.c.b16 %v3127, %v3126
  %v3157 = vpack.c.b16 %v3129, %v3128
  %v3158 = vpack.c.b16 %v3131, %v3130
  %v3159 = vpack.c.b16 %v3133, %v3132
  %v3160 = vpack.c.b16 %v3135, %v3134
  %v3161 = vpack.c.b16 %v3137, %v3136
  %v3162 = vpack.c.b16 %v3139, %v3138
  %v3163 = vpack.c.b16 %v3141, %v3140
  %v3164 = vpack.c.b16 %v3143, %v3142
  %v3165 = vpack.c.b16 %v3145, %v3144
  %v3166 = vpack.c.b16 %v3147, %v3146
  %v3167 = vpack.c.b16 %v3149, %v3148
  %v3168 = vpack.c.b16 %v3151, %v3150
  %v3169 = vpack.c.b16 %v3153, %v3152
  %3186 = vmatpush.bf16.msra.mxu0 %v3161
  %3187 = vmatpush.bf16.msra.mxu0 %v3160
  %3188 = vmatpush.bf16.msra.mxu0 %v3159
  %3189 = vmatpush.bf16.msra.mxu0 %v3158
  %3190 = vmatpush.bf16.msra.mxu0 %v3157
  %3191 = vmatpush.bf16.msra.mxu0 %v3156
  %3192 = vmatpush.bf16.msra.mxu0 %v3155
  %3193 = vmatpush.bf16.msra.mxu0 %v3154
  %3194 = vmatmul.bf16.gmra.mxu0 %v3088
  %v3195 = vpop.f32.mrf.mxu0
  %v3196 = vadd.f32 0.0, %v3195
  %v3197 = vpop.f32.mrf.mxu0
  %v3198 = vadd.f32 0.0, %v3197
  %3199 = vdwg.mxu0
  %3200 = vmatpush.bf16.msra.mxu0 %v3169
  %3201 = vmatpush.bf16.msra.mxu0 %v3168
  %3202 = vmatpush.bf16.msra.mxu0 %v3167
  %3203 = vmatpush.bf16.msra.mxu0 %v3166
  %3204 = vmatpush.bf16.msra.mxu0 %v3165
  %3205 = vmatpush.bf16.msra.mxu0 %v3164
  %3206 = vmatpush.bf16.msra.mxu0 %v3163
  %3207 = vmatpush.bf16.msra.mxu0 %v3162
  %3208 = vmatmul.bf16.gmra.mxu0 %v3089
  %v3209 = vpop.f32.mrf.mxu0
  %v3210 = vadd.f32 %v3196, %v3209
  %v3211 = vpop.f32.mrf.mxu0
  %v3212 = vadd.f32 %v3198, %v3211
  %3213 = vdwg.mxu0
  %v3246 = vunpack.c.l.b16 %v2966
  %v3247 = vunpack.c.l.b16 %v2967
  %v3248 = vunpack.c.l.b16 %v2968
  %v3249 = vunpack.c.l.b16 %v2969
  %v3250 = vunpack.c.l.b16 %v2970
  %v3251 = vunpack.c.l.b16 %v2971
  %v3252 = vunpack.c.l.b16 %v2972
  %v3253 = vunpack.c.l.b16 %v2973
  %v3254 = vunpack.c.l.b16 %v2974
  %v3255 = vunpack.c.l.b16 %v2975
  %v3256 = vunpack.c.l.b16 %v2976
  %v3257 = vunpack.c.l.b16 %v2977
  %v3258 = vunpack.c.l.b16 %v2978
  %v3259 = vunpack.c.l.b16 %v2979
  %v3260 = vunpack.c.l.b16 %v2980
  %v3261 = vunpack.c.l.b16 %v2981
  %v3262 = vunpack.c.l.b16 %v2982
  %v3263 = vunpack.c.l.b16 %v2983
  %v3264 = vunpack.c.l.b16 %v2984
  %v3265 = vunpack.c.l.b16 %v2985
  %v3266 = vunpack.c.l.b16 %v2986
  %v3267 = vunpack.c.l.b16 %v2987
  %v3268 = vunpack.c.l.b16 %v2988
  %v3269 = vunpack.c.l.b16 %v2989
  %v3270 = vunpack.c.l.b16 %v2990
  %v3271 = vunpack.c.l.b16 %v2991
  %v3272 = vunpack.c.l.b16 %v2992
  %v3273 = vunpack.c.l.b16 %v2993
  %v3274 = vunpack.c.l.b16 %v2994
  %v3275 = vunpack.c.l.b16 %v2995
  %v3276 = vunpack.c.l.b16 %v2996
  %v3277 = vunpack.c.l.b16 %v2997
  %v3278 = vpack.c.b16 %v3247, %v3246
  %v3279 = vpack.c.b16 %v3249, %v3248
  %v3280 = vpack.c.b16 %v3251, %v3250
  %v3281 = vpack.c.b16 %v3253, %v3252
  %v3282 = vpack.c.b16 %v3255, %v3254
  %v3283 = vpack.c.b16 %v3257, %v3256
  %v3284 = vpack.c.b16 %v3259, %v3258
  %v3285 = vpack.c.b16 %v3261, %v3260
  %v3286 = vpack.c.b16 %v3263, %v3262
  %v3287 = vpack.c.b16 %v3265, %v3264
  %v3288 = vpack.c.b16 %v3267, %v3266
  %v3289 = vpack.c.b16 %v3269, %v3268
  %v3290 = vpack.c.b16 %v3271, %v3270
  %v3291 = vpack.c.b16 %v3273, %v3272
  %v3292 = vpack.c.b16 %v3275, %v3274
  %v3293 = vpack.c.b16 %v3277, %v3276
  %3310 = vmatpush.bf16.msra.mxu0 %v3285
  %3311 = vmatpush.bf16.msra.mxu0 %v3284
  %3312 = vmatpush.bf16.msra.mxu0 %v3283
  %3313 = vmatpush.bf16.msra.mxu0 %v3282
  %3314 = vmatpush.bf16.msra.mxu0 %v3281
  %3315 = vmatpush.bf16.msra.mxu0 %v3280
  %3316 = vmatpush.bf16.msra.mxu0 %v3279
  %3317 = vmatpush.bf16.msra.mxu0 %v3278
  %3318 = vmatmul.bf16.gmra.mxu0 %v3086
  %v3319 = vpop.f32.mrf.mxu0
  %v3320 = vadd.f32 %v3210, %v3319
  %v3321 = vpop.f32.mrf.mxu0
  %v3322 = vadd.f32 %v3212, %v3321
  %3323 = vdwg.mxu0
  %3324 = vmatpush.bf16.msra.mxu0 %v3293
  %3325 = vmatpush.bf16.msra.mxu0 %v3292
  %3326 = vmatpush.bf16.msra.mxu0 %v3291
  %3327 = vmatpush.bf16.msra.mxu0 %v3290
  %3328 = vmatpush.bf16.msra.mxu0 %v3289
  %3329 = vmatpush.bf16.msra.mxu0 %v3288
  %3330 = vmatpush.bf16.msra.mxu0 %v3287
  %3331 = vmatpush.bf16.msra.mxu0 %v3286
  %3332 = vmatmul.bf16.gmra.mxu0 %v3087
  %v3333 = vpop.f32.mrf.mxu0
  %v3334 = vadd.f32 %v3320, %v3333
  %v3335 = vpop.f32.mrf.mxu0
  %v3336 = vadd.f32 %v3322, %v3335
  %3337 = vdwg.mxu0
  %v3338 = vpack.c.bf16 %v3084, %v3082
  %v3339 = vpack.c.bf16 %v3085, %v3083
  %v3372 = vunpack.c.l.b16 %v3030
  %v3373 = vunpack.c.l.b16 %v3031
  %v3374 = vunpack.c.l.b16 %v3032
  %v3375 = vunpack.c.l.b16 %v3033
  %v3376 = vunpack.c.l.b16 %v3034
  %v3377 = vunpack.c.l.b16 %v3035
  %v3378 = vunpack.c.l.b16 %v3036
  %v3379 = vunpack.c.l.b16 %v3037
  %v3380 = vunpack.c.l.b16 %v3038
  %v3381 = vunpack.c.l.b16 %v3039
  %v3382 = vunpack.c.l.b16 %v3040
  %v3383 = vunpack.c.l.b16 %v3041
  %v3384 = vunpack.c.l.b16 %v3042
  %v3385 = vunpack.c.l.b16 %v3043
  %v3386 = vunpack.c.l.b16 %v3044
  %v3387 = vunpack.c.l.b16 %v3045
  %v3388 = vunpack.c.l.b16 %v3046
  %v3389 = vunpack.c.l.b16 %v3047
  %v3390 = vunpack.c.l.b16 %v3048
  %v3391 = vunpack.c.l.b16 %v3049
  %v3392 = vunpack.c.l.b16 %v3050
  %v3393 = vunpack.c.l.b16 %v3051
  %v3394 = vunpack.c.l.b16 %v3052
  %v3395 = vunpack.c.l.b16 %v3053
  %v3396 = vunpack.c.l.b16 %v3054
  %v3397 = vunpack.c.l.b16 %v3055
  %v3398 = vunpack.c.l.b16 %v3056
  %v3399 = vunpack.c.l.b16 %v3057
  %v3400 = vunpack.c.l.b16 %v3058
  %v3401 = vunpack.c.l.b16 %v3059
  %v3402 = vunpack.c.l.b16 %v3060
  %v3403 = vunpack.c.l.b16 %v3061
  %v3404 = vpack.c.b16 %v3373, %v3372
  %v3405 = vpack.c.b16 %v3375, %v3374
  %v3406 = vpack.c.b16 %v3377, %v3376
  %v3407 = vpack.c.b16 %v3379, %v3378
  %v3408 = vpack.c.b16 %v3381, %v3380
  %v3409 = vpack.c.b16 %v3383, %v3382
  %v3410 = vpack.c.b16 %v3385, %v3384
  %v3411 = vpack.c.b16 %v3387, %v3386
  %v3412 = vpack.c.b16 %v3389, %v3388
  %v3413 = vpack.c.b16 %v3391, %v3390
  %v3414 = vpack.c.b16 %v3393, %v3392
  %v3415 = vpack.c.b16 %v3395, %v3394
  %v3416 = vpack.c.b16 %v3397, %v3396
  %v3417 = vpack.c.b16 %v3399, %v3398
  %v3418 = vpack.c.b16 %v3401, %v3400
  %v3419 = vpack.c.b16 %v3403, %v3402
  %3436 = vmatpush.bf16.msra.mxu0 %v3411
  %3437 = vmatpush.bf16.msra.mxu0 %v3410
  %3438 = vmatpush.bf16.msra.mxu0 %v3409
  %3439 = vmatpush.bf16.msra.mxu0 %v3408
  %3440 = vmatpush.bf16.msra.mxu0 %v3407
  %3441 = vmatpush.bf16.msra.mxu0 %v3406
  %3442 = vmatpush.bf16.msra.mxu0 %v3405
  %3443 = vmatpush.bf16.msra.mxu0 %v3404
  %3444 = vmatmul.bf16.gmra.mxu0 %v3338
  %v3445 = vpop.f32.mrf.mxu0
  %v3446 = vadd.f32 0.0, %v3445
  %v3447 = vpop.f32.mrf.mxu0
  %v3448 = vadd.f32 0.0, %v3447
  %3449 = vdwg.mxu0
  %3450 = vmatpush.bf16.msra.mxu0 %v3419
  %3451 = vmatpush.bf16.msra.mxu0 %v3418
  %3452 = vmatpush.bf16.msra.mxu0 %v3417
  %3453 = vmatpush.bf16.msra.mxu0 %v3416
  %3454 = vmatpush.bf16.msra.mxu0 %v3415
  %3455 = vmatpush.bf16.msra.mxu0 %v3414
  %3456 = vmatpush.bf16.msra.mxu0 %v3413
  %3457 = vmatpush.bf16.msra.mxu0 %v3412
  %3458 = vmatmul.bf16.gmra.mxu0 %v3339
  %v3459 = vpop.f32.mrf.mxu0
  %v3460 = vadd.f32 %v3446, %v3459
  %v3461 = vpop.f32.mrf.mxu0
  %v3462 = vadd.f32 %v3448, %v3461
  %3463 = vdwg.mxu0
  %v3464 = vadd.f32 %v3334, %v3460
  %v3465 = vadd.f32 %v3336, %v3462
  %v3466 = vld [vmem:[%s18] sm:$0x1]
  %v3468 = vperm.slane %v3466, 0
  %v3470 = vadd.f32 %v3464, %v3468
  %v3471 = vadd.f32 %v3465, %v3468
  %3472 = vst [vmem:[%s19] sm:$0xff] %v3470
  %3473 = vst [vmem:[%s19 + $0x8] sm:$0xff] %v3471
  // Predicated region
  $region78: #{cross_domain_forward.1} parent=0 // pred_check
    _
  $region79: #{cross_domain_forward.1} parent=0 // pred_check_branch
    %3475 = sbr.rel (0) target = $region81
  $region80: #{cross_domain_forward.1} parent=0 // pred_region
    _
  $region81: #{cross_domain_forward.1} parent=0 // pred_fallthru
    _
  // Predicated region
  $region82: #{cross_domain_forward.1} parent=0 // pred_check
    _
  $region83: #{cross_domain_forward.1} parent=0 // pred_check_branch
    %3477 = sbr.rel (0) target = $region85
  $region84: #{cross_domain_forward.1} parent=0 // pred_region
    _
  $region85: #{cross_domain_forward.1} parent=0 // pred_fallthru
    _

</llo_original>
